<compile_context>
chip_gen: v7x
topology: tpu7x:2x2x1
jax: 0.10.0
libtpu: 0.0.40
codegen_flags: <defaults>
</compile_context>

<pallas_src>
import functools

import jax
import jax.numpy as jnp
from jax.experimental import pallas as pl
from jax.experimental.pallas import tpu as pltpu


# Phase bookkeeping for the folded 2x-upsample + 3x3 conv:
# output row 2*i + py reads source rows {i + off : off in _OFFS[py]}, and the
# original kernel rows (dy) contributing to offset _OFFS[py][k] are
# _TAPS[py][k] (identically for columns with px / dx).
_OFFS = ((-1, 0), (0, 1))
_TAPS = (((0,), (1, 2)), ((0, 1), (2,)))


def _fill_shifted(x, xc_ref, *, NB, H, W, C):
    """Build three zero-bordered, column-shifted copies of x in VMEM scratch.

    xc_ref[cidx, n, 1 + i, j, :] == x[n, i, j + (cidx - 1), :] (0 outside),
    rows 0 and H+1 are zero, so the tap at (row off r, col off c) is the free
    leading-dim slice xc_ref[c + 1, :, 1 + r : 1 + r + H, :, :].
    """
    dt = xc_ref.dtype
    zrow = jnp.zeros((NB, 1, W, C), dt)
    for cidx in range(3):
        xc_ref[cidx, :, 0:1, :, :] = zrow
        xc_ref[cidx, :, H + 1:H + 2, :, :] = zrow
    zcol = jnp.zeros((NB, H, 1, C), dt)
    # c = 0
    xc_ref[1, :, 1:H + 1, :, :] = x
    # c = -1 : column 0 reads x[:, :, -1] -> zero
    xc_ref[0, :, 1:H + 1, 1:W, :] = x[:, :, 0:W - 1, :]
    xc_ref[0, :, 1:H + 1, 0:1, :] = zcol
    # c = +1 : column W-1 reads x[:, :, W] -> zero
    xc_ref[2, :, 1:H + 1, 0:W - 1, :] = x[:, :, 1:W, :]
    xc_ref[2, :, 1:H + 1, W - 1:W, :] = zcol


def _upsample_conv_kernel(x_ref, w_ref, b_ref, o_ref, xc_ref, *,
                          NB, H, W, C, TCO, fuse_taps, guard_fill):
    """One (Cout tile x batch block) step of the folded upsample + conv.

    x_ref:  (NB, H, W, C)                         NHWC input block (VMEM)
    w_ref:  (4, 4C, TCO) if fuse_taps else (16, C, TCO)  effective weights
    b_ref:  (1, TCO)                              bias (VMEM, f32)
    o_ref:  (NB, H, 4, W, TCO)                    phase-major output block
    xc_ref: (3, NB, H+2, W, C)                    column-shifted input scratch
    """

    def fill():
        _fill_shifted(x_ref[...], xc_ref, NB=NB, H=H, W=W, C=C)

    if guard_fill:
        # x block is resident across the Cout-tile axis (grid axis 1, marked
        # "arbitrary"): rebuild the shifted scratch only on the first tile.
        pl.when(pl.program_id(1) == 0)(fill)
    else:
        fill()

    bias = b_ref[...].astype(jnp.float32)          # (1, TCO)
    M = NB * H * W

    for py in range(2):
        for px in range(2):
            ph = py * 2 + px
            if fuse_taps:
                # One MXU call per phase: K = 4C patch (taps concatenated).
                parts = []
                for ri in range(2):
                    r = _OFFS[py][ri]
                    for ci in range(2):
                        c = _OFFS[px][ci]
                        parts.append(xc_ref[c + 1, :, 1 + r:1 + r + H, :, :])
                patch = jnp.concatenate(parts, axis=-1).reshape(M, 4 * C)
                acc = jnp.dot(patch, w_ref[ph],
                              preferred_element_type=jnp.float32)
            else:
                # 4 separate dots per phase (preferred for large C).
                acc = None
                for ri in range(2):
                    r = _OFFS[py][ri]
                    for ci in range(2):
                        c = _OFFS[px][ci]
                        t = ph * 4 + ri * 2 + ci
                        xs = xc_ref[c + 1, :, 1 + r:1 + r + H, :, :]
                        d = jnp.dot(xs.reshape(M, C), w_ref[t],
                                    preferred_element_type=jnp.float32)
                        acc = d if acc is None else acc + d
            res = (acc + bias).reshape(NB, H, W, TCO)
            o_ref[:, :, ph, :, :] = res.astype(o_ref.dtype)


def _upsample_only_kernel(x_ref, o_ref):
    """Nearest 2x upsample only (use_conv=False): every phase is a copy."""
    x = x_ref[0]
    for ph in range(4):
        o_ref[0, :, ph, :, :] = x


def _vmem_cap_bytes():
    """Physical VMEM of the current chip minus headroom (fallback: v7x-safe)."""
    try:
        cap = int(pltpu.get_tpu_info().vmem_capacity_bytes)
        return max(32 << 20, int(cap * 0.85))
    except Exception:
        return 56 << 20          # below v7x's 64 MiB physical VMEM


def _pick_cout_tile(cout, hw):
    # 256 matches the v6e/v7x MXU width while the f32 accumulator stays small,
    # 128 matches v5e natively; small Cout stays un-tiled (full dim satisfies
    # the (8,128) BlockSpec rule).
    if cout % 256 == 0 and hw * 256 * 4 <= (8 << 20):
        return 256
    if cout % 128 == 0:
        return 128
    return cout


def _pick_batch_block(n, hw):
    # Raise the matmul M dim toward >= 256 rows (MXU fill on v6e/v7x).
    nb = 1
    while nb < n and n % (nb * 2) == 0 and nb * hw < 256:
        nb *= 2
    return nb


def upsample_forward(x, w=None, b=None, *, use_conv=True, scale_factor=2,
                     fuse_taps=None):
    """Forward pass of Upsample(channels=C, use_conv, dims=2). x is NCHW."""
    assert scale_factor == 2, "only scale_factor=2 implemented"
    N, C, H, W = x.shape
    Ho, Wo = 2 * H, 2 * W
    isz = jnp.dtype(x.dtype).itemsize
    vmem_cap = _vmem_cap_bytes()

    # Channel-last for the kernel (C on lanes).
    x_nhwc = jnp.transpose(x, (0, 2, 3, 1))
    Wk = W

    if not use_conv:
        blk = H * W * C * isz * 5            # input block + 4x output block
        vmem_bytes = int(min(max(2 * blk + (2 << 20), 16 << 20), vmem_cap))
        # TODO(synk): tile H here for very large feature maps.
        out_p = pl.pallas_call(
            _upsample_only_kernel,
            out_shape=jax.ShapeDtypeStruct((N, H, 4, W, C), x.dtype),
            grid_spec=pltpu.PrefetchScalarGridSpec(
                num_scalar_prefetch=0,
                grid=(N,),
                in_specs=[pl.BlockSpec((1, H, W, C), lambda n: (n, 0, 0, 0))],
                out_specs=pl.BlockSpec((1, H, 4, W, C),
                                       lambda n: (n, 0, 0, 0, 0)),
            ),
            compiler_params=pltpu.CompilerParams(
                dimension_semantics=("parallel",),
                vmem_limit_bytes=vmem_bytes),
        )(x_nhwc)
        cout = C
    else:
        Cout, Cin, K, K2 = w.shape
        assert Cin == C and K == 3 and K2 == 3
        cout = Cout

        # Pad W to a multiple of 8 so in-kernel reshapes are pure relabelings.
        Wk = W if W % 8 == 0 else W + (8 - W % 8)
        if Wk != W:
            x_nhwc = jnp.pad(x_nhwc, ((0, 0), (0, 0), (0, Wk - W), (0, 0)))

        hw = H * Wk
        TCO = _pick_cout_tile(Cout, hw)
        n_ct = Cout // TCO
        NB = _pick_batch_block(N, hw)
        n_nb = N // NB
        if fuse_taps is None:
            fuse_taps = C < 256

        # Effective per-phase/tap weights, ordered t = ph*4 + ri*2 + ci.
        wt = jnp.transpose(w, (2, 3, 1, 0)).astype(jnp.float32)  # (3,3,C,Cout)
        tap_mats = []
        for py in range(2):
            for px in range(2):
                for ri in range(2):
                    for ci in range(2):
                        m = jnp.zeros((C, Cout), jnp.float32)
                        for dy in _TAPS[py][ri]:
                            for dx in _TAPS[px][ci]:
                                m = m + wt[dy, dx]
                        tap_mats.append(m)
        if fuse_taps:
            weff = jnp.stack(
                [jnp.concatenate(tap_mats[4 * ph:4 * ph + 4], axis=0)
                 for ph in range(4)], axis=0)                 # (4, 4C, Cout)
            w_block = (4, 4 * C, TCO)
        else:
            weff = jnp.stack(tap_mats, axis=0)                # (16, C, Cout)
            w_block = (16, C, TCO)
        weff = weff.astype(x.dtype)
        b2 = b.reshape(1, Cout).astype(jnp.float32)

        # Grid order by operand residency. Total HBM reads:
        #   ct-outer (weights resident): n_ct * X + Wt
        #   nb-outer (x resident)      : X + n_nb * Wt
        x_bytes = N * H * Wk * C * isz
        w_bytes = 16 * C * Cout * isz
        weights_resident = (n_ct - 1) * x_bytes <= (n_nb - 1) * w_bytes
        if weights_resident:
            grid = (n_ct, n_nb)
            x_map = lambda ct, nb: (nb, 0, 0, 0)
            w_map = lambda ct, nb: (0, 0, ct)
            b_map = lambda ct, nb: (0, ct)
            o_map = lambda ct, nb: (nb, 0, 0, 0, ct)
            dim_sem = ("parallel", "parallel")
            guard_fill = False
        else:
            grid = (n_nb, n_ct)
            x_map = lambda nb, ct: (nb, 0, 0, 0)
            w_map = lambda nb, ct: (0, 0, ct)
            b_map = lambda nb, ct: (0, ct)
            o_map = lambda nb, ct: (nb, 0, 0, 0, ct)
            # ct must be "arbitrary" so each core visits ct=0 first for every
            # batch block it owns (scratch fill is skipped for ct > 0).
            dim_sem = ("parallel", "arbitrary")
            guard_fill = True

        kernel = functools.partial(
            _upsample_conv_kernel, NB=NB, H=H, W=Wk, C=C, TCO=TCO,
            fuse_taps=fuse_taps, guard_fill=guard_fill)

        # VMEM budget: double-buffered blocks + shifted-input scratch +
        # in-kernel intermediates (patch / f32 accumulator) + slack, capped by
        # physical VMEM with headroom.
        x_blk = NB * H * Wk * C * isz
        w_blk = 16 * C * TCO * isz
        o_blk = NB * H * 4 * Wk * TCO * isz
        scratch_b = 3 * NB * (H + 2) * Wk * C * isz
        live = NB * H * Wk * (4 * C * isz + TCO * 4)
        needed = (2 * (x_blk + w_blk + TCO * 4 + o_blk) + scratch_b + live
                  + (4 << 20))
        vmem_bytes = int(min(max(needed, 32 << 20), vmem_cap))

        flops = 32 * N * H * Wk * C * Cout          # 4 taps per output pixel
        bytes_accessed = (x_bytes + w_bytes + Cout * 4
                          + N * 4 * H * Wk * Cout * isz)

        out_p = pl.pallas_call(
            kernel,
            out_shape=jax.ShapeDtypeStruct((N, H, 4, Wk, Cout), x.dtype),
            grid_spec=pltpu.PrefetchScalarGridSpec(
                num_scalar_prefetch=0,
                grid=grid,
                in_specs=[
                    pl.BlockSpec((NB, H, Wk, C), x_map),
                    pl.BlockSpec(w_block, w_map),
                    pl.BlockSpec((1, TCO), b_map),
                ],
                out_specs=pl.BlockSpec((NB, H, 4, Wk, TCO), o_map),
                scratch_shapes=[pltpu.VMEM((3, NB, H + 2, Wk, C), x.dtype)],
            ),
            compiler_params=pltpu.CompilerParams(
                dimension_semantics=dim_sem,
                vmem_limit_bytes=vmem_bytes),
            cost_estimate=pl.CostEstimate(
                flops=flops, transcendentals=0,
                bytes_accessed=bytes_accessed),
        )(x_nhwc, weff, b2)

    # Phase untangle + back to NCHW: (N, H, 4, Wk, cout) -> (N, cout, 2H, 2W).
    y6 = out_p.reshape(N, H, 2, 2, Wk, cout)       # [n, i, py, px, j, c]
    y = jnp.transpose(y6, (0, 5, 1, 2, 4, 3))      # [n, c, i, py, j, px]
    y = y.reshape(N, cout, Ho, 2 * Wk)
    return y[:, :, :, :Wo]


def _reference(x, w, b):
    """Pure-JAX reference matching torch: F.interpolate(nearest, x2) + Conv2d."""
    up = jnp.repeat(jnp.repeat(x, 2, axis=2), 2, axis=3)
    out = jax.lax.conv_general_dilated(
        up, w, window_strides=(1, 1), padding=((1, 1), (1, 1)),
        dimension_numbers=("NCHW", "OIHW", "NCHW"))
    return out + b[None, :, None, None]


if __name__ == "__main__":
    key = jax.random.PRNGKey(0)
    k1, k2, k3, k4, k5 = jax.random.split(key, 5)

    # 1) Upsample(channels=4, use_conv=True): fused-taps path, Cout-tile-outer
    #    (weights-resident) grid order.
    N, C, H, W = 2, 4, 16, 16
    Cout = 4
    x = jax.random.normal(k1, (N, C, H, W), dtype=jnp.float32)
    conv_w = jax.random.normal(k2, (Cout, C, 3, 3), dtype=jnp.float32) * 0.1
    conv_b = jax.random.normal(k3, (Cout,), dtype=jnp.float32) * 0.1

    out = jax.block_until_ready(
        upsample_forward(x, conv_w, conv_b, use_conv=True))
    ref = _reference(x, conv_w, conv_b)
    assert out.shape == (N, Cout, 2 * H, 2 * W), out.shape
    assert jnp.allclose(out, ref, atol=1e-2, rtol=1e-2), (
        float(jnp.max(jnp.abs(out - ref))))

    # 2) out_channels != channels: separate-dots path, x-resident grid order
    #    with the @pl.when(ct == 0) scratch fill (Cout tiled into 3 tiles).
    N2, C2, H2, W2, Cout2 = 1, 4, 16, 16, 384
    x2 = jax.random.normal(k4, (N2, C2, H2, W2), dtype=jnp.float32)
    w2 = jax.random.normal(k5, (Cout2, C2, 3, 3), dtype=jnp.float32) * 0.1
    b2 = jnp.linspace(-0.1, 0.1, Cout2, dtype=jnp.float32)
    out2 = jax.block_until_ready(
        upsample_forward(x2, w2, b2, use_conv=True, fuse_taps=False))
    ref2 = _reference(x2, w2, b2)
    assert out2.shape == (N2, Cout2, 2 * H2, 2 * W2), out2.shape
    assert jnp.allclose(out2, ref2, atol=1e-2, rtol=1e-2), (
        float(jnp.max(jnp.abs(out2 - ref2))))

    # 3) use_conv=False path (pure nearest 2x upsample).
    out3 = jax.block_until_ready(upsample_forward(x, use_conv=False))
    ref3 = jnp.repeat(jnp.repeat(x, 2, axis=2), 2, axis=3)
    assert jnp.allclose(out3, ref3), float(jnp.max(jnp.abs(out3 - ref3)))

    print("KERNEL_OK")
</pallas_src>

<mosaic_0001>
module attributes {stable_mosaic.version = 11 : i64} {
  func.func @_upsample_conv_kernel(%arg0: i32, %arg1: i32, %arg2: memref<1x16x16x4xf32, #tpu.memory_space<vmem>>, %arg3: memref<4x16x4xf32, #tpu.memory_space<vmem>>, %arg4: memref<1x4xf32, #tpu.memory_space<vmem>>, %arg5: memref<1x16x4x16x4xf32, #tpu.memory_space<vmem>>, %arg6: memref<3x1x18x16x4xf32, #tpu.memory_space<vmem>>) attributes {dimension_semantics = [#tpu.dimension_semantics<parallel>, #tpu.dimension_semantics<parallel>], iteration_bounds = array<i64: 1, 2>, scalar_prefetch = 0 : i64, scratch_operands = 1 : i64, tpu.core_type = #tpu.core_type<tc>, window_params = [{transform_indices = @transform_0, window_bounds = array<i64: 1, 16, 16, 4>}, {transform_indices = @transform_1, window_bounds = array<i64: 4, 16, 4>}, {transform_indices = @transform_2, window_bounds = array<i64: 1, 4>}, {transform_indices = @transform_3, window_bounds = array<i64: 1, 16, 4, 16, 4>}]} {
    %c0 = arith.constant 0 : index
    %c0_0 = arith.constant 0 : index
    %c0_1 = arith.constant 0 : index
    %c0_2 = arith.constant 0 : index
    %0 = vector.load %arg2[%c0, %c0_0, %c0_1, %c0_2] : memref<1x16x16x4xf32, #tpu.memory_space<vmem>>, vector<1x16x16x4xf32>
    %cst = arith.constant 0.000000e+00 : f32
    %1 = vector.broadcast %cst : f32 to vector<1x1x16x4xf32>
    %c0_3 = arith.constant 0 : index
    %c0_4 = arith.constant 0 : index
    %c0_5 = arith.constant 0 : index
    %c0_6 = arith.constant 0 : index
    %c0_7 = arith.constant 0 : index
    %2 = vector.load %arg6[%c0_3, %c0_4, %c0_5, %c0_6, %c0_7] : memref<3x1x18x16x4xf32, #tpu.memory_space<vmem>>, vector<1x1x1x16x4xf32>
    %3 = vector.shape_cast %2 : vector<1x1x1x16x4xf32> to vector<1x1x16x4xf32>
    %4 = vector.shape_cast %1 : vector<1x1x16x4xf32> to vector<1x1x1x16x4xf32>
    tpu.vector_store %arg6[%c0_3, %c0_4, %c0_5, %c0_6, %c0_7], %4 {strides = array<i32>} : memref<3x1x18x16x4xf32, #tpu.memory_space<vmem>>, vector<1x1x1x16x4xf32>,
    %c0_8 = arith.constant 0 : index
    %c0_9 = arith.constant 0 : index
    %c17 = arith.constant 17 : index
    %c0_10 = arith.constant 0 : index
    %c0_11 = arith.constant 0 : index
    %5 = vector.load %arg6[%c0_8, %c0_9, %c17, %c0_10, %c0_11] : memref<3x1x18x16x4xf32, #tpu.memory_space<vmem>>, vector<1x1x1x16x4xf32>
    %6 = vector.shape_cast %5 : vector<1x1x1x16x4xf32> to vector<1x1x16x4xf32>
    %7 = vector.shape_cast %1 : vector<1x1x16x4xf32> to vector<1x1x1x16x4xf32>
    tpu.vector_store %arg6[%c0_8, %c0_9, %c17, %c0_10, %c0_11], %7 {strides = array<i32>} : memref<3x1x18x16x4xf32, #tpu.memory_space<vmem>>, vector<1x1x1x16x4xf32>,
    %c1 = arith.constant 1 : index
    %c0_12 = arith.constant 0 : index
    %c0_13 = arith.constant 0 : index
    %c0_14 = arith.constant 0 : index
    %c0_15 = arith.constant 0 : index
    %8 = vector.load %arg6[%c1, %c0_12, %c0_13, %c0_14, %c0_15] : memref<3x1x18x16x4xf32, #tpu.memory_space<vmem>>, vector<1x1x1x16x4xf32>
    %9 = vector.shape_cast %8 : vector<1x1x1x16x4xf32> to vector<1x1x16x4xf32>
    %10 = vector.shape_cast %1 : vector<1x1x16x4xf32> to vector<1x1x1x16x4xf32>
    tpu.vector_store %arg6[%c1, %c0_12, %c0_13, %c0_14, %c0_15], %10 {strides = array<i32>} : memref<3x1x18x16x4xf32, #tpu.memory_space<vmem>>, vector<1x1x1x16x4xf32>,
    %c1_16 = arith.constant 1 : index
    %c0_17 = arith.constant 0 : index
    %c17_18 = arith.constant 17 : index
    %c0_19 = arith.constant 0 : index
    %c0_20 = arith.constant 0 : index
    %11 = vector.load %arg6[%c1_16, %c0_17, %c17_18, %c0_19, %c0_20] : memref<3x1x18x16x4xf32, #tpu.memory_space<vmem>>, vector<1x1x1x16x4xf32>
    %12 = vector.shape_cast %11 : vector<1x1x1x16x4xf32> to vector<1x1x16x4xf32>
    %13 = vector.shape_cast %1 : vector<1x1x16x4xf32> to vector<1x1x1x16x4xf32>
    tpu.vector_store %arg6[%c1_16, %c0_17, %c17_18, %c0_19, %c0_20], %13 {strides = array<i32>} : memref<3x1x18x16x4xf32, #tpu.memory_space<vmem>>, vector<1x1x1x16x4xf32>,
    %c2 = arith.constant 2 : index
    %c0_21 = arith.constant 0 : index
    %c0_22 = arith.constant 0 : index
    %c0_23 = arith.constant 0 : index
    %c0_24 = arith.constant 0 : index
    %14 = vector.load %arg6[%c2, %c0_21, %c0_22, %c0_23, %c0_24] : memref<3x1x18x16x4xf32, #tpu.memory_space<vmem>>, vector<1x1x1x16x4xf32>
    %15 = vector.shape_cast %14 : vector<1x1x1x16x4xf32> to vector<1x1x16x4xf32>
    %16 = vector.shape_cast %1 : vector<1x1x16x4xf32> to vector<1x1x1x16x4xf32>
    tpu.vector_store %arg6[%c2, %c0_21, %c0_22, %c0_23, %c0_24], %16 {strides = array<i32>} : memref<3x1x18x16x4xf32, #tpu.memory_space<vmem>>, vector<1x1x1x16x4xf32>,
    %c2_25 = arith.constant 2 : index
    %c0_26 = arith.constant 0 : index
    %c17_27 = arith.constant 17 : index
    %c0_28 = arith.constant 0 : index
    %c0_29 = arith.constant 0 : index
    %17 = vector.load %arg6[%c2_25, %c0_26, %c17_27, %c0_28, %c0_29] : memref<3x1x18x16x4xf32, #tpu.memory_space<vmem>>, vector<1x1x1x16x4xf32>
    %18 = vector.shape_cast %17 : vector<1x1x1x16x4xf32> to vector<1x1x16x4xf32>
    %19 = vector.shape_cast %1 : vector<1x1x16x4xf32> to vector<1x1x1x16x4xf32>
    tpu.vector_store %arg6[%c2_25, %c0_26, %c17_27, %c0_28, %c0_29], %19 {strides = array<i32>} : memref<3x1x18x16x4xf32, #tpu.memory_space<vmem>>, vector<1x1x1x16x4xf32>,
    %cst_30 = arith.constant 0.000000e+00 : f32
    %20 = vector.broadcast %cst_30 : f32 to vector<1x16x1x4xf32>
    %c1_31 = arith.constant 1 : index
    %c0_32 = arith.constant 0 : index
    %c1_33 = arith.constant 1 : index
    %c0_34 = arith.constant 0 : index
    %c0_35 = arith.constant 0 : index
    %21 = vector.load %arg6[%c1_31, %c0_32, %c1_33, %c0_34, %c0_35] : memref<3x1x18x16x4xf32, #tpu.memory_space<vmem>>, vector<1x1x16x16x4xf32>
    %22 = vector.shape_cast %21 : vector<1x1x16x16x4xf32> to vector<1x16x16x4xf32>
    %23 = vector.shape_cast %0 : vector<1x16x16x4xf32> to vector<1x1x16x16x4xf32>
    tpu.vector_store %arg6[%c1_31, %c0_32, %c1_33, %c0_34, %c0_35], %23 {strides = array<i32>} : memref<3x1x18x16x4xf32, #tpu.memory_space<vmem>>, vector<1x1x16x16x4xf32>,
    %24 = vector.extract_strided_slice %0 {offsets = [0, 0, 0, 0], sizes = [1, 16, 15, 4], strides = [1, 1, 1, 1]} : vector<1x16x16x4xf32> to vector<1x16x15x4xf32>
    %c0_36 = arith.constant 0 : index
    %c0_37 = arith.constant 0 : index
    %c1_38 = arith.constant 1 : index
    %c1_39 = arith.constant 1 : index
    %c0_40 = arith.constant 0 : index
    %25 = vector.load %arg6[%c0_36, %c0_37, %c1_38, %c1_39, %c0_40] : memref<3x1x18x16x4xf32, #tpu.memory_space<vmem>>, vector<1x1x16x15x4xf32>
    %26 = vector.shape_cast %25 : vector<1x1x16x15x4xf32> to vector<1x16x15x4xf32>
    %27 = vector.shape_cast %24 : vector<1x16x15x4xf32> to vector<1x1x16x15x4xf32>
    tpu.vector_store %arg6[%c0_36, %c0_37, %c1_38, %c1_39, %c0_40], %27 {strides = array<i32>} : memref<3x1x18x16x4xf32, #tpu.memory_space<vmem>>, vector<1x1x16x15x4xf32>,
    %c0_41 = arith.constant 0 : index
    %c0_42 = arith.constant 0 : index
    %c1_43 = arith.constant 1 : index
    %c0_44 = arith.constant 0 : index
    %c0_45 = arith.constant 0 : index
    %28 = vector.load %arg6[%c0_41, %c0_42, %c1_43, %c0_44, %c0_45] : memref<3x1x18x16x4xf32, #tpu.memory_space<vmem>>, vector<1x1x16x1x4xf32>
    %29 = vector.shape_cast %28 : vector<1x1x16x1x4xf32> to vector<1x16x1x4xf32>
    %30 = vector.shape_cast %20 : vector<1x16x1x4xf32> to vector<1x1x16x1x4xf32>
    tpu.vector_store %arg6[%c0_41, %c0_42, %c1_43, %c0_44, %c0_45], %30 {strides = array<i32>} : memref<3x1x18x16x4xf32, #tpu.memory_space<vmem>>, vector<1x1x16x1x4xf32>,
    %31 = vector.extract_strided_slice %0 {offsets = [0, 0, 1, 0], sizes = [1, 16, 15, 4], strides = [1, 1, 1, 1]} : vector<1x16x16x4xf32> to vector<1x16x15x4xf32>
    %c2_46 = arith.constant 2 : index
    %c0_47 = arith.constant 0 : index
    %c1_48 = arith.constant 1 : index
    %c0_49 = arith.constant 0 : index
    %c0_50 = arith.constant 0 : index
    %32 = vector.load %arg6[%c2_46, %c0_47, %c1_48, %c0_49, %c0_50] : memref<3x1x18x16x4xf32, #tpu.memory_space<vmem>>, vector<1x1x16x15x4xf32>
    %33 = vector.shape_cast %32 : vector<1x1x16x15x4xf32> to vector<1x16x15x4xf32>
    %34 = vector.shape_cast %31 : vector<1x16x15x4xf32> to vector<1x1x16x15x4xf32>
    tpu.vector_store %arg6[%c2_46, %c0_47, %c1_48, %c0_49, %c0_50], %34 {strides = array<i32>} : memref<3x1x18x16x4xf32, #tpu.memory_space<vmem>>, vector<1x1x16x15x4xf32>,
    %c2_51 = arith.constant 2 : index
    %c0_52 = arith.constant 0 : index
    %c1_53 = arith.constant 1 : index
    %c15 = arith.constant 15 : index
    %c0_54 = arith.constant 0 : index
    %35 = vector.load %arg6[%c2_51, %c0_52, %c1_53, %c15, %c0_54] : memref<3x1x18x16x4xf32, #tpu.memory_space<vmem>>, vector<1x1x16x1x4xf32>
    %36 = vector.shape_cast %35 : vector<1x1x16x1x4xf32> to vector<1x16x1x4xf32>
    %37 = vector.shape_cast %20 : vector<1x16x1x4xf32> to vector<1x1x16x1x4xf32>
    tpu.vector_store %arg6[%c2_51, %c0_52, %c1_53, %c15, %c0_54], %37 {strides = array<i32>} : memref<3x1x18x16x4xf32, #tpu.memory_space<vmem>>, vector<1x1x16x1x4xf32>,
    %c0_55 = arith.constant 0 : index
    %c0_56 = arith.constant 0 : index
    %38 = vector.load %arg4[%c0_55, %c0_56] : memref<1x4xf32, #tpu.memory_space<vmem>>, vector<1x4xf32>
    %c0_57 = arith.constant 0 : index
    %c0_58 = arith.constant 0 : index
    %c0_59 = arith.constant 0 : index
    %c0_60 = arith.constant 0 : index
    %c0_61 = arith.constant 0 : index
    %39 = vector.load %arg6[%c0_57, %c0_58, %c0_59, %c0_60, %c0_61] : memref<3x1x18x16x4xf32, #tpu.memory_space<vmem>>, vector<1x1x16x16x4xf32>
    %40 = vector.shape_cast %39 : vector<1x1x16x16x4xf32> to vector<1x16x16x4xf32>
    %c1_62 = arith.constant 1 : index
    %c0_63 = arith.constant 0 : index
    %c0_64 = arith.constant 0 : index
    %c0_65 = arith.constant 0 : index
    %c0_66 = arith.constant 0 : index
    %41 = vector.load %arg6[%c1_62, %c0_63, %c0_64, %c0_65, %c0_66] : memref<3x1x18x16x4xf32, #tpu.memory_space<vmem>>, vector<1x1x16x16x4xf32>
    %42 = vector.shape_cast %41 : vector<1x1x16x16x4xf32> to vector<1x16x16x4xf32>
    %c0_67 = arith.constant 0 : index
    %c0_68 = arith.constant 0 : index
    %c1_69 = arith.constant 1 : index
    %c0_70 = arith.constant 0 : index
    %c0_71 = arith.constant 0 : index
    %43 = vector.load %arg6[%c0_67, %c0_68, %c1_69, %c0_70, %c0_71] : memref<3x1x18x16x4xf32, #tpu.memory_space<vmem>>, vector<1x1x16x16x4xf32>
    %44 = vector.shape_cast %43 : vector<1x1x16x16x4xf32> to vector<1x16x16x4xf32>
    %c1_72 = arith.constant 1 : index
    %c0_73 = arith.constant 0 : index
    %c1_74 = arith.constant 1 : index
    %c0_75 = arith.constant 0 : index
    %c0_76 = arith.constant 0 : index
    %45 = vector.load %arg6[%c1_72, %c0_73, %c1_74, %c0_75, %c0_76] : memref<3x1x18x16x4xf32, #tpu.memory_space<vmem>>, vector<1x1x16x16x4xf32>
    %46 = vector.shape_cast %45 : vector<1x1x16x16x4xf32> to vector<1x16x16x4xf32>
    %47 = tpu.concatenate %40, %42, %44, %46 in 3 : vector<1x16x16x4xf32>, vector<1x16x16x4xf32>, vector<1x16x16x4xf32>, vector<1x16x16x4xf32> -> vector<1x16x16x16xf32>
    %48 = vector.shape_cast %47 : vector<1x16x16x16xf32> to vector<256x16xf32>
    %c0_77 = arith.constant 0 : index
    %c0_78 = arith.constant 0 : index
    %c0_79 = arith.constant 0 : index
    %49 = vector.load %arg3[%c0_77, %c0_78, %c0_79] : memref<4x16x4xf32, #tpu.memory_space<vmem>>, vector<1x16x4xf32>
    %50 = vector.shape_cast %49 : vector<1x16x4xf32> to vector<16x4xf32>
    %cst_80 = arith.constant dense<0.000000e+00> : vector<256x4xf32>
    %51 = tpu.matmul %48, %50, %cst_80 {dimension_numbers = #tpu.dot_dimension_numbers<[1], [0], [0], [1], [0, 0, 1, 1], [], []>} : vector<256x16xf32>, vector<16x4xf32>, vector<256x4xf32> -> vector<256x4xf32>
    %52 = vector.broadcast %38 : vector<1x4xf32> to vector<256x4xf32>
    %53 = arith.addf %51, %52 : vector<256x4xf32>
    %54 = vector.shape_cast %53 : vector<256x4xf32> to vector<1x16x16x4xf32>
    %c0_81 = arith.constant 0 : index
    %c0_82 = arith.constant 0 : index
    %c0_83 = arith.constant 0 : index
    %c0_84 = arith.constant 0 : index
    %c0_85 = arith.constant 0 : index
    %55 = vector.load %arg5[%c0_81, %c0_82, %c0_83, %c0_84, %c0_85] : memref<1x16x4x16x4xf32, #tpu.memory_space<vmem>>, vector<1x16x1x16x4xf32>
    %56 = vector.shape_cast %55 : vector<1x16x1x16x4xf32> to vector<1x16x16x4xf32>
    %57 = vector.shape_cast %54 : vector<1x16x16x4xf32> to vector<1x16x1x16x4xf32>
    tpu.vector_store %arg5[%c0_81, %c0_82, %c0_83, %c0_84, %c0_85], %57 {strides = array<i32>} : memref<1x16x4x16x4xf32, #tpu.memory_space<vmem>>, vector<1x16x1x16x4xf32>,
    %c1_86 = arith.constant 1 : index
    %c0_87 = arith.constant 0 : index
    %c0_88 = arith.constant 0 : index
    %c0_89 = arith.constant 0 : index
    %c0_90 = arith.constant 0 : index
    %58 = vector.load %arg6[%c1_86, %c0_87, %c0_88, %c0_89, %c0_90] : memref<3x1x18x16x4xf32, #tpu.memory_space<vmem>>, vector<1x1x16x16x4xf32>
    %59 = vector.shape_cast %58 : vector<1x1x16x16x4xf32> to vector<1x16x16x4xf32>
    %c2_91 = arith.constant 2 : index
    %c0_92 = arith.constant 0 : index
    %c0_93 = arith.constant 0 : index
    %c0_94 = arith.constant 0 : index
    %c0_95 = arith.constant 0 : index
    %60 = vector.load %arg6[%c2_91, %c0_92, %c0_93, %c0_94, %c0_95] : memref<3x1x18x16x4xf32, #tpu.memory_space<vmem>>, vector<1x1x16x16x4xf32>
    %61 = vector.shape_cast %60 : vector<1x1x16x16x4xf32> to vector<1x16x16x4xf32>
    %c1_96 = arith.constant 1 : index
    %c0_97 = arith.constant 0 : index
    %c1_98 = arith.constant 1 : index
    %c0_99 = arith.constant 0 : index
    %c0_100 = arith.constant 0 : index
    %62 = vector.load %arg6[%c1_96, %c0_97, %c1_98, %c0_99, %c0_100] : memref<3x1x18x16x4xf32, #tpu.memory_space<vmem>>, vector<1x1x16x16x4xf32>
    %63 = vector.shape_cast %62 : vector<1x1x16x16x4xf32> to vector<1x16x16x4xf32>
    %c2_101 = arith.constant 2 : index
    %c0_102 = arith.constant 0 : index
    %c1_103 = arith.constant 1 : index
    %c0_104 = arith.constant 0 : index
    %c0_105 = arith.constant 0 : index
    %64 = vector.load %arg6[%c2_101, %c0_102, %c1_103, %c0_104, %c0_105] : memref<3x1x18x16x4xf32, #tpu.memory_space<vmem>>, vector<1x1x16x16x4xf32>
    %65 = vector.shape_cast %64 : vector<1x1x16x16x4xf32> to vector<1x16x16x4xf32>
    %66 = tpu.concatenate %59, %61, %63, %65 in 3 : vector<1x16x16x4xf32>, vector<1x16x16x4xf32>, vector<1x16x16x4xf32>, vector<1x16x16x4xf32> -> vector<1x16x16x16xf32>
    %67 = vector.shape_cast %66 : vector<1x16x16x16xf32> to vector<256x16xf32>
    %c1_106 = arith.constant 1 : index
    %c0_107 = arith.constant 0 : index
    %c0_108 = arith.constant 0 : index
    %68 = vector.load %arg3[%c1_106, %c0_107, %c0_108] : memref<4x16x4xf32, #tpu.memory_space<vmem>>, vector<1x16x4xf32>
    %69 = vector.shape_cast %68 : vector<1x16x4xf32> to vector<16x4xf32>
    %cst_109 = arith.constant dense<0.000000e+00> : vector<256x4xf32>
    %70 = tpu.matmul %67, %69, %cst_109 {dimension_numbers = #tpu.dot_dimension_numbers<[1], [0], [0], [1], [0, 0, 1, 1], [], []>} : vector<256x16xf32>, vector<16x4xf32>, vector<256x4xf32> -> vector<256x4xf32>
    %71 = vector.broadcast %38 : vector<1x4xf32> to vector<256x4xf32>
    %72 = arith.addf %70, %71 : vector<256x4xf32>
    %73 = vector.shape_cast %72 : vector<256x4xf32> to vector<1x16x16x4xf32>
    %c0_110 = arith.constant 0 : index
    %c0_111 = arith.constant 0 : index
    %c1_112 = arith.constant 1 : index
    %c0_113 = arith.constant 0 : index
    %c0_114 = arith.constant 0 : index
    %74 = vector.load %arg5[%c0_110, %c0_111, %c1_112, %c0_113, %c0_114] : memref<1x16x4x16x4xf32, #tpu.memory_space<vmem>>, vector<1x16x1x16x4xf32>
    %75 = vector.shape_cast %74 : vector<1x16x1x16x4xf32> to vector<1x16x16x4xf32>
    %76 = vector.shape_cast %73 : vector<1x16x16x4xf32> to vector<1x16x1x16x4xf32>
    tpu.vector_store %arg5[%c0_110, %c0_111, %c1_112, %c0_113, %c0_114], %76 {strides = array<i32>} : memref<1x16x4x16x4xf32, #tpu.memory_space<vmem>>, vector<1x16x1x16x4xf32>,
    %c0_115 = arith.constant 0 : index
    %c0_116 = arith.constant 0 : index
    %c1_117 = arith.constant 1 : index
    %c0_118 = arith.constant 0 : index
    %c0_119 = arith.constant 0 : index
    %77 = vector.load %arg6[%c0_115, %c0_116, %c1_117, %c0_118, %c0_119] : memref<3x1x18x16x4xf32, #tpu.memory_space<vmem>>, vector<1x1x16x16x4xf32>
    %78 = vector.shape_cast %77 : vector<1x1x16x16x4xf32> to vector<1x16x16x4xf32>
    %c1_120 = arith.constant 1 : index
    %c0_121 = arith.constant 0 : index
    %c1_122 = arith.constant 1 : index
    %c0_123 = arith.constant 0 : index
    %c0_124 = arith.constant 0 : index
    %79 = vector.load %arg6[%c1_120, %c0_121, %c1_122, %c0_123, %c0_124] : memref<3x1x18x16x4xf32, #tpu.memory_space<vmem>>, vector<1x1x16x16x4xf32>
    %80 = vector.shape_cast %79 : vector<1x1x16x16x4xf32> to vector<1x16x16x4xf32>
    %c0_125 = arith.constant 0 : index
    %c0_126 = arith.constant 0 : index
    %c2_127 = arith.constant 2 : index
    %c0_128 = arith.constant 0 : index
    %c0_129 = arith.constant 0 : index
    %81 = vector.load %arg6[%c0_125, %c0_126, %c2_127, %c0_128, %c0_129] : memref<3x1x18x16x4xf32, #tpu.memory_space<vmem>>, vector<1x1x16x16x4xf32>
    %82 = vector.shape_cast %81 : vector<1x1x16x16x4xf32> to vector<1x16x16x4xf32>
    %c1_130 = arith.constant 1 : index
    %c0_131 = arith.constant 0 : index
    %c2_132 = arith.constant 2 : index
    %c0_133 = arith.constant 0 : index
    %c0_134 = arith.constant 0 : index
    %83 = vector.load %arg6[%c1_130, %c0_131, %c2_132, %c0_133, %c0_134] : memref<3x1x18x16x4xf32, #tpu.memory_space<vmem>>, vector<1x1x16x16x4xf32>
    %84 = vector.shape_cast %83 : vector<1x1x16x16x4xf32> to vector<1x16x16x4xf32>
    %85 = tpu.concatenate %78, %80, %82, %84 in 3 : vector<1x16x16x4xf32>, vector<1x16x16x4xf32>, vector<1x16x16x4xf32>, vector<1x16x16x4xf32> -> vector<1x16x16x16xf32>
    %86 = vector.shape_cast %85 : vector<1x16x16x16xf32> to vector<256x16xf32>
    %c2_135 = arith.constant 2 : index
    %c0_136 = arith.constant 0 : index
    %c0_137 = arith.constant 0 : index
    %87 = vector.load %arg3[%c2_135, %c0_136, %c0_137] : memref<4x16x4xf32, #tpu.memory_space<vmem>>, vector<1x16x4xf32>
    %88 = vector.shape_cast %87 : vector<1x16x4xf32> to vector<16x4xf32>
    %cst_138 = arith.constant dense<0.000000e+00> : vector<256x4xf32>
    %89 = tpu.matmul %86, %88, %cst_138 {dimension_numbers = #tpu.dot_dimension_numbers<[1], [0], [0], [1], [0, 0, 1, 1], [], []>} : vector<256x16xf32>, vector<16x4xf32>, vector<256x4xf32> -> vector<256x4xf32>
    %90 = vector.broadcast %38 : vector<1x4xf32> to vector<256x4xf32>
    %91 = arith.addf %89, %90 : vector<256x4xf32>
    %92 = vector.shape_cast %91 : vector<256x4xf32> to vector<1x16x16x4xf32>
    %c0_139 = arith.constant 0 : index
    %c0_140 = arith.constant 0 : index
    %c2_141 = arith.constant 2 : index
    %c0_142 = arith.constant 0 : index
    %c0_143 = arith.constant 0 : index
    %93 = vector.load %arg5[%c0_139, %c0_140, %c2_141, %c0_142, %c0_143] : memref<1x16x4x16x4xf32, #tpu.memory_space<vmem>>, vector<1x16x1x16x4xf32>
    %94 = vector.shape_cast %93 : vector<1x16x1x16x4xf32> to vector<1x16x16x4xf32>
    %95 = vector.shape_cast %92 : vector<1x16x16x4xf32> to vector<1x16x1x16x4xf32>
    tpu.vector_store %arg5[%c0_139, %c0_140, %c2_141, %c0_142, %c0_143], %95 {strides = array<i32>} : memref<1x16x4x16x4xf32, #tpu.memory_space<vmem>>, vector<1x16x1x16x4xf32>,
    %c1_144 = arith.constant 1 : index
    %c0_145 = arith.constant 0 : index
    %c1_146 = arith.constant 1 : index
    %c0_147 = arith.constant 0 : index
    %c0_148 = arith.constant 0 : index
    %96 = vector.load %arg6[%c1_144, %c0_145, %c1_146, %c0_147, %c0_148] : memref<3x1x18x16x4xf32, #tpu.memory_space<vmem>>, vector<1x1x16x16x4xf32>
    %97 = vector.shape_cast %96 : vector<1x1x16x16x4xf32> to vector<1x16x16x4xf32>
    %c2_149 = arith.constant 2 : index
    %c0_150 = arith.constant 0 : index
    %c1_151 = arith.constant 1 : index
    %c0_152 = arith.constant 0 : index
    %c0_153 = arith.constant 0 : index
    %98 = vector.load %arg6[%c2_149, %c0_150, %c1_151, %c0_152, %c0_153] : memref<3x1x18x16x4xf32, #tpu.memory_space<vmem>>, vector<1x1x16x16x4xf32>
    %99 = vector.shape_cast %98 : vector<1x1x16x16x4xf32> to vector<1x16x16x4xf32>
    %c1_154 = arith.constant 1 : index
    %c0_155 = arith.constant 0 : index
    %c2_156 = arith.constant 2 : index
    %c0_157 = arith.constant 0 : index
    %c0_158 = arith.constant 0 : index
    %100 = vector.load %arg6[%c1_154, %c0_155, %c2_156, %c0_157, %c0_158] : memref<3x1x18x16x4xf32, #tpu.memory_space<vmem>>, vector<1x1x16x16x4xf32>
    %101 = vector.shape_cast %100 : vector<1x1x16x16x4xf32> to vector<1x16x16x4xf32>
    %c2_159 = arith.constant 2 : index
    %c0_160 = arith.constant 0 : index
    %c2_161 = arith.constant 2 : index
    %c0_162 = arith.constant 0 : index
    %c0_163 = arith.constant 0 : index
    %102 = vector.load %arg6[%c2_159, %c0_160, %c2_161, %c0_162, %c0_163] : memref<3x1x18x16x4xf32, #tpu.memory_space<vmem>>, vector<1x1x16x16x4xf32>
    %103 = vector.shape_cast %102 : vector<1x1x16x16x4xf32> to vector<1x16x16x4xf32>
    %104 = tpu.concatenate %97, %99, %101, %103 in 3 : vector<1x16x16x4xf32>, vector<1x16x16x4xf32>, vector<1x16x16x4xf32>, vector<1x16x16x4xf32> -> vector<1x16x16x16xf32>
    %105 = vector.shape_cast %104 : vector<1x16x16x16xf32> to vector<256x16xf32>
    %c3 = arith.constant 3 : index
    %c0_164 = arith.constant 0 : index
    %c0_165 = arith.constant 0 : index
    %106 = vector.load %arg3[%c3, %c0_164, %c0_165] : memref<4x16x4xf32, #tpu.memory_space<vmem>>, vector<1x16x4xf32>
    %107 = vector.shape_cast %106 : vector<1x16x4xf32> to vector<16x4xf32>
    %cst_166 = arith.constant dense<0.000000e+00> : vector<256x4xf32>
    %108 = tpu.matmul %105, %107, %cst_166 {dimension_numbers = #tpu.dot_dimension_numbers<[1], [0], [0], [1], [0, 0, 1, 1], [], []>} : vector<256x16xf32>, vector<16x4xf32>, vector<256x4xf32> -> vector<256x4xf32>
    %109 = vector.broadcast %38 : vector<1x4xf32> to vector<256x4xf32>
    %110 = arith.addf %108, %109 : vector<256x4xf32>
    %111 = vector.shape_cast %110 : vector<256x4xf32> to vector<1x16x16x4xf32>
    %c0_167 = arith.constant 0 : index
    %c0_168 = arith.constant 0 : index
    %c3_169 = arith.constant 3 : index
    %c0_170 = arith.constant 0 : index
    %c0_171 = arith.constant 0 : index
    %112 = vector.load %arg5[%c0_167, %c0_168, %c3_169, %c0_170, %c0_171] : memref<1x16x4x16x4xf32, #tpu.memory_space<vmem>>, vector<1x16x1x16x4xf32>
    %113 = vector.shape_cast %112 : vector<1x16x1x16x4xf32> to vector<1x16x16x4xf32>
    %114 = vector.shape_cast %111 : vector<1x16x16x4xf32> to vector<1x16x1x16x4xf32>
    tpu.vector_store %arg5[%c0_167, %c0_168, %c3_169, %c0_170, %c0_171], %114 {strides = array<i32>} : memref<1x16x4x16x4xf32, #tpu.memory_space<vmem>>, vector<1x16x1x16x4xf32>,
    return
  }
  func.func @transform_0(%arg0: i32, %arg1: i32) -> (i32, i32, i32, i32) {
    %c0_i32 = arith.constant 0 : i32
    %c0_i32_0 = arith.constant 0 : i32
    %c0_i32_1 = arith.constant 0 : i32
    %c0_i32_2 = arith.constant 0 : i32
    return %arg1, %c0_i32, %c0_i32_0, %c0_i32_1 : i32, i32, i32, i32
  }
  func.func @transform_1(%arg0: i32, %arg1: i32) -> (i32, i32, i32) {
    %c0_i32 = arith.constant 0 : i32
    %c0_i32_0 = arith.constant 0 : i32
    %c0_i32_1 = arith.constant 0 : i32
    return %c0_i32, %c0_i32_0, %arg0 : i32, i32, i32
  }
  func.func @transform_2(%arg0: i32, %arg1: i32) -> (i32, i32) {
    %c0_i32 = arith.constant 0 : i32
    %c0_i32_0 = arith.constant 0 : i32
    return %c0_i32, %arg0 : i32, i32
  }
  func.func @transform_3(%arg0: i32, %arg1: i32) -> (i32, i32, i32, i32, i32) {
    %c0_i32 = arith.constant 0 : i32
    %c0_i32_0 = arith.constant 0 : i32
    %c0_i32_1 = arith.constant 0 : i32
    %c0_i32_2 = arith.constant 0 : i32
    return %arg1, %c0_i32, %c0_i32_0, %c0_i32_1, %arg0 : i32, i32, i32, i32, i32
  }
}

</mosaic_0001>

<llo_original>
// kernel: tpu_custom_call.1
$region0: #{tpu_custom_call.1}
  #allocation0 [shape = 'u32[]', space=smem, size = 0x4, offset = 0x4, fixed_abs, tag = 'smem constant byte address 0x4 - core index']
  #allocation1 [shape = 'u32[144,128]{1,0:T(1,128)}', space=vmem, size = 0x12000, scoped, tag = 'internal scratch']
  #allocation2 [shape = 'f32[3,1,18,16,4]{4,3,2,1,0:T(8,128)}', space=vmem, size = 0x6c000, scoped, tag = 'scratch operand']
  %s0 = inlined_call_operand.vmem [shape: f32[2,16,16,4], index: 0, kind: input, shape index: {}]
  %s1 = inlined_call_operand.vmem [shape: f32[4,16,4], index: 1, kind: input, shape index: {}]
  %s2 = inlined_call_operand.vmem [shape: f32[1,4], index: 2, kind: input, shape index: {}]
  %s3 = inlined_call_operand.vmem [shape: f32[2,16,4,16,4], index: 3, kind: output, shape index: {}]
  %s4 = sld [smem:[#allocation0]]
  $region45: #{tpu_custom_call.1} parent=0
    _
  %s6 = ssub.s32 1, %s4
  %s7 = scalar_select 0, %s6, %s4
  loop: start=0, step=1, limit=4
  $region2: #{tpu_custom_call.1} parent=0 // loop_pre_header
    _
  $region3: #{tpu_custom_call.1} parent=0 // loop_header
    %s9 = sphi 0, %s13
    %p10 = scmp.ge.s32.totalorder %s9, 4
    %s16 = sphi 0, %s28
    %s17 = sphi 0, %s24
    %s18 = sphi 0, %s16
    %s19 = sphi 0, %s17
    %s20 = sphi 0, %s18
    %s21 = sphi 0, %s19
    %s31 = sphi 0, %s33
    %s34 = sphi 0, %s31
    %s35 = sphi 0, %s34
    %s51 = sphi 0, %s35
    %s57 = sphi 0, %s59
    %s60 = sphi 0, %s57
    %s61 = sphi 0, %s60
    %s77 = sphi 0, %s61
    %s83 = sphi 0, %s85
    %s86 = sphi 0, %s83
    %s87 = sphi 0, %s86
    %s103 = sphi 0, %s87
    %s111 = sphi 0, %s113
    %s114 = sphi 0, %s111
    %s115 = sphi 0, %s114
    %s131 = sphi 0, %s115
  $region4: #{tpu_custom_call.1} parent=0 // loop_header_branch
    %12 = sbr.rel (%p10) target = $region8
  $region5: #{tpu_custom_call.1} parent=0 // loop_body
    %s14 = ssub.s32 %s9, 1
    %s15 = ssub.s32 %s9, 2
    %s22 = sadd.s32 1, %s17
    %p23 = scmp.ge.s32.totalorder %s22, 2
    %s24 = scalar_select %p23, 0, %s22
    %s25 = sadd.s32 1, %s16
    %s26 = scalar_select %p23, %s25, %s16
    %p27 = scmp.ge.s32.totalorder %s26, 1
    %s28 = scalar_select %p27, 0, %s26
    %s29 = ssub.s32 %s17, %s24
    %p30 = scmp.eq.s32.totalorder %s29, 0
    %s32 = sadd.s32 %s31, 1
    %s33 = scalar_select %p30, %s31, %s32
    %p36 = pneg %p30
    %p37 = scmp.eq.s32.totalorder %s9, 1
    %p38 = por %p36, %p37
    %p39 = scmp.ne.s32.totalorder %s31, %s34
    %p40 = scmp.eq.s32.totalorder %s9, 0
    %p41 = por %p39, %p40
    %p42 = scmp.ne.s32.totalorder %s31, %s34
    %p43 = scmp.eq.s32.totalorder %s14, 1
    %p44 = por %p42, %p43
    %p45 = scmp.ne.s32.totalorder %s34, %s35
    %p46 = scmp.eq.s32.totalorder %s14, 0
    %p47 = por %p45, %p46
    %p48 = scmp.ne.s32.totalorder %s34, %s35
    %p49 = scmp.eq.s32.totalorder %s15, 1
    %p50 = por %p48, %p49
    %p52 = scmp.ne.s32.totalorder %s35, %s51
    %p53 = scmp.eq.s32.totalorder %s15, 0
    %p54 = por %p52, %p53
    %s55 = ssub.s32 %s16, %s28
    %p56 = scmp.eq.s32.totalorder %s55, 0
    %s58 = sadd.s32 %s57, 1
    %s59 = scalar_select %p56, %s57, %s58
    %p62 = pneg %p56
    %p63 = scmp.eq.s32.totalorder %s9, 1
    %p64 = por %p62, %p63
    %p65 = scmp.ne.s32.totalorder %s57, %s60
    %p66 = scmp.eq.s32.totalorder %s9, 0
    %p67 = por %p65, %p66
    %p68 = scmp.ne.s32.totalorder %s57, %s60
    %p69 = scmp.eq.s32.totalorder %s14, 1
    %p70 = por %p68, %p69
    %p71 = scmp.ne.s32.totalorder %s60, %s61
    %p72 = scmp.eq.s32.totalorder %s14, 0
    %p73 = por %p71, %p72
    %p74 = scmp.ne.s32.totalorder %s60, %s61
    %p75 = scmp.eq.s32.totalorder %s15, 1
    %p76 = por %p74, %p75
    %p78 = scmp.ne.s32.totalorder %s61, %s77
    %p79 = scmp.eq.s32.totalorder %s15, 0
    %p80 = por %p78, %p79
    %s81 = ssub.s32 %s16, %s28
    %p82 = scmp.eq.s32.totalorder %s81, 0
    %s84 = sadd.s32 %s83, 1
    %s85 = scalar_select %p82, %s83, %s84
    %p88 = pneg %p82
    %p89 = scmp.eq.s32.totalorder %s9, 1
    %p90 = por %p88, %p89
    %p91 = scmp.ne.s32.totalorder %s83, %s86
    %p92 = scmp.eq.s32.totalorder %s9, 0
    %p93 = por %p91, %p92
    %p94 = scmp.ne.s32.totalorder %s83, %s86
    %p95 = scmp.eq.s32.totalorder %s14, 1
    %p96 = por %p94, %p95
    %p97 = scmp.ne.s32.totalorder %s86, %s87
    %p98 = scmp.eq.s32.totalorder %s14, 0
    %p99 = por %p97, %p98
    %p100 = scmp.ne.s32.totalorder %s86, %s87
    %p101 = scmp.eq.s32.totalorder %s15, 1
    %p102 = por %p100, %p101
    %p104 = scmp.ne.s32.totalorder %s87, %s103
    %p105 = scmp.eq.s32.totalorder %s15, 0
    %p106 = por %p104, %p105
    %s107 = ssub.s32 %s17, %s24
    %s108 = ssub.s32 %s16, %s28
    %s109 = sor.u32 %s107, %s108
    %p110 = scmp.eq.s32.totalorder %s109, 0
    %s112 = sadd.s32 %s111, 1
    %s113 = scalar_select %p110, %s111, %s112
    %p116 = pneg %p110
    %p117 = scmp.eq.s32.totalorder %s9, 1
    %p118 = por %p116, %p117
    %p119 = scmp.ne.s32.totalorder %s111, %s114
    %p120 = scmp.eq.s32.totalorder %s9, 0
    %p121 = por %p119, %p120
    %p122 = scmp.ne.s32.totalorder %s111, %s114
    %p123 = scmp.eq.s32.totalorder %s14, 1
    %p124 = por %p122, %p123
    %p125 = scmp.ne.s32.totalorder %s114, %s115
    %p126 = scmp.eq.s32.totalorder %s14, 0
    %p127 = por %p125, %p126
    %p128 = scmp.ne.s32.totalorder %s114, %s115
    %p129 = scmp.eq.s32.totalorder %s15, 1
    %p130 = por %p128, %p129
    %p132 = scmp.ne.s32.totalorder %s115, %s131
    %p133 = scmp.eq.s32.totalorder %s15, 0
    %p134 = por %p132, %p133
    %p135 = scmp.le.s32.totalorder 1, %s9
    %p136 = scmp.lt.s32.totalorder %s9, 3
    %p137 = pnand %p135, %p136
    %p138 = pneg %p137
    // Predicated region
    $region9: #{tpu_custom_call.1} parent=5 // pred_check
      _
    $region10: #{tpu_custom_call.1} parent=5 // pred_check_branch
      %140 = sbr.rel (%p137) target = $region12
    $region11: #{tpu_custom_call.1} parent=5 // pred_region
      %s141 = ssub.s32 %s9, 1
      // Predicated region
      $region13: #{tpu_custom_call.1} parent=11 // pred_check
        %p142 = pneg %p73
      $region14: #{tpu_custom_call.1} parent=11 // pred_check_branch
        %144 = sbr.rel (%p142) target = $region16
      $region15: #{tpu_custom_call.1} parent=11 // pred_region
        %p145 = scmp.lt.s32.totalorder %s18, 0
        %s146 = scalar_select %p145, %s18, 0
        %s147 = smul.addr %s146, 8
        %s148 = scalar_lea.vmem %s1, %s147
      $region16: #{tpu_custom_call.1} parent=11 // pred_fallthru
        _
      // Predicated region
      $region17: #{tpu_custom_call.1} parent=11 // pred_check
        %p149 = pneg %p99
      $region18: #{tpu_custom_call.1} parent=11 // pred_check_branch
        %151 = sbr.rel (%p149) target = $region20
      $region19: #{tpu_custom_call.1} parent=11 // pred_region
        %p152 = scmp.lt.s32.totalorder %s18, 0
        %s153 = scalar_select %p152, %s18, 0
        %s154 = scalar_lea.vmem %s2, %s153
      $region20: #{tpu_custom_call.1} parent=11 // pred_fallthru
        _
    $region12: #{tpu_custom_call.1} parent=5 // pred_fallthru
      _
    %p155 = scmp.lt.s32.totalorder %s9, 2
    // Predicated region
    $region21: #{tpu_custom_call.1} parent=5 // pred_check
      %p156 = pneg %p155
    $region22: #{tpu_custom_call.1} parent=5 // pred_check_branch
      %158 = sbr.rel (%p156) target = $region24
    $region23: #{tpu_custom_call.1} parent=5 // pred_region
      // Predicated region
      $region25: #{tpu_custom_call.1} parent=23 // pred_check
        %p159 = pneg %p41
      $region26: #{tpu_custom_call.1} parent=23 // pred_check_branch
        %161 = sbr.rel (%p159) target = $region28
      $region27: #{tpu_custom_call.1} parent=23 // pred_region
        %p162 = scmp.lt.s32.totalorder %s17, 1
        %s163 = scalar_select %p162, %s17, 1
        %s164 = smul.addr %s163, 32
        %s165 = smul.addr %s164, 8
        %s166 = scalar_lea.vmem %s0, %s165
      $region28: #{tpu_custom_call.1} parent=23 // pred_fallthru
        _
    $region24: #{tpu_custom_call.1} parent=5 // pred_fallthru
      _
    %p167 = scmp.le.s32.totalorder 1, %s9
    %p168 = scmp.lt.s32.totalorder %s9, 3
    %p169 = pnand %p167, %p168
    %p170 = pneg %p169
    // Predicated region
    $region29: #{tpu_custom_call.1} parent=5 // pred_check
      _
    $region30: #{tpu_custom_call.1} parent=5 // pred_check_branch
      %172 = sbr.rel (%p169) target = $region32
    $region31: #{tpu_custom_call.1} parent=5 // pred_region
      %s173 = ssub.s32 %s9, 1
      %p174 = scmp.lt.s32.totalorder %s19, 1
      %s175 = scalar_select %p174, %s19, 1
      %s176 = smul.addr %s175, 32
      %s177 = smul.addr %s176, 8
      %s178 = scalar_lea.vmem %s0, %s177
      %p179 = pneg %p47
      %p180 = pneg %p44
      %p181 = scmp.lt.s32.totalorder %s18, 0
      %s182 = scalar_select %p181, %s18, 0
      %s183 = smul.addr %s182, 8
      %s184 = scalar_lea.vmem %s1, %s183
      %p185 = pneg %p73
      %p186 = pneg %p70
      %p187 = scmp.lt.s32.totalorder %s18, 0
      %s188 = scalar_select %p187, %s18, 0
      %s189 = scalar_lea.vmem %s2, %s188
      %p190 = pneg %p99
      %p191 = pneg %p96
      %p192 = pneg %p127
      %p193 = pneg %p124
      %p194 = scmp.lt.s32.totalorder %s19, 1
      %s195 = scalar_select %p194, %s19, 1
      %p196 = scmp.lt.s32.totalorder %s18, 0
      %s197 = scalar_select %p196, %s18, 0
      %s198 = smul.addr %s195, 128
      %s199 = sadd.s32 %s197, %s198
      %s200 = smul.addr %s199, 8
      %s201 = scalar_lea.vmem %s3, %s200
      %p202 = scmp.lt.s32.totalorder %s19, 1
      %s203 = scalar_select %p202, %s19, 1
      %s204 = smul.addr %s203, 32
      %s205 = smul.addr %s204, 8
      %s206 = scalar_lea.vmem %s0, %s205
      %p207 = scmp.lt.s32.totalorder %s18, 0
      %s208 = scalar_select %p207, %s18, 0
      %s209 = smul.addr %s208, 8
      %s210 = scalar_lea.vmem %s1, %s209
      %p211 = scmp.lt.s32.totalorder %s18, 0
      %s212 = scalar_select %p211, %s18, 0
      %s213 = scalar_lea.vmem %s2, %s212
      %p214 = scmp.lt.s32.totalorder %s19, 1
      %s215 = scalar_select %p214, %s19, 1
      %p216 = scmp.lt.s32.totalorder %s18, 0
      %s217 = scalar_select %p216, %s18, 0
      %s218 = smul.addr %s215, 128
      %s219 = sadd.s32 %s217, %s218
      %s220 = smul.addr %s219, 8
      %s221 = scalar_lea.vmem %s3, %s220
      %v222 = vld [vmem:[%s206] sm:$0xff]
      %v223 = vld [vmem:[%s206 + $0x8] sm:$0xff]
      %v224 = vld [vmem:[%s206 + $0x10] sm:$0xff]
      %v225 = vld [vmem:[%s206 + $0x18] sm:$0xff]
      %v226 = vld [vmem:[%s206 + $0x20] sm:$0xff]
      %v227 = vld [vmem:[%s206 + $0x28] sm:$0xff]
      %v228 = vld [vmem:[%s206 + $0x30] sm:$0xff]
      %v229 = vld [vmem:[%s206 + $0x38] sm:$0xff]
      %v230 = vld [vmem:[%s206 + $0x40] sm:$0xff]
      %v231 = vld [vmem:[%s206 + $0x48] sm:$0xff]
      %v232 = vld [vmem:[%s206 + $0x50] sm:$0xff]
      %v233 = vld [vmem:[%s206 + $0x58] sm:$0xff]
      %v234 = vld [vmem:[%s206 + $0x60] sm:$0xff]
      %v235 = vld [vmem:[%s206 + $0x68] sm:$0xff]
      %v236 = vld [vmem:[%s206 + $0x70] sm:$0xff]
      %v237 = vld [vmem:[%s206 + $0x78] sm:$0xff]
      %v238 = vld [vmem:[%s206 + $0x80] sm:$0xff]
      %v239 = vld [vmem:[%s206 + $0x88] sm:$0xff]
      %v240 = vld [vmem:[%s206 + $0x90] sm:$0xff]
      %v241 = vld [vmem:[%s206 + $0x98] sm:$0xff]
      %v242 = vld [vmem:[%s206 + $0xa0] sm:$0xff]
      %v243 = vld [vmem:[%s206 + $0xa8] sm:$0xff]
      %v244 = vld [vmem:[%s206 + $0xb0] sm:$0xff]
      %v245 = vld [vmem:[%s206 + $0xb8] sm:$0xff]
      %v246 = vld [vmem:[%s206 + $0xc0] sm:$0xff]
      %v247 = vld [vmem:[%s206 + $0xc8] sm:$0xff]
      %v248 = vld [vmem:[%s206 + $0xd0] sm:$0xff]
      %v249 = vld [vmem:[%s206 + $0xd8] sm:$0xff]
      %v250 = vld [vmem:[%s206 + $0xe0] sm:$0xff]
      %v251 = vld [vmem:[%s206 + $0xe8] sm:$0xff]
      %v252 = vld [vmem:[%s206 + $0xf0] sm:$0xff]
      %v253 = vld [vmem:[%s206 + $0xf8] sm:$0xff]
      %vm254 = vcmask 31744
      %255 = vst.msk [vmem:[#allocation2] sm:$0xff] %vm254, 0.0
      %256 = vst.msk [vmem:[#allocation2 + $0x8] sm:$0xff] %vm254, 0.0
      %s257 = scalar_lea.vmem [#allocation2], 272
      %258 = vst.msk [vmem:[%s257] sm:$0xff] %vm254, 0.0
      %259 = vst.msk [vmem:[%s257 + $0x8] sm:$0xff] %vm254, 0.0
      %s260 = scalar_lea.vmem [#allocation2], 288
      %261 = vst.msk [vmem:[%s260] sm:$0xff] %vm254, 0.0
      %262 = vst.msk [vmem:[%s260 + $0x8] sm:$0xff] %vm254, 0.0
      %s263 = scalar_lea.vmem [#allocation2], 560
      %264 = vst.msk [vmem:[%s263] sm:$0xff] %vm254, 0.0
      %265 = vst.msk [vmem:[%s263 + $0x8] sm:$0xff] %vm254, 0.0
      %s266 = scalar_lea.vmem [#allocation2], 576
      %267 = vst.msk [vmem:[%s266] sm:$0xff] %vm254, 0.0
      %268 = vst.msk [vmem:[%s266 + $0x8] sm:$0xff] %vm254, 0.0
      %s269 = scalar_lea.vmem [#allocation2], 848
      %270 = vst.msk [vmem:[%s269] sm:$0xff] %vm254, 0.0
      %271 = vst.msk [vmem:[%s269 + $0x8] sm:$0xff] %vm254, 0.0
      %s272 = scalar_lea.vmem [#allocation2], 304
      %273 = vst.msk [vmem:[%s272] sm:$0xff] %vm254, %v222
      %274 = vst.msk [vmem:[%s272 + $0x8] sm:$0xff] %vm254, %v223
      %275 = vst.msk [vmem:[%s272 + $0x10] sm:$0xff] %vm254, %v224
      %276 = vst.msk [vmem:[%s272 + $0x18] sm:$0xff] %vm254, %v225
      %277 = vst.msk [vmem:[%s272 + $0x20] sm:$0xff] %vm254, %v226
      %278 = vst.msk [vmem:[%s272 + $0x28] sm:$0xff] %vm254, %v227
      %279 = vst.msk [vmem:[%s272 + $0x30] sm:$0xff] %vm254, %v228
      %280 = vst.msk [vmem:[%s272 + $0x38] sm:$0xff] %vm254, %v229
      %281 = vst.msk [vmem:[%s272 + $0x40] sm:$0xff] %vm254, %v230
      %282 = vst.msk [vmem:[%s272 + $0x48] sm:$0xff] %vm254, %v231
      %283 = vst.msk [vmem:[%s272 + $0x50] sm:$0xff] %vm254, %v232
      %284 = vst.msk [vmem:[%s272 + $0x58] sm:$0xff] %vm254, %v233
      %285 = vst.msk [vmem:[%s272 + $0x60] sm:$0xff] %vm254, %v234
      %286 = vst.msk [vmem:[%s272 + $0x68] sm:$0xff] %vm254, %v235
      %287 = vst.msk [vmem:[%s272 + $0x70] sm:$0xff] %vm254, %v236
      %288 = vst.msk [vmem:[%s272 + $0x78] sm:$0xff] %vm254, %v237
      %289 = vst.msk [vmem:[%s272 + $0x80] sm:$0xff] %vm254, %v238
      %290 = vst.msk [vmem:[%s272 + $0x88] sm:$0xff] %vm254, %v239
      %291 = vst.msk [vmem:[%s272 + $0x90] sm:$0xff] %vm254, %v240
      %292 = vst.msk [vmem:[%s272 + $0x98] sm:$0xff] %vm254, %v241
      %293 = vst.msk [vmem:[%s272 + $0xa0] sm:$0xff] %vm254, %v242
      %294 = vst.msk [vmem:[%s272 + $0xa8] sm:$0xff] %vm254, %v243
      %295 = vst.msk [vmem:[%s272 + $0xb0] sm:$0xff] %vm254, %v244
      %296 = vst.msk [vmem:[%s272 + $0xb8] sm:$0xff] %vm254, %v245
      %297 = vst.msk [vmem:[%s272 + $0xc0] sm:$0xff] %vm254, %v246
      %298 = vst.msk [vmem:[%s272 + $0xc8] sm:$0xff] %vm254, %v247
      %299 = vst.msk [vmem:[%s272 + $0xd0] sm:$0xff] %vm254, %v248
      %300 = vst.msk [vmem:[%s272 + $0xd8] sm:$0xff] %vm254, %v249
      %301 = vst.msk [vmem:[%s272 + $0xe0] sm:$0xff] %vm254, %v250
      %302 = vst.msk [vmem:[%s272 + $0xe8] sm:$0xff] %vm254, %v251
      %303 = vst.msk [vmem:[%s272 + $0xf0] sm:$0xff] %vm254, %v252
      %304 = vst.msk [vmem:[%s272 + $0xf8] sm:$0xff] %vm254, %v253
      %s305 = scalar_lea.vmem [#allocation2], 16
      %306 = vst.msk [vmem:[%s305 + $0x1] sm:$0xff] %vm254, %v222
      %vm307 = vcmask 30720
      %308 = vst.msk [vmem:[%s305 + $0x9] sm:$0x7f] %vm307, %v223
      %309 = vst.msk [vmem:[%s305 + $0x11] sm:$0xff] %vm254, %v224
      %310 = vst.msk [vmem:[%s305 + $0x19] sm:$0x7f] %vm307, %v225
      %311 = vst.msk [vmem:[%s305 + $0x21] sm:$0xff] %vm254, %v226
      %312 = vst.msk [vmem:[%s305 + $0x29] sm:$0x7f] %vm307, %v227
      %313 = vst.msk [vmem:[%s305 + $0x31] sm:$0xff] %vm254, %v228
      %314 = vst.msk [vmem:[%s305 + $0x39] sm:$0x7f] %vm307, %v229
      %315 = vst.msk [vmem:[%s305 + $0x41] sm:$0xff] %vm254, %v230
      %316 = vst.msk [vmem:[%s305 + $0x49] sm:$0x7f] %vm307, %v231
      %317 = vst.msk [vmem:[%s305 + $0x51] sm:$0xff] %vm254, %v232
      %318 = vst.msk [vmem:[%s305 + $0x59] sm:$0x7f] %vm307, %v233
      %319 = vst.msk [vmem:[%s305 + $0x61] sm:$0xff] %vm254, %v234
      %320 = vst.msk [vmem:[%s305 + $0x69] sm:$0x7f] %vm307, %v235
      %321 = vst.msk [vmem:[%s305 + $0x71] sm:$0xff] %vm254, %v236
      %322 = vst.msk [vmem:[%s305 + $0x79] sm:$0x7f] %vm307, %v237
      %323 = vst.msk [vmem:[%s305 + $0x81] sm:$0xff] %vm254, %v238
      %324 = vst.msk [vmem:[%s305 + $0x89] sm:$0x7f] %vm307, %v239
      %325 = vst.msk [vmem:[%s305 + $0x91] sm:$0xff] %vm254, %v240
      %326 = vst.msk [vmem:[%s305 + $0x99] sm:$0x7f] %vm307, %v241
      %327 = vst.msk [vmem:[%s305 + $0xa1] sm:$0xff] %vm254, %v242
      %328 = vst.msk [vmem:[%s305 + $0xa9] sm:$0x7f] %vm307, %v243
      %329 = vst.msk [vmem:[%s305 + $0xb1] sm:$0xff] %vm254, %v244
      %330 = vst.msk [vmem:[%s305 + $0xb9] sm:$0x7f] %vm307, %v245
      %331 = vst.msk [vmem:[%s305 + $0xc1] sm:$0xff] %vm254, %v246
      %332 = vst.msk [vmem:[%s305 + $0xc9] sm:$0x7f] %vm307, %v247
      %333 = vst.msk [vmem:[%s305 + $0xd1] sm:$0xff] %vm254, %v248
      %334 = vst.msk [vmem:[%s305 + $0xd9] sm:$0x7f] %vm307, %v249
      %335 = vst.msk [vmem:[%s305 + $0xe1] sm:$0xff] %vm254, %v250
      %336 = vst.msk [vmem:[%s305 + $0xe9] sm:$0x7f] %vm307, %v251
      %337 = vst.msk [vmem:[%s305 + $0xf1] sm:$0xff] %vm254, %v252
      %338 = vst.msk [vmem:[%s305 + $0xf9] sm:$0x7f] %vm307, %v253
      %vm339 = vcmask 24576
      %340 = vst.msk [vmem:[%s305] sm:$0x1] %vm339, 0.0
      %341 = vst.msk [vmem:[%s305 + $0x10] sm:$0x1] %vm339, 0.0
      %342 = vst.msk [vmem:[%s305 + $0x20] sm:$0x1] %vm339, 0.0
      %343 = vst.msk [vmem:[%s305 + $0x30] sm:$0x1] %vm339, 0.0
      %344 = vst.msk [vmem:[%s305 + $0x40] sm:$0x1] %vm339, 0.0
      %345 = vst.msk [vmem:[%s305 + $0x50] sm:$0x1] %vm339, 0.0
      %346 = vst.msk [vmem:[%s305 + $0x60] sm:$0x1] %vm339, 0.0
      %347 = vst.msk [vmem:[%s305 + $0x70] sm:$0x1] %vm339, 0.0
      %348 = vst.msk [vmem:[%s305 + $0x80] sm:$0x1] %vm339, 0.0
      %349 = vst.msk [vmem:[%s305 + $0x90] sm:$0x1] %vm339, 0.0
      %350 = vst.msk [vmem:[%s305 + $0xa0] sm:$0x1] %vm339, 0.0
      %351 = vst.msk [vmem:[%s305 + $0xb0] sm:$0x1] %vm339, 0.0
      %352 = vst.msk [vmem:[%s305 + $0xc0] sm:$0x1] %vm339, 0.0
      %353 = vst.msk [vmem:[%s305 + $0xd0] sm:$0x1] %vm339, 0.0
      %354 = vst.msk [vmem:[%s305 + $0xe0] sm:$0x1] %vm339, 0.0
      %355 = vst.msk [vmem:[%s305 + $0xf0] sm:$0x1] %vm339, 0.0
      %s356 = scalar_lea.vmem [#allocation2], 592
      %vm357 = vcmask 31745
      %358 = vst.msk [vmem:[%s356 - $0x1] sm:$0xfe] %vm357, %v222
      %359 = vst.msk [vmem:[%s356 + $0x7] sm:$0xff] %vm254, %v223
      %360 = vst.msk [vmem:[%s356 + $0xf] sm:$0xfe] %vm357, %v224
      %361 = vst.msk [vmem:[%s356 + $0x17] sm:$0xff] %vm254, %v225
      %362 = vst.msk [vmem:[%s356 + $0x1f] sm:$0xfe] %vm357, %v226
      %363 = vst.msk [vmem:[%s356 + $0x27] sm:$0xff] %vm254, %v227
      %364 = vst.msk [vmem:[%s356 + $0x2f] sm:$0xfe] %vm357, %v228
      %365 = vst.msk [vmem:[%s356 + $0x37] sm:$0xff] %vm254, %v229
      %366 = vst.msk [vmem:[%s356 + $0x3f] sm:$0xfe] %vm357, %v230
      %367 = vst.msk [vmem:[%s356 + $0x47] sm:$0xff] %vm254, %v231
      %368 = vst.msk [vmem:[%s356 + $0x4f] sm:$0xfe] %vm357, %v232
      %369 = vst.msk [vmem:[%s356 + $0x57] sm:$0xff] %vm254, %v233
      %370 = vst.msk [vmem:[%s356 + $0x5f] sm:$0xfe] %vm357, %v234
      %371 = vst.msk [vmem:[%s356 + $0x67] sm:$0xff] %vm254, %v235
      %372 = vst.msk [vmem:[%s356 + $0x6f] sm:$0xfe] %vm357, %v236
      %373 = vst.msk [vmem:[%s356 + $0x77] sm:$0xff] %vm254, %v237
      %374 = vst.msk [vmem:[%s356 + $0x7f] sm:$0xfe] %vm357, %v238
      %375 = vst.msk [vmem:[%s356 + $0x87] sm:$0xff] %vm254, %v239
      %376 = vst.msk [vmem:[%s356 + $0x8f] sm:$0xfe] %vm357, %v240
      %377 = vst.msk [vmem:[%s356 + $0x97] sm:$0xff] %vm254, %v241
      %378 = vst.msk [vmem:[%s356 + $0x9f] sm:$0xfe] %vm357, %v242
      %379 = vst.msk [vmem:[%s356 + $0xa7] sm:$0xff] %vm254, %v243
      %380 = vst.msk [vmem:[%s356 + $0xaf] sm:$0xfe] %vm357, %v244
      %381 = vst.msk [vmem:[%s356 + $0xb7] sm:$0xff] %vm254, %v245
      %382 = vst.msk [vmem:[%s356 + $0xbf] sm:$0xfe] %vm357, %v246
      %383 = vst.msk [vmem:[%s356 + $0xc7] sm:$0xff] %vm254, %v247
      %384 = vst.msk [vmem:[%s356 + $0xcf] sm:$0xfe] %vm357, %v248
      %385 = vst.msk [vmem:[%s356 + $0xd7] sm:$0xff] %vm254, %v249
      %386 = vst.msk [vmem:[%s356 + $0xdf] sm:$0xfe] %vm357, %v250
      %387 = vst.msk [vmem:[%s356 + $0xe7] sm:$0xff] %vm254, %v251
      %388 = vst.msk [vmem:[%s356 + $0xef] sm:$0xfe] %vm357, %v252
      %389 = vst.msk [vmem:[%s356 + $0xf7] sm:$0xff] %vm254, %v253
      %390 = vst.msk [vmem:[%s356 + $0xf] sm:$0x1] %vm339, 0.0
      %391 = vst.msk [vmem:[%s356 + $0x1f] sm:$0x1] %vm339, 0.0
      %392 = vst.msk [vmem:[%s356 + $0x2f] sm:$0x1] %vm339, 0.0
      %393 = vst.msk [vmem:[%s356 + $0x3f] sm:$0x1] %vm339, 0.0
      %394 = vst.msk [vmem:[%s356 + $0x4f] sm:$0x1] %vm339, 0.0
      %395 = vst.msk [vmem:[%s356 + $0x5f] sm:$0x1] %vm339, 0.0
      %396 = vst.msk [vmem:[%s356 + $0x6f] sm:$0x1] %vm339, 0.0
      %397 = vst.msk [vmem:[%s356 + $0x7f] sm:$0x1] %vm339, 0.0
      %398 = vst.msk [vmem:[%s356 + $0x8f] sm:$0x1] %vm339, 0.0
      %399 = vst.msk [vmem:[%s356 + $0x9f] sm:$0x1] %vm339, 0.0
      %400 = vst.msk [vmem:[%s356 + $0xaf] sm:$0x1] %vm339, 0.0
      %401 = vst.msk [vmem:[%s356 + $0xbf] sm:$0x1] %vm339, 0.0
      %402 = vst.msk [vmem:[%s356 + $0xcf] sm:$0x1] %vm339, 0.0
      %403 = vst.msk [vmem:[%s356 + $0xdf] sm:$0x1] %vm339, 0.0
      %404 = vst.msk [vmem:[%s356 + $0xef] sm:$0x1] %vm339, 0.0
      %405 = vst.msk [vmem:[%s356 + $0xff] sm:$0x1] %vm339, 0.0
      %v406 = vld [vmem:[%s213] sm:$0x1]
      %v407 = vld [vmem:[#allocation2] sm:$0xff]
      %v408 = vld [vmem:[#allocation2 + $0x8] sm:$0xff]
      %v409 = vld [vmem:[#allocation2 + $0x10] sm:$0xff]
      %v410 = vld [vmem:[#allocation2 + $0x18] sm:$0xff]
      %v411 = vld [vmem:[#allocation2 + $0x20] sm:$0xff]
      %v412 = vld [vmem:[#allocation2 + $0x28] sm:$0xff]
      %v413 = vld [vmem:[#allocation2 + $0x30] sm:$0xff]
      %v414 = vld [vmem:[#allocation2 + $0x38] sm:$0xff]
      %v415 = vld [vmem:[#allocation2 + $0x40] sm:$0xff]
      %v416 = vld [vmem:[#allocation2 + $0x48] sm:$0xff]
      %v417 = vld [vmem:[#allocation2 + $0x50] sm:$0xff]
      %v418 = vld [vmem:[#allocation2 + $0x58] sm:$0xff]
      %v419 = vld [vmem:[#allocation2 + $0x60] sm:$0xff]
      %v420 = vld [vmem:[#allocation2 + $0x68] sm:$0xff]
      %v421 = vld [vmem:[#allocation2 + $0x70] sm:$0xff]
      %v422 = vld [vmem:[#allocation2 + $0x78] sm:$0xff]
      %v423 = vld [vmem:[#allocation2 + $0x80] sm:$0xff]
      %v424 = vld [vmem:[#allocation2 + $0x88] sm:$0xff]
      %v425 = vld [vmem:[#allocation2 + $0x90] sm:$0xff]
      %v426 = vld [vmem:[#allocation2 + $0x98] sm:$0xff]
      %v427 = vld [vmem:[#allocation2 + $0xa0] sm:$0xff]
      %v428 = vld [vmem:[#allocation2 + $0xa8] sm:$0xff]
      %v429 = vld [vmem:[#allocation2 + $0xb0] sm:$0xff]
      %v430 = vld [vmem:[#allocation2 + $0xb8] sm:$0xff]
      %v431 = vld [vmem:[#allocation2 + $0xc0] sm:$0xff]
      %v432 = vld [vmem:[#allocation2 + $0xc8] sm:$0xff]
      %v433 = vld [vmem:[#allocation2 + $0xd0] sm:$0xff]
      %v434 = vld [vmem:[#allocation2 + $0xd8] sm:$0xff]
      %v435 = vld [vmem:[#allocation2 + $0xe0] sm:$0xff]
      %v436 = vld [vmem:[#allocation2 + $0xe8] sm:$0xff]
      %v437 = vld [vmem:[#allocation2 + $0xf0] sm:$0xff]
      %v438 = vld [vmem:[#allocation2 + $0xf8] sm:$0xff]
      %v439 = vld [vmem:[%s260] sm:$0xff]
      %v440 = vld [vmem:[%s260 + $0x8] sm:$0xff]
      %v441 = vld [vmem:[%s260 + $0x10] sm:$0xff]
      %v442 = vld [vmem:[%s260 + $0x18] sm:$0xff]
      %v443 = vld [vmem:[%s260 + $0x20] sm:$0xff]
      %v444 = vld [vmem:[%s260 + $0x28] sm:$0xff]
      %v445 = vld [vmem:[%s260 + $0x30] sm:$0xff]
      %v446 = vld [vmem:[%s260 + $0x38] sm:$0xff]
      %v447 = vld [vmem:[%s260 + $0x40] sm:$0xff]
      %v448 = vld [vmem:[%s260 + $0x48] sm:$0xff]
      %v449 = vld [vmem:[%s260 + $0x50] sm:$0xff]
      %v450 = vld [vmem:[%s260 + $0x58] sm:$0xff]
      %v451 = vld [vmem:[%s260 + $0x60] sm:$0xff]
      %v452 = vld [vmem:[%s260 + $0x68] sm:$0xff]
      %v453 = vld [vmem:[%s260 + $0x70] sm:$0xff]
      %v454 = vld [vmem:[%s260 + $0x78] sm:$0xff]
      %v455 = vld [vmem:[%s260 + $0x80] sm:$0xff]
      %v456 = vld [vmem:[%s260 + $0x88] sm:$0xff]
      %v457 = vld [vmem:[%s260 + $0x90] sm:$0xff]
      %v458 = vld [vmem:[%s260 + $0x98] sm:$0xff]
      %v459 = vld [vmem:[%s260 + $0xa0] sm:$0xff]
      %v460 = vld [vmem:[%s260 + $0xa8] sm:$0xff]
      %v461 = vld [vmem:[%s260 + $0xb0] sm:$0xff]
      %v462 = vld [vmem:[%s260 + $0xb8] sm:$0xff]
      %v463 = vld [vmem:[%s260 + $0xc0] sm:$0xff]
      %v464 = vld [vmem:[%s260 + $0xc8] sm:$0xff]
      %v465 = vld [vmem:[%s260 + $0xd0] sm:$0xff]
      %v466 = vld [vmem:[%s260 + $0xd8] sm:$0xff]
      %v467 = vld [vmem:[%s260 + $0xe0] sm:$0xff]
      %v468 = vld [vmem:[%s260 + $0xe8] sm:$0xff]
      %v469 = vld [vmem:[%s260 + $0xf0] sm:$0xff]
      %v470 = vld [vmem:[%s260 + $0xf8] sm:$0xff]
      %v471 = vld [vmem:[%s305] sm:$0xff]
      %v472 = vld [vmem:[%s305 + $0x8] sm:$0xff]
      %v473 = vld [vmem:[%s305 + $0x10] sm:$0xff]
      %v474 = vld [vmem:[%s305 + $0x18] sm:$0xff]
      %v475 = vld [vmem:[%s305 + $0x20] sm:$0xff]
      %v476 = vld [vmem:[%s305 + $0x28] sm:$0xff]
      %v477 = vld [vmem:[%s305 + $0x30] sm:$0xff]
      %v478 = vld [vmem:[%s305 + $0x38] sm:$0xff]
      %v479 = vld [vmem:[%s305 + $0x40] sm:$0xff]
      %v480 = vld [vmem:[%s305 + $0x48] sm:$0xff]
      %v481 = vld [vmem:[%s305 + $0x50] sm:$0xff]
      %v482 = vld [vmem:[%s305 + $0x58] sm:$0xff]
      %v483 = vld [vmem:[%s305 + $0x60] sm:$0xff]
      %v484 = vld [vmem:[%s305 + $0x68] sm:$0xff]
      %v485 = vld [vmem:[%s305 + $0x70] sm:$0xff]
      %v486 = vld [vmem:[%s305 + $0x78] sm:$0xff]
      %v487 = vld [vmem:[%s305 + $0x80] sm:$0xff]
      %v488 = vld [vmem:[%s305 + $0x88] sm:$0xff]
      %v489 = vld [vmem:[%s305 + $0x90] sm:$0xff]
      %v490 = vld [vmem:[%s305 + $0x98] sm:$0xff]
      %v491 = vld [vmem:[%s305 + $0xa0] sm:$0xff]
      %v492 = vld [vmem:[%s305 + $0xa8] sm:$0xff]
      %v493 = vld [vmem:[%s305 + $0xb0] sm:$0xff]
      %v494 = vld [vmem:[%s305 + $0xb8] sm:$0xff]
      %v495 = vld [vmem:[%s305 + $0xc0] sm:$0xff]
      %v496 = vld [vmem:[%s305 + $0xc8] sm:$0xff]
      %v497 = vld [vmem:[%s305 + $0xd0] sm:$0xff]
      %v498 = vld [vmem:[%s305 + $0xd8] sm:$0xff]
      %v499 = vld [vmem:[%s305 + $0xe0] sm:$0xff]
      %v500 = vld [vmem:[%s305 + $0xe8] sm:$0xff]
      %v501 = vld [vmem:[%s305 + $0xf0] sm:$0xff]
      %v502 = vld [vmem:[%s305 + $0xf8] sm:$0xff]
      %v503 = vld [vmem:[%s272] sm:$0xff]
      %v504 = vld [vmem:[%s272 + $0x8] sm:$0xff]
      %v505 = vld [vmem:[%s272 + $0x10] sm:$0xff]
      %v506 = vld [vmem:[%s272 + $0x18] sm:$0xff]
      %v507 = vld [vmem:[%s272 + $0x20] sm:$0xff]
      %v508 = vld [vmem:[%s272 + $0x28] sm:$0xff]
      %v509 = vld [vmem:[%s272 + $0x30] sm:$0xff]
      %v510 = vld [vmem:[%s272 + $0x38] sm:$0xff]
      %v511 = vld [vmem:[%s272 + $0x40] sm:$0xff]
      %v512 = vld [vmem:[%s272 + $0x48] sm:$0xff]
      %v513 = vld [vmem:[%s272 + $0x50] sm:$0xff]
      %v514 = vld [vmem:[%s272 + $0x58] sm:$0xff]
      %v515 = vld [vmem:[%s272 + $0x60] sm:$0xff]
      %v516 = vld [vmem:[%s272 + $0x68] sm:$0xff]
      %v517 = vld [vmem:[%s272 + $0x70] sm:$0xff]
      %v518 = vld [vmem:[%s272 + $0x78] sm:$0xff]
      %v519 = vld [vmem:[%s272 + $0x80] sm:$0xff]
      %v520 = vld [vmem:[%s272 + $0x88] sm:$0xff]
      %v521 = vld [vmem:[%s272 + $0x90] sm:$0xff]
      %v522 = vld [vmem:[%s272 + $0x98] sm:$0xff]
      %v523 = vld [vmem:[%s272 + $0xa0] sm:$0xff]
      %v524 = vld [vmem:[%s272 + $0xa8] sm:$0xff]
      %v525 = vld [vmem:[%s272 + $0xb0] sm:$0xff]
      %v526 = vld [vmem:[%s272 + $0xb8] sm:$0xff]
      %v527 = vld [vmem:[%s272 + $0xc0] sm:$0xff]
      %v528 = vld [vmem:[%s272 + $0xc8] sm:$0xff]
      %v529 = vld [vmem:[%s272 + $0xd0] sm:$0xff]
      %v530 = vld [vmem:[%s272 + $0xd8] sm:$0xff]
      %v531 = vld [vmem:[%s272 + $0xe0] sm:$0xff]
      %v532 = vld [vmem:[%s272 + $0xe8] sm:$0xff]
      %v533 = vld [vmem:[%s272 + $0xf0] sm:$0xff]
      %v534 = vld [vmem:[%s272 + $0xf8] sm:$0xff]
      %567 = vrot.lane.b32.xlu0 %v439, 4
      %v568 = vpop.permute.xlu0 %567
      %569 = vrot.lane.b32.xlu0 %v440, 4
      %v570 = vpop.permute.xlu0 %569
      %571 = vrot.lane.b32.xlu0 %v441, 4
      %v572 = vpop.permute.xlu0 %571
      %573 = vrot.lane.b32.xlu0 %v442, 4
      %v574 = vpop.permute.xlu0 %573
      %575 = vrot.lane.b32.xlu0 %v443, 4
      %v576 = vpop.permute.xlu0 %575
      %577 = vrot.lane.b32.xlu0 %v444, 4
      %v578 = vpop.permute.xlu0 %577
      %579 = vrot.lane.b32.xlu0 %v445, 4
      %v580 = vpop.permute.xlu0 %579
      %581 = vrot.lane.b32.xlu0 %v446, 4
      %v582 = vpop.permute.xlu0 %581
      %583 = vrot.lane.b32.xlu0 %v447, 4
      %v584 = vpop.permute.xlu0 %583
      %585 = vrot.lane.b32.xlu0 %v448, 4
      %v586 = vpop.permute.xlu0 %585
      %587 = vrot.lane.b32.xlu0 %v449, 4
      %v588 = vpop.permute.xlu0 %587
      %589 = vrot.lane.b32.xlu0 %v450, 4
      %v590 = vpop.permute.xlu0 %589
      %591 = vrot.lane.b32.xlu0 %v451, 4
      %v592 = vpop.permute.xlu0 %591
      %593 = vrot.lane.b32.xlu0 %v452, 4
      %v594 = vpop.permute.xlu0 %593
      %595 = vrot.lane.b32.xlu0 %v453, 4
      %v596 = vpop.permute.xlu0 %595
      %597 = vrot.lane.b32.xlu0 %v454, 4
      %v598 = vpop.permute.xlu0 %597
      %599 = vrot.lane.b32.xlu0 %v455, 4
      %v600 = vpop.permute.xlu0 %599
      %601 = vrot.lane.b32.xlu0 %v456, 4
      %v602 = vpop.permute.xlu0 %601
      %603 = vrot.lane.b32.xlu0 %v457, 4
      %v604 = vpop.permute.xlu0 %603
      %605 = vrot.lane.b32.xlu0 %v458, 4
      %v606 = vpop.permute.xlu0 %605
      %607 = vrot.lane.b32.xlu0 %v459, 4
      %v608 = vpop.permute.xlu0 %607
      %609 = vrot.lane.b32.xlu0 %v460, 4
      %v610 = vpop.permute.xlu0 %609
      %611 = vrot.lane.b32.xlu0 %v461, 4
      %v612 = vpop.permute.xlu0 %611
      %613 = vrot.lane.b32.xlu0 %v462, 4
      %v614 = vpop.permute.xlu0 %613
      %615 = vrot.lane.b32.xlu0 %v463, 4
      %v616 = vpop.permute.xlu0 %615
      %617 = vrot.lane.b32.xlu0 %v464, 4
      %v618 = vpop.permute.xlu0 %617
      %619 = vrot.lane.b32.xlu0 %v465, 4
      %v620 = vpop.permute.xlu0 %619
      %621 = vrot.lane.b32.xlu0 %v466, 4
      %v622 = vpop.permute.xlu0 %621
      %623 = vrot.lane.b32.xlu0 %v467, 4
      %v624 = vpop.permute.xlu0 %623
      %625 = vrot.lane.b32.xlu0 %v468, 4
      %v626 = vpop.permute.xlu0 %625
      %627 = vrot.lane.b32.xlu0 %v469, 4
      %v628 = vpop.permute.xlu0 %627
      %629 = vrot.lane.b32.xlu0 %v470, 4
      %v630 = vpop.permute.xlu0 %629
      %695 = vrot.lane.b32.xlu0 %v471, 8
      %v696 = vpop.permute.xlu0 %695
      %697 = vrot.lane.b32.xlu0 %v472, 8
      %v698 = vpop.permute.xlu0 %697
      %699 = vrot.lane.b32.xlu0 %v473, 8
      %v700 = vpop.permute.xlu0 %699
      %701 = vrot.lane.b32.xlu0 %v474, 8
      %v702 = vpop.permute.xlu0 %701
      %703 = vrot.lane.b32.xlu0 %v475, 8
      %v704 = vpop.permute.xlu0 %703
      %705 = vrot.lane.b32.xlu0 %v476, 8
      %v706 = vpop.permute.xlu0 %705
      %707 = vrot.lane.b32.xlu0 %v477, 8
      %v708 = vpop.permute.xlu0 %707
      %709 = vrot.lane.b32.xlu0 %v478, 8
      %v710 = vpop.permute.xlu0 %709
      %711 = vrot.lane.b32.xlu0 %v479, 8
      %v712 = vpop.permute.xlu0 %711
      %713 = vrot.lane.b32.xlu0 %v480, 8
      %v714 = vpop.permute.xlu0 %713
      %715 = vrot.lane.b32.xlu0 %v481, 8
      %v716 = vpop.permute.xlu0 %715
      %717 = vrot.lane.b32.xlu0 %v482, 8
      %v718 = vpop.permute.xlu0 %717
      %719 = vrot.lane.b32.xlu0 %v483, 8
      %v720 = vpop.permute.xlu0 %719
      %721 = vrot.lane.b32.xlu0 %v484, 8
      %v722 = vpop.permute.xlu0 %721
      %723 = vrot.lane.b32.xlu0 %v485, 8
      %v724 = vpop.permute.xlu0 %723
      %725 = vrot.lane.b32.xlu0 %v486, 8
      %v726 = vpop.permute.xlu0 %725
      %727 = vrot.lane.b32.xlu0 %v487, 8
      %v728 = vpop.permute.xlu0 %727
      %729 = vrot.lane.b32.xlu0 %v488, 8
      %v730 = vpop.permute.xlu0 %729
      %731 = vrot.lane.b32.xlu0 %v489, 8
      %v732 = vpop.permute.xlu0 %731
      %733 = vrot.lane.b32.xlu0 %v490, 8
      %v734 = vpop.permute.xlu0 %733
      %735 = vrot.lane.b32.xlu0 %v491, 8
      %v736 = vpop.permute.xlu0 %735
      %737 = vrot.lane.b32.xlu0 %v492, 8
      %v738 = vpop.permute.xlu0 %737
      %739 = vrot.lane.b32.xlu0 %v493, 8
      %v740 = vpop.permute.xlu0 %739
      %741 = vrot.lane.b32.xlu0 %v494, 8
      %v742 = vpop.permute.xlu0 %741
      %743 = vrot.lane.b32.xlu0 %v495, 8
      %v744 = vpop.permute.xlu0 %743
      %745 = vrot.lane.b32.xlu0 %v496, 8
      %v746 = vpop.permute.xlu0 %745
      %747 = vrot.lane.b32.xlu0 %v497, 8
      %v748 = vpop.permute.xlu0 %747
      %749 = vrot.lane.b32.xlu0 %v498, 8
      %v750 = vpop.permute.xlu0 %749
      %751 = vrot.lane.b32.xlu0 %v499, 8
      %v752 = vpop.permute.xlu0 %751
      %753 = vrot.lane.b32.xlu0 %v500, 8
      %v754 = vpop.permute.xlu0 %753
      %755 = vrot.lane.b32.xlu0 %v501, 8
      %v756 = vpop.permute.xlu0 %755
      %757 = vrot.lane.b32.xlu0 %v502, 8
      %v758 = vpop.permute.xlu0 %757
      %823 = vrot.lane.b32.xlu0 %v503, 12
      %v824 = vpop.permute.xlu0 %823
      %825 = vrot.lane.b32.xlu0 %v504, 12
      %v826 = vpop.permute.xlu0 %825
      %827 = vrot.lane.b32.xlu0 %v505, 12
      %v828 = vpop.permute.xlu0 %827
      %829 = vrot.lane.b32.xlu0 %v506, 12
      %v830 = vpop.permute.xlu0 %829
      %831 = vrot.lane.b32.xlu0 %v507, 12
      %v832 = vpop.permute.xlu0 %831
      %833 = vrot.lane.b32.xlu0 %v508, 12
      %v834 = vpop.permute.xlu0 %833
      %835 = vrot.lane.b32.xlu0 %v509, 12
      %v836 = vpop.permute.xlu0 %835
      %837 = vrot.lane.b32.xlu0 %v510, 12
      %v838 = vpop.permute.xlu0 %837
      %839 = vrot.lane.b32.xlu0 %v511, 12
      %v840 = vpop.permute.xlu0 %839
      %841 = vrot.lane.b32.xlu0 %v512, 12
      %v842 = vpop.permute.xlu0 %841
      %843 = vrot.lane.b32.xlu0 %v513, 12
      %v844 = vpop.permute.xlu0 %843
      %845 = vrot.lane.b32.xlu0 %v514, 12
      %v846 = vpop.permute.xlu0 %845
      %847 = vrot.lane.b32.xlu0 %v515, 12
      %v848 = vpop.permute.xlu0 %847
      %849 = vrot.lane.b32.xlu0 %v516, 12
      %v850 = vpop.permute.xlu0 %849
      %851 = vrot.lane.b32.xlu0 %v517, 12
      %v852 = vpop.permute.xlu0 %851
      %853 = vrot.lane.b32.xlu0 %v518, 12
      %v854 = vpop.permute.xlu0 %853
      %855 = vrot.lane.b32.xlu0 %v519, 12
      %v856 = vpop.permute.xlu0 %855
      %857 = vrot.lane.b32.xlu0 %v520, 12
      %v858 = vpop.permute.xlu0 %857
      %859 = vrot.lane.b32.xlu0 %v521, 12
      %v860 = vpop.permute.xlu0 %859
      %861 = vrot.lane.b32.xlu0 %v522, 12
      %v862 = vpop.permute.xlu0 %861
      %863 = vrot.lane.b32.xlu0 %v523, 12
      %v864 = vpop.permute.xlu0 %863
      %865 = vrot.lane.b32.xlu0 %v524, 12
      %v866 = vpop.permute.xlu0 %865
      %867 = vrot.lane.b32.xlu0 %v525, 12
      %v868 = vpop.permute.xlu0 %867
      %869 = vrot.lane.b32.xlu0 %v526, 12
      %v870 = vpop.permute.xlu0 %869
      %871 = vrot.lane.b32.xlu0 %v527, 12
      %v872 = vpop.permute.xlu0 %871
      %873 = vrot.lane.b32.xlu0 %v528, 12
      %v874 = vpop.permute.xlu0 %873
      %875 = vrot.lane.b32.xlu0 %v529, 12
      %v876 = vpop.permute.xlu0 %875
      %877 = vrot.lane.b32.xlu0 %v530, 12
      %v878 = vpop.permute.xlu0 %877
      %879 = vrot.lane.b32.xlu0 %v531, 12
      %v880 = vpop.permute.xlu0 %879
      %881 = vrot.lane.b32.xlu0 %v532, 12
      %v882 = vpop.permute.xlu0 %881
      %883 = vrot.lane.b32.xlu0 %v533, 12
      %v884 = vpop.permute.xlu0 %883
      %885 = vrot.lane.b32.xlu0 %v534, 12
      %v886 = vpop.permute.xlu0 %885
      %v919 = vsel %vm254, %v407, %v568
      %v920 = vsel %vm254, %v408, %v570
      %v921 = vsel %vm254, %v409, %v572
      %v922 = vsel %vm254, %v410, %v574
      %v923 = vsel %vm254, %v411, %v576
      %v924 = vsel %vm254, %v412, %v578
      %v925 = vsel %vm254, %v413, %v580
      %v926 = vsel %vm254, %v414, %v582
      %v927 = vsel %vm254, %v415, %v584
      %v928 = vsel %vm254, %v416, %v586
      %v929 = vsel %vm254, %v417, %v588
      %v930 = vsel %vm254, %v418, %v590
      %v931 = vsel %vm254, %v419, %v592
      %v932 = vsel %vm254, %v420, %v594
      %v933 = vsel %vm254, %v421, %v596
      %v934 = vsel %vm254, %v422, %v598
      %v935 = vsel %vm254, %v423, %v600
      %v936 = vsel %vm254, %v424, %v602
      %v937 = vsel %vm254, %v425, %v604
      %v938 = vsel %vm254, %v426, %v606
      %v939 = vsel %vm254, %v427, %v608
      %v940 = vsel %vm254, %v428, %v610
      %v941 = vsel %vm254, %v429, %v612
      %v942 = vsel %vm254, %v430, %v614
      %v943 = vsel %vm254, %v431, %v616
      %v944 = vsel %vm254, %v432, %v618
      %v945 = vsel %vm254, %v433, %v620
      %v946 = vsel %vm254, %v434, %v622
      %v947 = vsel %vm254, %v435, %v624
      %v948 = vsel %vm254, %v436, %v626
      %v949 = vsel %vm254, %v437, %v628
      %v950 = vsel %vm254, %v438, %v630
      %vm951 = vcmask 64512
      %v952 = vsel %vm951, %v919, %v696
      %v953 = vsel %vm951, %v920, %v698
      %v954 = vsel %vm951, %v921, %v700
      %v955 = vsel %vm951, %v922, %v702
      %v956 = vsel %vm951, %v923, %v704
      %v957 = vsel %vm951, %v924, %v706
      %v958 = vsel %vm951, %v925, %v708
      %v959 = vsel %vm951, %v926, %v710
      %v960 = vsel %vm951, %v927, %v712
      %v961 = vsel %vm951, %v928, %v714
      %v962 = vsel %vm951, %v929, %v716
      %v963 = vsel %vm951, %v930, %v718
      %v964 = vsel %vm951, %v931, %v720
      %v965 = vsel %vm951, %v932, %v722
      %v966 = vsel %vm951, %v933, %v724
      %v967 = vsel %vm951, %v934, %v726
      %v968 = vsel %vm951, %v935, %v728
      %v969 = vsel %vm951, %v936, %v730
      %v970 = vsel %vm951, %v937, %v732
      %v971 = vsel %vm951, %v938, %v734
      %v972 = vsel %vm951, %v939, %v736
      %v973 = vsel %vm951, %v940, %v738
      %v974 = vsel %vm951, %v941, %v740
      %v975 = vsel %vm951, %v942, %v742
      %v976 = vsel %vm951, %v943, %v744
      %v977 = vsel %vm951, %v944, %v746
      %v978 = vsel %vm951, %v945, %v748
      %v979 = vsel %vm951, %v946, %v750
      %v980 = vsel %vm951, %v947, %v752
      %v981 = vsel %vm951, %v948, %v754
      %v982 = vsel %vm951, %v949, %v756
      %v983 = vsel %vm951, %v950, %v758
      %vm984 = vcmask 97280
      %v985 = vsel %vm984, %v952, %v824
      %v986 = vsel %vm984, %v953, %v826
      %v987 = vsel %vm984, %v954, %v828
      %v988 = vsel %vm984, %v955, %v830
      %v989 = vsel %vm984, %v956, %v832
      %v990 = vsel %vm984, %v957, %v834
      %v991 = vsel %vm984, %v958, %v836
      %v992 = vsel %vm984, %v959, %v838
      %v993 = vsel %vm984, %v960, %v840
      %v994 = vsel %vm984, %v961, %v842
      %v995 = vsel %vm984, %v962, %v844
      %v996 = vsel %vm984, %v963, %v846
      %v997 = vsel %vm984, %v964, %v848
      %v998 = vsel %vm984, %v965, %v850
      %v999 = vsel %vm984, %v966, %v852
      %v1000 = vsel %vm984, %v967, %v854
      %v1001 = vsel %vm984, %v968, %v856
      %v1002 = vsel %vm984, %v969, %v858
      %v1003 = vsel %vm984, %v970, %v860
      %v1004 = vsel %vm984, %v971, %v862
      %v1005 = vsel %vm984, %v972, %v864
      %v1006 = vsel %vm984, %v973, %v866
      %v1007 = vsel %vm984, %v974, %v868
      %v1008 = vsel %vm984, %v975, %v870
      %v1009 = vsel %vm984, %v976, %v872
      %v1010 = vsel %vm984, %v977, %v874
      %v1011 = vsel %vm984, %v978, %v876
      %v1012 = vsel %vm984, %v979, %v878
      %v1013 = vsel %vm984, %v980, %v880
      %v1014 = vsel %vm984, %v981, %v882
      %v1015 = vsel %vm984, %v982, %v884
      %v1016 = vsel %vm984, %v983, %v886
      %v1017 = vld [vmem:[%s210] sm:$0xff]
      %v1018 = vld [vmem:[%s210 + $0x8] sm:$0xff]
      %v1020 = vlaneseq
      %v1021 = vshrl.u32 %v1020, 7
      %v1022 = vsub.s32 0, %v1021
      %v1023 = vrot.slane %v406, %v1022
      %vm1025 = vcmask 130048
      %v1027 = vsel %vm1025, %v985, 0
      %v1030 = vsel %vm1025, %v986, 0
      %v1033 = vsel %vm1025, %v987, 0
      %v1036 = vsel %vm1025, %v988, 0
      %v1039 = vsel %vm1025, %v989, 0
      %v1042 = vsel %vm1025, %v990, 0
      %v1045 = vsel %vm1025, %v991, 0
      %v1048 = vsel %vm1025, %v992, 0
      %v1051 = vsel %vm1025, %v993, 0
      %v1054 = vsel %vm1025, %v994, 0
      %v1057 = vsel %vm1025, %v995, 0
      %v1060 = vsel %vm1025, %v996, 0
      %v1063 = vsel %vm1025, %v997, 0
      %v1066 = vsel %vm1025, %v998, 0
      %v1069 = vsel %vm1025, %v999, 0
      %v1072 = vsel %vm1025, %v1000, 0
      %v1075 = vsel %vm1025, %v1001, 0
      %v1078 = vsel %vm1025, %v1002, 0
      %v1081 = vsel %vm1025, %v1003, 0
      %v1084 = vsel %vm1025, %v1004, 0
      %v1087 = vsel %vm1025, %v1005, 0
      %v1090 = vsel %vm1025, %v1006, 0
      %v1093 = vsel %vm1025, %v1007, 0
      %v1096 = vsel %vm1025, %v1008, 0
      %v1099 = vsel %vm1025, %v1009, 0
      %v1102 = vsel %vm1025, %v1010, 0
      %v1105 = vsel %vm1025, %v1011, 0
      %v1108 = vsel %vm1025, %v1012, 0
      %v1111 = vsel %vm1025, %v1013, 0
      %v1114 = vsel %vm1025, %v1014, 0
      %v1117 = vsel %vm1025, %v1015, 0
      %v1120 = vsel %vm1025, %v1016, 0
      %1122 = vmatprep.subr.mxu0 0.0
      %1123 = vmatpush1.msra.mxu0 %v1017
      %1124 = vmatprep.subr.mxu0 0.0
      %1125 = vmatpush1.msra.mxu0 %v1018
      %1126 = vmatprep.subr.mxu0 0.0
      %1127 = vmatpush1.msra.mxu0 0.0
      %1128 = vmatprep.subr.mxu0 0.0
      %1129 = vmatpush1.msra.mxu0 0.0
      %1130 = vmatprep.subr.mxu0 0.0
      %1131 = vmatpush1.msra.mxu0 0.0
      %1132 = vmatprep.subr.mxu0 0.0
      %1133 = vmatpush1.msra.mxu0 0.0
      %1134 = vmatprep.subr.mxu0 0.0
      %1135 = vmatpush1.msra.mxu0 0.0
      %1136 = vmatprep.subr.mxu0 0.0
      %1137 = vmatpush1.msra.mxu0 0.0
      %1138 = vmatprep.subr.mxu0 0.0
      %1139 = vmatpush1.msra.mxu0 0.0
      %1140 = vmatprep.subr.mxu0 0.0
      %1141 = vmatpush1.msra.mxu0 0.0
      %1142 = vmatprep.subr.mxu0 0.0
      %1143 = vmatpush1.msra.mxu0 0.0
      %1144 = vmatprep.subr.mxu0 0.0
      %1145 = vmatpush1.msra.mxu0 0.0
      %1146 = vmatprep.subr.mxu0 0.0
      %1147 = vmatpush1.msra.mxu0 0.0
      %1148 = vmatprep.subr.mxu0 0.0
      %1149 = vmatpush1.msra.mxu0 0.0
      %1150 = vmatprep.subr.mxu0 0.0
      %1151 = vmatpush1.msra.mxu0 0.0
      %1152 = vmatprep.subr.mxu0 0.0
      %1153 = vmatpush1.msra.mxu0 0.0
      %1154 = vmatprep.subr.mxu0 0.0
      %1155 = vmatpush1.msra.mxu0 0.0
      %1156 = vmatprep.subr.mxu0 0.0
      %1157 = vmatpush1.msra.mxu0 0.0
      %1158 = vmatprep.subr.mxu0 0.0
      %1159 = vmatpush1.msra.mxu0 0.0
      %1160 = vmatprep.subr.mxu0 0.0
      %1161 = vmatpush1.msra.mxu0 0.0
      %1162 = vmatprep.subr.mxu0 0.0
      %1163 = vmatpush1.msra.mxu0 0.0
      %1164 = vmatprep.subr.mxu0 0.0
      %1165 = vmatpush1.msra.mxu0 0.0
      %1166 = vmatprep.subr.mxu0 0.0
      %1167 = vmatpush1.msra.mxu0 0.0
      %1168 = vmatprep.subr.mxu0 0.0
      %1169 = vmatpush1.msra.mxu0 0.0
      %1170 = vmatprep.subr.mxu0 0.0
      %1171 = vmatpush1.msra.mxu0 0.0
      %1172 = vmatprep.subr.mxu0 0.0
      %1173 = vmatpush1.msra.mxu0 0.0
      %1174 = vmatprep.subr.mxu0 0.0
      %1175 = vmatpush1.msra.mxu0 0.0
      %1176 = vmatprep.subr.mxu0 0.0
      %1177 = vmatpush1.msra.mxu0 0.0
      %1178 = vmatprep.subr.mxu0 0.0
      %1179 = vmatpush1.msra.mxu0 0.0
      %1180 = vmatprep.subr.mxu0 0.0
      %1181 = vmatpush1.msra.mxu0 0.0
      %1182 = vmatprep.subr.mxu0 0.0
      %1183 = vmatpush1.msra.mxu0 0.0
      %1184 = vmatprep.subr.mxu0 0.0
      %1185 = vmatpush1.msra.mxu0 0.0
      %1186 = vmatprep.mubr.f32.mxu0 0.0
      %1187 = vmatmul.mubr.f32.gmra.mrb[0].mxu0 %v1027
      %v1188 = vpop.f32.mrb[0].mxu0
      %v1189 = vadd.f32 %v1023, %v1188
      %v1190 = vpop.f32.mrb[0].mxu0
      %1191 = vmatprep.mubr.f32.mxu0 0.0
      %1192 = vmatmul.mubr.f32.gmra.mrb[0].mxu0 %v1030
      %v1193 = vpop.f32.mrb[0].mxu0
      %v1194 = vadd.f32 %v1023, %v1193
      %v1195 = vpop.f32.mrb[0].mxu0
      %1196 = vmatprep.mubr.f32.mxu0 0.0
      %1197 = vmatmul.mubr.f32.gmra.mrb[0].mxu0 %v1033
      %v1198 = vpop.f32.mrb[0].mxu0
      %v1199 = vadd.f32 %v1023, %v1198
      %v1200 = vpop.f32.mrb[0].mxu0
      %1201 = vmatprep.mubr.f32.mxu0 0.0
      %1202 = vmatmul.mubr.f32.gmra.mrb[0].mxu0 %v1036
      %v1203 = vpop.f32.mrb[0].mxu0
      %v1204 = vadd.f32 %v1023, %v1203
      %v1205 = vpop.f32.mrb[0].mxu0
      %1206 = vmatprep.mubr.f32.mxu0 0.0
      %1207 = vmatmul.mubr.f32.gmra.mrb[0].mxu0 %v1039
      %v1208 = vpop.f32.mrb[0].mxu0
      %v1209 = vadd.f32 %v1023, %v1208
      %v1210 = vpop.f32.mrb[0].mxu0
      %1211 = vmatprep.mubr.f32.mxu0 0.0
      %1212 = vmatmul.mubr.f32.gmra.mrb[0].mxu0 %v1042
      %v1213 = vpop.f32.mrb[0].mxu0
      %v1214 = vadd.f32 %v1023, %v1213
      %v1215 = vpop.f32.mrb[0].mxu0
      %1216 = vmatprep.mubr.f32.mxu0 0.0
      %1217 = vmatmul.mubr.f32.gmra.mrb[0].mxu0 %v1045
      %v1218 = vpop.f32.mrb[0].mxu0
      %v1219 = vadd.f32 %v1023, %v1218
      %v1220 = vpop.f32.mrb[0].mxu0
      %1221 = vmatprep.mubr.f32.mxu0 0.0
      %1222 = vmatmul.mubr.f32.gmra.mrb[0].mxu0 %v1048
      %v1223 = vpop.f32.mrb[0].mxu0
      %v1224 = vadd.f32 %v1023, %v1223
      %v1225 = vpop.f32.mrb[0].mxu0
      %1226 = vmatprep.mubr.f32.mxu0 0.0
      %1227 = vmatmul.mubr.f32.gmra.mrb[0].mxu0 %v1051
      %v1228 = vpop.f32.mrb[0].mxu0
      %v1229 = vadd.f32 %v1023, %v1228
      %v1230 = vpop.f32.mrb[0].mxu0
      %1231 = vmatprep.mubr.f32.mxu0 0.0
      %1232 = vmatmul.mubr.f32.gmra.mrb[0].mxu0 %v1054
      %v1233 = vpop.f32.mrb[0].mxu0
      %v1234 = vadd.f32 %v1023, %v1233
      %v1235 = vpop.f32.mrb[0].mxu0
      %1236 = vmatprep.mubr.f32.mxu0 0.0
      %1237 = vmatmul.mubr.f32.gmra.mrb[0].mxu0 %v1057
      %v1238 = vpop.f32.mrb[0].mxu0
      %v1239 = vadd.f32 %v1023, %v1238
      %v1240 = vpop.f32.mrb[0].mxu0
      %1241 = vmatprep.mubr.f32.mxu0 0.0
      %1242 = vmatmul.mubr.f32.gmra.mrb[0].mxu0 %v1060
      %v1243 = vpop.f32.mrb[0].mxu0
      %v1244 = vadd.f32 %v1023, %v1243
      %v1245 = vpop.f32.mrb[0].mxu0
      %1246 = vmatprep.mubr.f32.mxu0 0.0
      %1247 = vmatmul.mubr.f32.gmra.mrb[0].mxu0 %v1063
      %v1248 = vpop.f32.mrb[0].mxu0
      %v1249 = vadd.f32 %v1023, %v1248
      %v1250 = vpop.f32.mrb[0].mxu0
      %1251 = vmatprep.mubr.f32.mxu0 0.0
      %1252 = vmatmul.mubr.f32.gmra.mrb[0].mxu0 %v1066
      %v1253 = vpop.f32.mrb[0].mxu0
      %v1254 = vadd.f32 %v1023, %v1253
      %v1255 = vpop.f32.mrb[0].mxu0
      %1256 = vmatprep.mubr.f32.mxu0 0.0
      %1257 = vmatmul.mubr.f32.gmra.mrb[0].mxu0 %v1069
      %v1258 = vpop.f32.mrb[0].mxu0
      %v1259 = vadd.f32 %v1023, %v1258
      %v1260 = vpop.f32.mrb[0].mxu0
      %1261 = vmatprep.mubr.f32.mxu0 0.0
      %1262 = vmatmul.mubr.f32.gmra.mrb[0].mxu0 %v1072
      %v1263 = vpop.f32.mrb[0].mxu0
      %v1264 = vadd.f32 %v1023, %v1263
      %v1265 = vpop.f32.mrb[0].mxu0
      %1266 = vmatprep.mubr.f32.mxu0 0.0
      %1267 = vmatmul.mubr.f32.gmra.mrb[0].mxu0 %v1075
      %v1268 = vpop.f32.mrb[0].mxu0
      %v1269 = vadd.f32 %v1023, %v1268
      %v1270 = vpop.f32.mrb[0].mxu0
      %1271 = vmatprep.mubr.f32.mxu0 0.0
      %1272 = vmatmul.mubr.f32.gmra.mrb[0].mxu0 %v1078
      %v1273 = vpop.f32.mrb[0].mxu0
      %v1274 = vadd.f32 %v1023, %v1273
      %v1275 = vpop.f32.mrb[0].mxu0
      %1276 = vmatprep.mubr.f32.mxu0 0.0
      %1277 = vmatmul.mubr.f32.gmra.mrb[0].mxu0 %v1081
      %v1278 = vpop.f32.mrb[0].mxu0
      %v1279 = vadd.f32 %v1023, %v1278
      %v1280 = vpop.f32.mrb[0].mxu0
      %1281 = vmatprep.mubr.f32.mxu0 0.0
      %1282 = vmatmul.mubr.f32.gmra.mrb[0].mxu0 %v1084
      %v1283 = vpop.f32.mrb[0].mxu0
      %v1284 = vadd.f32 %v1023, %v1283
      %v1285 = vpop.f32.mrb[0].mxu0
      %1286 = vmatprep.mubr.f32.mxu0 0.0
      %1287 = vmatmul.mubr.f32.gmra.mrb[0].mxu0 %v1087
      %v1288 = vpop.f32.mrb[0].mxu0
      %v1289 = vadd.f32 %v1023, %v1288
      %v1290 = vpop.f32.mrb[0].mxu0
      %1291 = vmatprep.mubr.f32.mxu0 0.0
      %1292 = vmatmul.mubr.f32.gmra.mrb[0].mxu0 %v1090
      %v1293 = vpop.f32.mrb[0].mxu0
      %v1294 = vadd.f32 %v1023, %v1293
      %v1295 = vpop.f32.mrb[0].mxu0
      %1296 = vmatprep.mubr.f32.mxu0 0.0
      %1297 = vmatmul.mubr.f32.gmra.mrb[0].mxu0 %v1093
      %v1298 = vpop.f32.mrb[0].mxu0
      %v1299 = vadd.f32 %v1023, %v1298
      %v1300 = vpop.f32.mrb[0].mxu0
      %1301 = vmatprep.mubr.f32.mxu0 0.0
      %1302 = vmatmul.mubr.f32.gmra.mrb[0].mxu0 %v1096
      %v1303 = vpop.f32.mrb[0].mxu0
      %v1304 = vadd.f32 %v1023, %v1303
      %v1305 = vpop.f32.mrb[0].mxu0
      %1306 = vmatprep.mubr.f32.mxu0 0.0
      %1307 = vmatmul.mubr.f32.gmra.mrb[0].mxu0 %v1099
      %v1308 = vpop.f32.mrb[0].mxu0
      %v1309 = vadd.f32 %v1023, %v1308
      %v1310 = vpop.f32.mrb[0].mxu0
      %1311 = vmatprep.mubr.f32.mxu0 0.0
      %1312 = vmatmul.mubr.f32.gmra.mrb[0].mxu0 %v1102
      %v1313 = vpop.f32.mrb[0].mxu0
      %v1314 = vadd.f32 %v1023, %v1313
      %v1315 = vpop.f32.mrb[0].mxu0
      %1316 = vmatprep.mubr.f32.mxu0 0.0
      %1317 = vmatmul.mubr.f32.gmra.mrb[0].mxu0 %v1105
      %v1318 = vpop.f32.mrb[0].mxu0
      %v1319 = vadd.f32 %v1023, %v1318
      %v1320 = vpop.f32.mrb[0].mxu0
      %1321 = vmatprep.mubr.f32.mxu0 0.0
      %1322 = vmatmul.mubr.f32.gmra.mrb[0].mxu0 %v1108
      %v1323 = vpop.f32.mrb[0].mxu0
      %v1324 = vadd.f32 %v1023, %v1323
      %v1325 = vpop.f32.mrb[0].mxu0
      %1326 = vmatprep.mubr.f32.mxu0 0.0
      %1327 = vmatmul.mubr.f32.gmra.mrb[0].mxu0 %v1111
      %v1328 = vpop.f32.mrb[0].mxu0
      %v1329 = vadd.f32 %v1023, %v1328
      %v1330 = vpop.f32.mrb[0].mxu0
      %1331 = vmatprep.mubr.f32.mxu0 0.0
      %1332 = vmatmul.mubr.f32.gmra.mrb[0].mxu0 %v1114
      %v1333 = vpop.f32.mrb[0].mxu0
      %v1334 = vadd.f32 %v1023, %v1333
      %v1335 = vpop.f32.mrb[0].mxu0
      %1336 = vmatprep.mubr.f32.mxu0 0.0
      %1337 = vmatmul.mubr.f32.gmra.mrb[0].mxu0 %v1117
      %v1338 = vpop.f32.mrb[0].mxu0
      %v1339 = vadd.f32 %v1023, %v1338
      %v1340 = vpop.f32.mrb[0].mxu0
      %1341 = vmatprep.mubr.f32.mxu0 0.0
      %1342 = vmatmul.mubr.f32.gmra.mrb[0].mxu0 %v1120
      %v1343 = vpop.f32.mrb[0].mxu0
      %v1344 = vadd.f32 %v1023, %v1343
      %v1345 = vpop.f32.mrb[0].mxu0
      %1346 = vdwg.mxu0
      %1347 = vst.msk [vmem:[%s221] sm:$0xff] %vm254, %v1189
      %1348 = vst.msk [vmem:[%s221 + $0x8] sm:$0xff] %vm254, %v1194
      %1349 = vst.msk [vmem:[%s221 + $0x40] sm:$0xff] %vm254, %v1199
      %1350 = vst.msk [vmem:[%s221 + $0x48] sm:$0xff] %vm254, %v1204
      %1351 = vst.msk [vmem:[%s221 + $0x80] sm:$0xff] %vm254, %v1209
      %1352 = vst.msk [vmem:[%s221 + $0x88] sm:$0xff] %vm254, %v1214
      %1353 = vst.msk [vmem:[%s221 + $0xc0] sm:$0xff] %vm254, %v1219
      %1354 = vst.msk [vmem:[%s221 + $0xc8] sm:$0xff] %vm254, %v1224
      %1355 = vst.msk [vmem:[%s221 + $0x100] sm:$0xff] %vm254, %v1229
      %1356 = vst.msk [vmem:[%s221 + $0x108] sm:$0xff] %vm254, %v1234
      %1357 = vst.msk [vmem:[%s221 + $0x140] sm:$0xff] %vm254, %v1239
      %1358 = vst.msk [vmem:[%s221 + $0x148] sm:$0xff] %vm254, %v1244
      %1359 = vst.msk [vmem:[%s221 + $0x180] sm:$0xff] %vm254, %v1249
      %1360 = vst.msk [vmem:[%s221 + $0x188] sm:$0xff] %vm254, %v1254
      %1361 = vst.msk [vmem:[%s221 + $0x1c0] sm:$0xff] %vm254, %v1259
      %1362 = vst.msk [vmem:[%s221 + $0x1c8] sm:$0xff] %vm254, %v1264
      %1363 = vst.msk [vmem:[%s221 + $0x200] sm:$0xff] %vm254, %v1269
      %1364 = vst.msk [vmem:[%s221 + $0x208] sm:$0xff] %vm254, %v1274
      %1365 = vst.msk [vmem:[%s221 + $0x240] sm:$0xff] %vm254, %v1279
      %1366 = vst.msk [vmem:[%s221 + $0x248] sm:$0xff] %vm254, %v1284
      %1367 = vst.msk [vmem:[%s221 + $0x280] sm:$0xff] %vm254, %v1289
      %1368 = vst.msk [vmem:[%s221 + $0x288] sm:$0xff] %vm254, %v1294
      %1369 = vst.msk [vmem:[%s221 + $0x2c0] sm:$0xff] %vm254, %v1299
      %1370 = vst.msk [vmem:[%s221 + $0x2c8] sm:$0xff] %vm254, %v1304
      %1371 = vst.msk [vmem:[%s221 + $0x300] sm:$0xff] %vm254, %v1309
      %1372 = vst.msk [vmem:[%s221 + $0x308] sm:$0xff] %vm254, %v1314
      %1373 = vst.msk [vmem:[%s221 + $0x340] sm:$0xff] %vm254, %v1319
      %1374 = vst.msk [vmem:[%s221 + $0x348] sm:$0xff] %vm254, %v1324
      %1375 = vst.msk [vmem:[%s221 + $0x380] sm:$0xff] %vm254, %v1329
      %1376 = vst.msk [vmem:[%s221 + $0x388] sm:$0xff] %vm254, %v1334
      %1377 = vst.msk [vmem:[%s221 + $0x3c0] sm:$0xff] %vm254, %v1339
      %1378 = vst.msk [vmem:[%s221 + $0x3c8] sm:$0xff] %vm254, %v1344
      %v1379 = vld [vmem:[%s260] sm:$0xff]
      %v1380 = vld [vmem:[%s260 + $0x8] sm:$0xff]
      %v1381 = vld [vmem:[%s260 + $0x10] sm:$0xff]
      %v1382 = vld [vmem:[%s260 + $0x18] sm:$0xff]
      %v1383 = vld [vmem:[%s260 + $0x20] sm:$0xff]
      %v1384 = vld [vmem:[%s260 + $0x28] sm:$0xff]
      %v1385 = vld [vmem:[%s260 + $0x30] sm:$0xff]
      %v1386 = vld [vmem:[%s260 + $0x38] sm:$0xff]
      %v1387 = vld [vmem:[%s260 + $0x40] sm:$0xff]
      %v1388 = vld [vmem:[%s260 + $0x48] sm:$0xff]
      %v1389 = vld [vmem:[%s260 + $0x50] sm:$0xff]
      %v1390 = vld [vmem:[%s260 + $0x58] sm:$0xff]
      %v1391 = vld [vmem:[%s260 + $0x60] sm:$0xff]
      %v1392 = vld [vmem:[%s260 + $0x68] sm:$0xff]
      %v1393 = vld [vmem:[%s260 + $0x70] sm:$0xff]
      %v1394 = vld [vmem:[%s260 + $0x78] sm:$0xff]
      %v1395 = vld [vmem:[%s260 + $0x80] sm:$0xff]
      %v1396 = vld [vmem:[%s260 + $0x88] sm:$0xff]
      %v1397 = vld [vmem:[%s260 + $0x90] sm:$0xff]
      %v1398 = vld [vmem:[%s260 + $0x98] sm:$0xff]
      %v1399 = vld [vmem:[%s260 + $0xa0] sm:$0xff]
      %v1400 = vld [vmem:[%s260 + $0xa8] sm:$0xff]
      %v1401 = vld [vmem:[%s260 + $0xb0] sm:$0xff]
      %v1402 = vld [vmem:[%s260 + $0xb8] sm:$0xff]
      %v1403 = vld [vmem:[%s260 + $0xc0] sm:$0xff]
      %v1404 = vld [vmem:[%s260 + $0xc8] sm:$0xff]
      %v1405 = vld [vmem:[%s260 + $0xd0] sm:$0xff]
      %v1406 = vld [vmem:[%s260 + $0xd8] sm:$0xff]
      %v1407 = vld [vmem:[%s260 + $0xe0] sm:$0xff]
      %v1408 = vld [vmem:[%s260 + $0xe8] sm:$0xff]
      %v1409 = vld [vmem:[%s260 + $0xf0] sm:$0xff]
      %v1410 = vld [vmem:[%s260 + $0xf8] sm:$0xff]
      %v1411 = vld [vmem:[%s266] sm:$0xff]
      %v1412 = vld [vmem:[%s266 + $0x8] sm:$0xff]
      %v1413 = vld [vmem:[%s266 + $0x10] sm:$0xff]
      %v1414 = vld [vmem:[%s266 + $0x18] sm:$0xff]
      %v1415 = vld [vmem:[%s266 + $0x20] sm:$0xff]
      %v1416 = vld [vmem:[%s266 + $0x28] sm:$0xff]
      %v1417 = vld [vmem:[%s266 + $0x30] sm:$0xff]
      %v1418 = vld [vmem:[%s266 + $0x38] sm:$0xff]
      %v1419 = vld [vmem:[%s266 + $0x40] sm:$0xff]
      %v1420 = vld [vmem:[%s266 + $0x48] sm:$0xff]
      %v1421 = vld [vmem:[%s266 + $0x50] sm:$0xff]
      %v1422 = vld [vmem:[%s266 + $0x58] sm:$0xff]
      %v1423 = vld [vmem:[%s266 + $0x60] sm:$0xff]
      %v1424 = vld [vmem:[%s266 + $0x68] sm:$0xff]
      %v1425 = vld [vmem:[%s266 + $0x70] sm:$0xff]
      %v1426 = vld [vmem:[%s266 + $0x78] sm:$0xff]
      %v1427 = vld [vmem:[%s266 + $0x80] sm:$0xff]
      %v1428 = vld [vmem:[%s266 + $0x88] sm:$0xff]
      %v1429 = vld [vmem:[%s266 + $0x90] sm:$0xff]
      %v1430 = vld [vmem:[%s266 + $0x98] sm:$0xff]
      %v1431 = vld [vmem:[%s266 + $0xa0] sm:$0xff]
      %v1432 = vld [vmem:[%s266 + $0xa8] sm:$0xff]
      %v1433 = vld [vmem:[%s266 + $0xb0] sm:$0xff]
      %v1434 = vld [vmem:[%s266 + $0xb8] sm:$0xff]
      %v1435 = vld [vmem:[%s266 + $0xc0] sm:$0xff]
      %v1436 = vld [vmem:[%s266 + $0xc8] sm:$0xff]
      %v1437 = vld [vmem:[%s266 + $0xd0] sm:$0xff]
      %v1438 = vld [vmem:[%s266 + $0xd8] sm:$0xff]
      %v1439 = vld [vmem:[%s266 + $0xe0] sm:$0xff]
      %v1440 = vld [vmem:[%s266 + $0xe8] sm:$0xff]
      %v1441 = vld [vmem:[%s266 + $0xf0] sm:$0xff]
      %v1442 = vld [vmem:[%s266 + $0xf8] sm:$0xff]
      %v1443 = vld [vmem:[%s272] sm:$0xff]
      %v1444 = vld [vmem:[%s272 + $0x8] sm:$0xff]
      %v1445 = vld [vmem:[%s272 + $0x10] sm:$0xff]
      %v1446 = vld [vmem:[%s272 + $0x18] sm:$0xff]
      %v1447 = vld [vmem:[%s272 + $0x20] sm:$0xff]
      %v1448 = vld [vmem:[%s272 + $0x28] sm:$0xff]
      %v1449 = vld [vmem:[%s272 + $0x30] sm:$0xff]
      %v1450 = vld [vmem:[%s272 + $0x38] sm:$0xff]
      %v1451 = vld [vmem:[%s272 + $0x40] sm:$0xff]
      %v1452 = vld [vmem:[%s272 + $0x48] sm:$0xff]
      %v1453 = vld [vmem:[%s272 + $0x50] sm:$0xff]
      %v1454 = vld [vmem:[%s272 + $0x58] sm:$0xff]
      %v1455 = vld [vmem:[%s272 + $0x60] sm:$0xff]
      %v1456 = vld [vmem:[%s272 + $0x68] sm:$0xff]
      %v1457 = vld [vmem:[%s272 + $0x70] sm:$0xff]
      %v1458 = vld [vmem:[%s272 + $0x78] sm:$0xff]
      %v1459 = vld [vmem:[%s272 + $0x80] sm:$0xff]
      %v1460 = vld [vmem:[%s272 + $0x88] sm:$0xff]
      %v1461 = vld [vmem:[%s272 + $0x90] sm:$0xff]
      %v1462 = vld [vmem:[%s272 + $0x98] sm:$0xff]
      %v1463 = vld [vmem:[%s272 + $0xa0] sm:$0xff]
      %v1464 = vld [vmem:[%s272 + $0xa8] sm:$0xff]
      %v1465 = vld [vmem:[%s272 + $0xb0] sm:$0xff]
      %v1466 = vld [vmem:[%s272 + $0xb8] sm:$0xff]
      %v1467 = vld [vmem:[%s272 + $0xc0] sm:$0xff]
      %v1468 = vld [vmem:[%s272 + $0xc8] sm:$0xff]
      %v1469 = vld [vmem:[%s272 + $0xd0] sm:$0xff]
      %v1470 = vld [vmem:[%s272 + $0xd8] sm:$0xff]
      %v1471 = vld [vmem:[%s272 + $0xe0] sm:$0xff]
      %v1472 = vld [vmem:[%s272 + $0xe8] sm:$0xff]
      %v1473 = vld [vmem:[%s272 + $0xf0] sm:$0xff]
      %v1474 = vld [vmem:[%s272 + $0xf8] sm:$0xff]
      %v1475 = vld [vmem:[%s356] sm:$0xff]
      %v1476 = vld [vmem:[%s356 + $0x8] sm:$0xff]
      %v1477 = vld [vmem:[%s356 + $0x10] sm:$0xff]
      %v1478 = vld [vmem:[%s356 + $0x18] sm:$0xff]
      %v1479 = vld [vmem:[%s356 + $0x20] sm:$0xff]
      %v1480 = vld [vmem:[%s356 + $0x28] sm:$0xff]
      %v1481 = vld [vmem:[%s356 + $0x30] sm:$0xff]
      %v1482 = vld [vmem:[%s356 + $0x38] sm:$0xff]
      %v1483 = vld [vmem:[%s356 + $0x40] sm:$0xff]
      %v1484 = vld [vmem:[%s356 + $0x48] sm:$0xff]
      %v1485 = vld [vmem:[%s356 + $0x50] sm:$0xff]
      %v1486 = vld [vmem:[%s356 + $0x58] sm:$0xff]
      %v1487 = vld [vmem:[%s356 + $0x60] sm:$0xff]
      %v1488 = vld [vmem:[%s356 + $0x68] sm:$0xff]
      %v1489 = vld [vmem:[%s356 + $0x70] sm:$0xff]
      %v1490 = vld [vmem:[%s356 + $0x78] sm:$0xff]
      %v1491 = vld [vmem:[%s356 + $0x80] sm:$0xff]
      %v1492 = vld [vmem:[%s356 + $0x88] sm:$0xff]
      %v1493 = vld [vmem:[%s356 + $0x90] sm:$0xff]
      %v1494 = vld [vmem:[%s356 + $0x98] sm:$0xff]
      %v1495 = vld [vmem:[%s356 + $0xa0] sm:$0xff]
      %v1496 = vld [vmem:[%s356 + $0xa8] sm:$0xff]
      %v1497 = vld [vmem:[%s356 + $0xb0] sm:$0xff]
      %v1498 = vld [vmem:[%s356 + $0xb8] sm:$0xff]
      %v1499 = vld [vmem:[%s356 + $0xc0] sm:$0xff]
      %v1500 = vld [vmem:[%s356 + $0xc8] sm:$0xff]
      %v1501 = vld [vmem:[%s356 + $0xd0] sm:$0xff]
      %v1502 = vld [vmem:[%s356 + $0xd8] sm:$0xff]
      %v1503 = vld [vmem:[%s356 + $0xe0] sm:$0xff]
      %v1504 = vld [vmem:[%s356 + $0xe8] sm:$0xff]
      %v1505 = vld [vmem:[%s356 + $0xf0] sm:$0xff]
      %v1506 = vld [vmem:[%s356 + $0xf8] sm:$0xff]
      %1539 = vrot.lane.b32.xlu0 %v1411, 4
      %v1540 = vpop.permute.xlu0 %1539
      %1541 = vrot.lane.b32.xlu0 %v1412, 4
      %v1542 = vpop.permute.xlu0 %1541
      %1543 = vrot.lane.b32.xlu0 %v1413, 4
      %v1544 = vpop.permute.xlu0 %1543
      %1545 = vrot.lane.b32.xlu0 %v1414, 4
      %v1546 = vpop.permute.xlu0 %1545
      %1547 = vrot.lane.b32.xlu0 %v1415, 4
      %v1548 = vpop.permute.xlu0 %1547
      %1549 = vrot.lane.b32.xlu0 %v1416, 4
      %v1550 = vpop.permute.xlu0 %1549
      %1551 = vrot.lane.b32.xlu0 %v1417, 4
      %v1552 = vpop.permute.xlu0 %1551
      %1553 = vrot.lane.b32.xlu0 %v1418, 4
      %v1554 = vpop.permute.xlu0 %1553
      %1555 = vrot.lane.b32.xlu0 %v1419, 4
      %v1556 = vpop.permute.xlu0 %1555
      %1557 = vrot.lane.b32.xlu0 %v1420, 4
      %v1558 = vpop.permute.xlu0 %1557
      %1559 = vrot.lane.b32.xlu0 %v1421, 4
      %v1560 = vpop.permute.xlu0 %1559
      %1561 = vrot.lane.b32.xlu0 %v1422, 4
      %v1562 = vpop.permute.xlu0 %1561
      %1563 = vrot.lane.b32.xlu0 %v1423, 4
      %v1564 = vpop.permute.xlu0 %1563
      %1565 = vrot.lane.b32.xlu0 %v1424, 4
      %v1566 = vpop.permute.xlu0 %1565
      %1567 = vrot.lane.b32.xlu0 %v1425, 4
      %v1568 = vpop.permute.xlu0 %1567
      %1569 = vrot.lane.b32.xlu0 %v1426, 4
      %v1570 = vpop.permute.xlu0 %1569
      %1571 = vrot.lane.b32.xlu0 %v1427, 4
      %v1572 = vpop.permute.xlu0 %1571
      %1573 = vrot.lane.b32.xlu0 %v1428, 4
      %v1574 = vpop.permute.xlu0 %1573
      %1575 = vrot.lane.b32.xlu0 %v1429, 4
      %v1576 = vpop.permute.xlu0 %1575
      %1577 = vrot.lane.b32.xlu0 %v1430, 4
      %v1578 = vpop.permute.xlu0 %1577
      %1579 = vrot.lane.b32.xlu0 %v1431, 4
      %v1580 = vpop.permute.xlu0 %1579
      %1581 = vrot.lane.b32.xlu0 %v1432, 4
      %v1582 = vpop.permute.xlu0 %1581
      %1583 = vrot.lane.b32.xlu0 %v1433, 4
      %v1584 = vpop.permute.xlu0 %1583
      %1585 = vrot.lane.b32.xlu0 %v1434, 4
      %v1586 = vpop.permute.xlu0 %1585
      %1587 = vrot.lane.b32.xlu0 %v1435, 4
      %v1588 = vpop.permute.xlu0 %1587
      %1589 = vrot.lane.b32.xlu0 %v1436, 4
      %v1590 = vpop.permute.xlu0 %1589
      %1591 = vrot.lane.b32.xlu0 %v1437, 4
      %v1592 = vpop.permute.xlu0 %1591
      %1593 = vrot.lane.b32.xlu0 %v1438, 4
      %v1594 = vpop.permute.xlu0 %1593
      %1595 = vrot.lane.b32.xlu0 %v1439, 4
      %v1596 = vpop.permute.xlu0 %1595
      %1597 = vrot.lane.b32.xlu0 %v1440, 4
      %v1598 = vpop.permute.xlu0 %1597
      %1599 = vrot.lane.b32.xlu0 %v1441, 4
      %v1600 = vpop.permute.xlu0 %1599
      %1601 = vrot.lane.b32.xlu0 %v1442, 4
      %v1602 = vpop.permute.xlu0 %1601
      %1667 = vrot.lane.b32.xlu0 %v1443, 8
      %v1668 = vpop.permute.xlu0 %1667
      %1669 = vrot.lane.b32.xlu0 %v1444, 8
      %v1670 = vpop.permute.xlu0 %1669
      %1671 = vrot.lane.b32.xlu0 %v1445, 8
      %v1672 = vpop.permute.xlu0 %1671
      %1673 = vrot.lane.b32.xlu0 %v1446, 8
      %v1674 = vpop.permute.xlu0 %1673
      %1675 = vrot.lane.b32.xlu0 %v1447, 8
      %v1676 = vpop.permute.xlu0 %1675
      %1677 = vrot.lane.b32.xlu0 %v1448, 8
      %v1678 = vpop.permute.xlu0 %1677
      %1679 = vrot.lane.b32.xlu0 %v1449, 8
      %v1680 = vpop.permute.xlu0 %1679
      %1681 = vrot.lane.b32.xlu0 %v1450, 8
      %v1682 = vpop.permute.xlu0 %1681
      %1683 = vrot.lane.b32.xlu0 %v1451, 8
      %v1684 = vpop.permute.xlu0 %1683
      %1685 = vrot.lane.b32.xlu0 %v1452, 8
      %v1686 = vpop.permute.xlu0 %1685
      %1687 = vrot.lane.b32.xlu0 %v1453, 8
      %v1688 = vpop.permute.xlu0 %1687
      %1689 = vrot.lane.b32.xlu0 %v1454, 8
      %v1690 = vpop.permute.xlu0 %1689
      %1691 = vrot.lane.b32.xlu0 %v1455, 8
      %v1692 = vpop.permute.xlu0 %1691
      %1693 = vrot.lane.b32.xlu0 %v1456, 8
      %v1694 = vpop.permute.xlu0 %1693
      %1695 = vrot.lane.b32.xlu0 %v1457, 8
      %v1696 = vpop.permute.xlu0 %1695
      %1697 = vrot.lane.b32.xlu0 %v1458, 8
      %v1698 = vpop.permute.xlu0 %1697
      %1699 = vrot.lane.b32.xlu0 %v1459, 8
      %v1700 = vpop.permute.xlu0 %1699
      %1701 = vrot.lane.b32.xlu0 %v1460, 8
      %v1702 = vpop.permute.xlu0 %1701
      %1703 = vrot.lane.b32.xlu0 %v1461, 8
      %v1704 = vpop.permute.xlu0 %1703
      %1705 = vrot.lane.b32.xlu0 %v1462, 8
      %v1706 = vpop.permute.xlu0 %1705
      %1707 = vrot.lane.b32.xlu0 %v1463, 8
      %v1708 = vpop.permute.xlu0 %1707
      %1709 = vrot.lane.b32.xlu0 %v1464, 8
      %v1710 = vpop.permute.xlu0 %1709
      %1711 = vrot.lane.b32.xlu0 %v1465, 8
      %v1712 = vpop.permute.xlu0 %1711
      %1713 = vrot.lane.b32.xlu0 %v1466, 8
      %v1714 = vpop.permute.xlu0 %1713
      %1715 = vrot.lane.b32.xlu0 %v1467, 8
      %v1716 = vpop.permute.xlu0 %1715
      %1717 = vrot.lane.b32.xlu0 %v1468, 8
      %v1718 = vpop.permute.xlu0 %1717
      %1719 = vrot.lane.b32.xlu0 %v1469, 8
      %v1720 = vpop.permute.xlu0 %1719
      %1721 = vrot.lane.b32.xlu0 %v1470, 8
      %v1722 = vpop.permute.xlu0 %1721
      %1723 = vrot.lane.b32.xlu0 %v1471, 8
      %v1724 = vpop.permute.xlu0 %1723
      %1725 = vrot.lane.b32.xlu0 %v1472, 8
      %v1726 = vpop.permute.xlu0 %1725
      %1727 = vrot.lane.b32.xlu0 %v1473, 8
      %v1728 = vpop.permute.xlu0 %1727
      %1729 = vrot.lane.b32.xlu0 %v1474, 8
      %v1730 = vpop.permute.xlu0 %1729
      %1795 = vrot.lane.b32.xlu0 %v1475, 12
      %v1796 = vpop.permute.xlu0 %1795
      %1797 = vrot.lane.b32.xlu0 %v1476, 12
      %v1798 = vpop.permute.xlu0 %1797
      %1799 = vrot.lane.b32.xlu0 %v1477, 12
      %v1800 = vpop.permute.xlu0 %1799
      %1801 = vrot.lane.b32.xlu0 %v1478, 12
      %v1802 = vpop.permute.xlu0 %1801
      %1803 = vrot.lane.b32.xlu0 %v1479, 12
      %v1804 = vpop.permute.xlu0 %1803
      %1805 = vrot.lane.b32.xlu0 %v1480, 12
      %v1806 = vpop.permute.xlu0 %1805
      %1807 = vrot.lane.b32.xlu0 %v1481, 12
      %v1808 = vpop.permute.xlu0 %1807
      %1809 = vrot.lane.b32.xlu0 %v1482, 12
      %v1810 = vpop.permute.xlu0 %1809
      %1811 = vrot.lane.b32.xlu0 %v1483, 12
      %v1812 = vpop.permute.xlu0 %1811
      %1813 = vrot.lane.b32.xlu0 %v1484, 12
      %v1814 = vpop.permute.xlu0 %1813
      %1815 = vrot.lane.b32.xlu0 %v1485, 12
      %v1816 = vpop.permute.xlu0 %1815
      %1817 = vrot.lane.b32.xlu0 %v1486, 12
      %v1818 = vpop.permute.xlu0 %1817
      %1819 = vrot.lane.b32.xlu0 %v1487, 12
      %v1820 = vpop.permute.xlu0 %1819
      %1821 = vrot.lane.b32.xlu0 %v1488, 12
      %v1822 = vpop.permute.xlu0 %1821
      %1823 = vrot.lane.b32.xlu0 %v1489, 12
      %v1824 = vpop.permute.xlu0 %1823
      %1825 = vrot.lane.b32.xlu0 %v1490, 12
      %v1826 = vpop.permute.xlu0 %1825
      %1827 = vrot.lane.b32.xlu0 %v1491, 12
      %v1828 = vpop.permute.xlu0 %1827
      %1829 = vrot.lane.b32.xlu0 %v1492, 12
      %v1830 = vpop.permute.xlu0 %1829
      %1831 = vrot.lane.b32.xlu0 %v1493, 12
      %v1832 = vpop.permute.xlu0 %1831
      %1833 = vrot.lane.b32.xlu0 %v1494, 12
      %v1834 = vpop.permute.xlu0 %1833
      %1835 = vrot.lane.b32.xlu0 %v1495, 12
      %v1836 = vpop.permute.xlu0 %1835
      %1837 = vrot.lane.b32.xlu0 %v1496, 12
      %v1838 = vpop.permute.xlu0 %1837
      %1839 = vrot.lane.b32.xlu0 %v1497, 12
      %v1840 = vpop.permute.xlu0 %1839
      %1841 = vrot.lane.b32.xlu0 %v1498, 12
      %v1842 = vpop.permute.xlu0 %1841
      %1843 = vrot.lane.b32.xlu0 %v1499, 12
      %v1844 = vpop.permute.xlu0 %1843
      %1845 = vrot.lane.b32.xlu0 %v1500, 12
      %v1846 = vpop.permute.xlu0 %1845
      %1847 = vrot.lane.b32.xlu0 %v1501, 12
      %v1848 = vpop.permute.xlu0 %1847
      %1849 = vrot.lane.b32.xlu0 %v1502, 12
      %v1850 = vpop.permute.xlu0 %1849
      %1851 = vrot.lane.b32.xlu0 %v1503, 12
      %v1852 = vpop.permute.xlu0 %1851
      %1853 = vrot.lane.b32.xlu0 %v1504, 12
      %v1854 = vpop.permute.xlu0 %1853
      %1855 = vrot.lane.b32.xlu0 %v1505, 12
      %v1856 = vpop.permute.xlu0 %1855
      %1857 = vrot.lane.b32.xlu0 %v1506, 12
      %v1858 = vpop.permute.xlu0 %1857
      %v1891 = vsel %vm254, %v1379, %v1540
      %v1892 = vsel %vm254, %v1380, %v1542
      %v1893 = vsel %vm254, %v1381, %v1544
      %v1894 = vsel %vm254, %v1382, %v1546
      %v1895 = vsel %vm254, %v1383, %v1548
      %v1896 = vsel %vm254, %v1384, %v1550
      %v1897 = vsel %vm254, %v1385, %v1552
      %v1898 = vsel %vm254, %v1386, %v1554
      %v1899 = vsel %vm254, %v1387, %v1556
      %v1900 = vsel %vm254, %v1388, %v1558
      %v1901 = vsel %vm254, %v1389, %v1560
      %v1902 = vsel %vm254, %v1390, %v1562
      %v1903 = vsel %vm254, %v1391, %v1564
      %v1904 = vsel %vm254, %v1392, %v1566
      %v1905 = vsel %vm254, %v1393, %v1568
      %v1906 = vsel %vm254, %v1394, %v1570
      %v1907 = vsel %vm254, %v1395, %v1572
      %v1908 = vsel %vm254, %v1396, %v1574
      %v1909 = vsel %vm254, %v1397, %v1576
      %v1910 = vsel %vm254, %v1398, %v1578
      %v1911 = vsel %vm254, %v1399, %v1580
      %v1912 = vsel %vm254, %v1400, %v1582
      %v1913 = vsel %vm254, %v1401, %v1584
      %v1914 = vsel %vm254, %v1402, %v1586
      %v1915 = vsel %vm254, %v1403, %v1588
      %v1916 = vsel %vm254, %v1404, %v1590
      %v1917 = vsel %vm254, %v1405, %v1592
      %v1918 = vsel %vm254, %v1406, %v1594
      %v1919 = vsel %vm254, %v1407, %v1596
      %v1920 = vsel %vm254, %v1408, %v1598
      %v1921 = vsel %vm254, %v1409, %v1600
      %v1922 = vsel %vm254, %v1410, %v1602
      %v1923 = vsel %vm951, %v1891, %v1668
      %v1924 = vsel %vm951, %v1892, %v1670
      %v1925 = vsel %vm951, %v1893, %v1672
      %v1926 = vsel %vm951, %v1894, %v1674
      %v1927 = vsel %vm951, %v1895, %v1676
      %v1928 = vsel %vm951, %v1896, %v1678
      %v1929 = vsel %vm951, %v1897, %v1680
      %v1930 = vsel %vm951, %v1898, %v1682
      %v1931 = vsel %vm951, %v1899, %v1684
      %v1932 = vsel %vm951, %v1900, %v1686
      %v1933 = vsel %vm951, %v1901, %v1688
      %v1934 = vsel %vm951, %v1902, %v1690
      %v1935 = vsel %vm951, %v1903, %v1692
      %v1936 = vsel %vm951, %v1904, %v1694
      %v1937 = vsel %vm951, %v1905, %v1696
      %v1938 = vsel %vm951, %v1906, %v1698
      %v1939 = vsel %vm951, %v1907, %v1700
      %v1940 = vsel %vm951, %v1908, %v1702
      %v1941 = vsel %vm951, %v1909, %v1704
      %v1942 = vsel %vm951, %v1910, %v1706
      %v1943 = vsel %vm951, %v1911, %v1708
      %v1944 = vsel %vm951, %v1912, %v1710
      %v1945 = vsel %vm951, %v1913, %v1712
      %v1946 = vsel %vm951, %v1914, %v1714
      %v1947 = vsel %vm951, %v1915, %v1716
      %v1948 = vsel %vm951, %v1916, %v1718
      %v1949 = vsel %vm951, %v1917, %v1720
      %v1950 = vsel %vm951, %v1918, %v1722
      %v1951 = vsel %vm951, %v1919, %v1724
      %v1952 = vsel %vm951, %v1920, %v1726
      %v1953 = vsel %vm951, %v1921, %v1728
      %v1954 = vsel %vm951, %v1922, %v1730
      %v1955 = vsel %vm984, %v1923, %v1796
      %v1956 = vsel %vm984, %v1924, %v1798
      %v1957 = vsel %vm984, %v1925, %v1800
      %v1958 = vsel %vm984, %v1926, %v1802
      %v1959 = vsel %vm984, %v1927, %v1804
      %v1960 = vsel %vm984, %v1928, %v1806
      %v1961 = vsel %vm984, %v1929, %v1808
      %v1962 = vsel %vm984, %v1930, %v1810
      %v1963 = vsel %vm984, %v1931, %v1812
      %v1964 = vsel %vm984, %v1932, %v1814
      %v1965 = vsel %vm984, %v1933, %v1816
      %v1966 = vsel %vm984, %v1934, %v1818
      %v1967 = vsel %vm984, %v1935, %v1820
      %v1968 = vsel %vm984, %v1936, %v1822
      %v1969 = vsel %vm984, %v1937, %v1824
      %v1970 = vsel %vm984, %v1938, %v1826
      %v1971 = vsel %vm984, %v1939, %v1828
      %v1972 = vsel %vm984, %v1940, %v1830
      %v1973 = vsel %vm984, %v1941, %v1832
      %v1974 = vsel %vm984, %v1942, %v1834
      %v1975 = vsel %vm984, %v1943, %v1836
      %v1976 = vsel %vm984, %v1944, %v1838
      %v1977 = vsel %vm984, %v1945, %v1840
      %v1978 = vsel %vm984, %v1946, %v1842
      %v1979 = vsel %vm984, %v1947, %v1844
      %v1980 = vsel %vm984, %v1948, %v1846
      %v1981 = vsel %vm984, %v1949, %v1848
      %v1982 = vsel %vm984, %v1950, %v1850
      %v1983 = vsel %vm984, %v1951, %v1852
      %v1984 = vsel %vm984, %v1952, %v1854
      %v1985 = vsel %vm984, %v1953, %v1856
      %v1986 = vsel %vm984, %v1954, %v1858
      %s1987 = scalar_lea.vmem %s210, 16
      %v1988 = vld [vmem:[%s1987] sm:$0xff]
      %v1989 = vld [vmem:[%s1987 + $0x8] sm:$0xff]
      %v1991 = vsel %vm1025, %v1955, 0
      %v1994 = vsel %vm1025, %v1956, 0
      %v1997 = vsel %vm1025, %v1957, 0
      %v2000 = vsel %vm1025, %v1958, 0
      %v2003 = vsel %vm1025, %v1959, 0
      %v2006 = vsel %vm1025, %v1960, 0
      %v2009 = vsel %vm1025, %v1961, 0
      %v2012 = vsel %vm1025, %v1962, 0
      %v2015 = vsel %vm1025, %v1963, 0
      %v2018 = vsel %vm1025, %v1964, 0
      %v2021 = vsel %vm1025, %v1965, 0
      %v2024 = vsel %vm1025, %v1966, 0
      %v2027 = vsel %vm1025, %v1967, 0
      %v2030 = vsel %vm1025, %v1968, 0
      %v2033 = vsel %vm1025, %v1969, 0
      %v2036 = vsel %vm1025, %v1970, 0
      %v2039 = vsel %vm1025, %v1971, 0
      %v2042 = vsel %vm1025, %v1972, 0
      %v2045 = vsel %vm1025, %v1973, 0
      %v2048 = vsel %vm1025, %v1974, 0
      %v2051 = vsel %vm1025, %v1975, 0
      %v2054 = vsel %vm1025, %v1976, 0
      %v2057 = vsel %vm1025, %v1977, 0
      %v2060 = vsel %vm1025, %v1978, 0
      %v2063 = vsel %vm1025, %v1979, 0
      %v2066 = vsel %vm1025, %v1980, 0
      %v2069 = vsel %vm1025, %v1981, 0
      %v2072 = vsel %vm1025, %v1982, 0
      %v2075 = vsel %vm1025, %v1983, 0
      %v2078 = vsel %vm1025, %v1984, 0
      %v2081 = vsel %vm1025, %v1985, 0
      %v2084 = vsel %vm1025, %v1986, 0
      %2086 = vmatprep.subr.mxu0 0.0
      %2087 = vmatpush1.msra.mxu0 %v1988
      %2088 = vmatprep.subr.mxu0 0.0
      %2089 = vmatpush1.msra.mxu0 %v1989
      %2090 = vmatprep.subr.mxu0 0.0
      %2091 = vmatpush1.msra.mxu0 0.0
      %2092 = vmatprep.subr.mxu0 0.0
      %2093 = vmatpush1.msra.mxu0 0.0
      %2094 = vmatprep.subr.mxu0 0.0
      %2095 = vmatpush1.msra.mxu0 0.0
      %2096 = vmatprep.subr.mxu0 0.0
      %2097 = vmatpush1.msra.mxu0 0.0
      %2098 = vmatprep.subr.mxu0 0.0
      %2099 = vmatpush1.msra.mxu0 0.0
      %2100 = vmatprep.subr.mxu0 0.0
      %2101 = vmatpush1.msra.mxu0 0.0
      %2102 = vmatprep.subr.mxu0 0.0
      %2103 = vmatpush1.msra.mxu0 0.0
      %2104 = vmatprep.subr.mxu0 0.0
      %2105 = vmatpush1.msra.mxu0 0.0
      %2106 = vmatprep.subr.mxu0 0.0
      %2107 = vmatpush1.msra.mxu0 0.0
      %2108 = vmatprep.subr.mxu0 0.0
      %2109 = vmatpush1.msra.mxu0 0.0
      %2110 = vmatprep.subr.mxu0 0.0
      %2111 = vmatpush1.msra.mxu0 0.0
      %2112 = vmatprep.subr.mxu0 0.0
      %2113 = vmatpush1.msra.mxu0 0.0
      %2114 = vmatprep.subr.mxu0 0.0
      %2115 = vmatpush1.msra.mxu0 0.0
      %2116 = vmatprep.subr.mxu0 0.0
      %2117 = vmatpush1.msra.mxu0 0.0
      %2118 = vmatprep.subr.mxu0 0.0
      %2119 = vmatpush1.msra.mxu0 0.0
      %2120 = vmatprep.subr.mxu0 0.0
      %2121 = vmatpush1.msra.mxu0 0.0
      %2122 = vmatprep.subr.mxu0 0.0
      %2123 = vmatpush1.msra.mxu0 0.0
      %2124 = vmatprep.subr.mxu0 0.0
      %2125 = vmatpush1.msra.mxu0 0.0
      %2126 = vmatprep.subr.mxu0 0.0
      %2127 = vmatpush1.msra.mxu0 0.0
      %2128 = vmatprep.subr.mxu0 0.0
      %2129 = vmatpush1.msra.mxu0 0.0
      %2130 = vmatprep.subr.mxu0 0.0
      %2131 = vmatpush1.msra.mxu0 0.0
      %2132 = vmatprep.subr.mxu0 0.0
      %2133 = vmatpush1.msra.mxu0 0.0
      %2134 = vmatprep.subr.mxu0 0.0
      %2135 = vmatpush1.msra.mxu0 0.0
      %2136 = vmatprep.subr.mxu0 0.0
      %2137 = vmatpush1.msra.mxu0 0.0
      %2138 = vmatprep.subr.mxu0 0.0
      %2139 = vmatpush1.msra.mxu0 0.0
      %2140 = vmatprep.subr.mxu0 0.0
      %2141 = vmatpush1.msra.mxu0 0.0
      %2142 = vmatprep.subr.mxu0 0.0
      %2143 = vmatpush1.msra.mxu0 0.0
      %2144 = vmatprep.subr.mxu0 0.0
      %2145 = vmatpush1.msra.mxu0 0.0
      %2146 = vmatprep.subr.mxu0 0.0
      %2147 = vmatpush1.msra.mxu0 0.0
      %2148 = vmatprep.subr.mxu0 0.0
      %2149 = vmatpush1.msra.mxu0 0.0
      %2150 = vmatprep.mubr.f32.mxu0 0.0
      %2151 = vmatmul.mubr.f32.gmra.mrb[0].mxu0 %v1991
      %v2152 = vpop.f32.mrb[0].mxu0
      %v2153 = vadd.f32 %v1023, %v2152
      %v2154 = vpop.f32.mrb[0].mxu0
      %2155 = vmatprep.mubr.f32.mxu0 0.0
      %2156 = vmatmul.mubr.f32.gmra.mrb[0].mxu0 %v1994
      %v2157 = vpop.f32.mrb[0].mxu0
      %v2158 = vadd.f32 %v1023, %v2157
      %v2159 = vpop.f32.mrb[0].mxu0
      %2160 = vmatprep.mubr.f32.mxu0 0.0
      %2161 = vmatmul.mubr.f32.gmra.mrb[0].mxu0 %v1997
      %v2162 = vpop.f32.mrb[0].mxu0
      %v2163 = vadd.f32 %v1023, %v2162
      %v2164 = vpop.f32.mrb[0].mxu0
      %2165 = vmatprep.mubr.f32.mxu0 0.0
      %2166 = vmatmul.mubr.f32.gmra.mrb[0].mxu0 %v2000
      %v2167 = vpop.f32.mrb[0].mxu0
      %v2168 = vadd.f32 %v1023, %v2167
      %v2169 = vpop.f32.mrb[0].mxu0
      %2170 = vmatprep.mubr.f32.mxu0 0.0
      %2171 = vmatmul.mubr.f32.gmra.mrb[0].mxu0 %v2003
      %v2172 = vpop.f32.mrb[0].mxu0
      %v2173 = vadd.f32 %v1023, %v2172
      %v2174 = vpop.f32.mrb[0].mxu0
      %2175 = vmatprep.mubr.f32.mxu0 0.0
      %2176 = vmatmul.mubr.f32.gmra.mrb[0].mxu0 %v2006
      %v2177 = vpop.f32.mrb[0].mxu0
      %v2178 = vadd.f32 %v1023, %v2177
      %v2179 = vpop.f32.mrb[0].mxu0
      %2180 = vmatprep.mubr.f32.mxu0 0.0
      %2181 = vmatmul.mubr.f32.gmra.mrb[0].mxu0 %v2009
      %v2182 = vpop.f32.mrb[0].mxu0
      %v2183 = vadd.f32 %v1023, %v2182
      %v2184 = vpop.f32.mrb[0].mxu0
      %2185 = vmatprep.mubr.f32.mxu0 0.0
      %2186 = vmatmul.mubr.f32.gmra.mrb[0].mxu0 %v2012
      %v2187 = vpop.f32.mrb[0].mxu0
      %v2188 = vadd.f32 %v1023, %v2187
      %v2189 = vpop.f32.mrb[0].mxu0
      %2190 = vmatprep.mubr.f32.mxu0 0.0
      %2191 = vmatmul.mubr.f32.gmra.mrb[0].mxu0 %v2015
      %v2192 = vpop.f32.mrb[0].mxu0
      %v2193 = vadd.f32 %v1023, %v2192
      %v2194 = vpop.f32.mrb[0].mxu0
      %2195 = vmatprep.mubr.f32.mxu0 0.0
      %2196 = vmatmul.mubr.f32.gmra.mrb[0].mxu0 %v2018
      %v2197 = vpop.f32.mrb[0].mxu0
      %v2198 = vadd.f32 %v1023, %v2197
      %v2199 = vpop.f32.mrb[0].mxu0
      %2200 = vmatprep.mubr.f32.mxu0 0.0
      %2201 = vmatmul.mubr.f32.gmra.mrb[0].mxu0 %v2021
      %v2202 = vpop.f32.mrb[0].mxu0
      %v2203 = vadd.f32 %v1023, %v2202
      %v2204 = vpop.f32.mrb[0].mxu0
      %2205 = vmatprep.mubr.f32.mxu0 0.0
      %2206 = vmatmul.mubr.f32.gmra.mrb[0].mxu0 %v2024
      %v2207 = vpop.f32.mrb[0].mxu0
      %v2208 = vadd.f32 %v1023, %v2207
      %v2209 = vpop.f32.mrb[0].mxu0
      %2210 = vmatprep.mubr.f32.mxu0 0.0
      %2211 = vmatmul.mubr.f32.gmra.mrb[0].mxu0 %v2027
      %v2212 = vpop.f32.mrb[0].mxu0
      %v2213 = vadd.f32 %v1023, %v2212
      %v2214 = vpop.f32.mrb[0].mxu0
      %2215 = vmatprep.mubr.f32.mxu0 0.0
      %2216 = vmatmul.mubr.f32.gmra.mrb[0].mxu0 %v2030
      %v2217 = vpop.f32.mrb[0].mxu0
      %v2218 = vadd.f32 %v1023, %v2217
      %v2219 = vpop.f32.mrb[0].mxu0
      %2220 = vmatprep.mubr.f32.mxu0 0.0
      %2221 = vmatmul.mubr.f32.gmra.mrb[0].mxu0 %v2033
      %v2222 = vpop.f32.mrb[0].mxu0
      %v2223 = vadd.f32 %v1023, %v2222
      %v2224 = vpop.f32.mrb[0].mxu0
      %2225 = vmatprep.mubr.f32.mxu0 0.0
      %2226 = vmatmul.mubr.f32.gmra.mrb[0].mxu0 %v2036
      %v2227 = vpop.f32.mrb[0].mxu0
      %v2228 = vadd.f32 %v1023, %v2227
      %v2229 = vpop.f32.mrb[0].mxu0
      %2230 = vmatprep.mubr.f32.mxu0 0.0
      %2231 = vmatmul.mubr.f32.gmra.mrb[0].mxu0 %v2039
      %v2232 = vpop.f32.mrb[0].mxu0
      %v2233 = vadd.f32 %v1023, %v2232
      %v2234 = vpop.f32.mrb[0].mxu0
      %2235 = vmatprep.mubr.f32.mxu0 0.0
      %2236 = vmatmul.mubr.f32.gmra.mrb[0].mxu0 %v2042
      %v2237 = vpop.f32.mrb[0].mxu0
      %v2238 = vadd.f32 %v1023, %v2237
      %v2239 = vpop.f32.mrb[0].mxu0
      %2240 = vmatprep.mubr.f32.mxu0 0.0
      %2241 = vmatmul.mubr.f32.gmra.mrb[0].mxu0 %v2045
      %v2242 = vpop.f32.mrb[0].mxu0
      %v2243 = vadd.f32 %v1023, %v2242
      %v2244 = vpop.f32.mrb[0].mxu0
      %2245 = vmatprep.mubr.f32.mxu0 0.0
      %2246 = vmatmul.mubr.f32.gmra.mrb[0].mxu0 %v2048
      %v2247 = vpop.f32.mrb[0].mxu0
      %v2248 = vadd.f32 %v1023, %v2247
      %v2249 = vpop.f32.mrb[0].mxu0
      %2250 = vmatprep.mubr.f32.mxu0 0.0
      %2251 = vmatmul.mubr.f32.gmra.mrb[0].mxu0 %v2051
      %v2252 = vpop.f32.mrb[0].mxu0
      %v2253 = vadd.f32 %v1023, %v2252
      %v2254 = vpop.f32.mrb[0].mxu0
      %2255 = vmatprep.mubr.f32.mxu0 0.0
      %2256 = vmatmul.mubr.f32.gmra.mrb[0].mxu0 %v2054
      %v2257 = vpop.f32.mrb[0].mxu0
      %v2258 = vadd.f32 %v1023, %v2257
      %v2259 = vpop.f32.mrb[0].mxu0
      %2260 = vmatprep.mubr.f32.mxu0 0.0
      %2261 = vmatmul.mubr.f32.gmra.mrb[0].mxu0 %v2057
      %v2262 = vpop.f32.mrb[0].mxu0
      %v2263 = vadd.f32 %v1023, %v2262
      %v2264 = vpop.f32.mrb[0].mxu0
      %2265 = vmatprep.mubr.f32.mxu0 0.0
      %2266 = vmatmul.mubr.f32.gmra.mrb[0].mxu0 %v2060
      %v2267 = vpop.f32.mrb[0].mxu0
      %v2268 = vadd.f32 %v1023, %v2267
      %v2269 = vpop.f32.mrb[0].mxu0
      %2270 = vmatprep.mubr.f32.mxu0 0.0
      %2271 = vmatmul.mubr.f32.gmra.mrb[0].mxu0 %v2063
      %v2272 = vpop.f32.mrb[0].mxu0
      %v2273 = vadd.f32 %v1023, %v2272
      %v2274 = vpop.f32.mrb[0].mxu0
      %2275 = vmatprep.mubr.f32.mxu0 0.0
      %2276 = vmatmul.mubr.f32.gmra.mrb[0].mxu0 %v2066
      %v2277 = vpop.f32.mrb[0].mxu0
      %v2278 = vadd.f32 %v1023, %v2277
      %v2279 = vpop.f32.mrb[0].mxu0
      %2280 = vmatprep.mubr.f32.mxu0 0.0
      %2281 = vmatmul.mubr.f32.gmra.mrb[0].mxu0 %v2069
      %v2282 = vpop.f32.mrb[0].mxu0
      %v2283 = vadd.f32 %v1023, %v2282
      %v2284 = vpop.f32.mrb[0].mxu0
      %2285 = vmatprep.mubr.f32.mxu0 0.0
      %2286 = vmatmul.mubr.f32.gmra.mrb[0].mxu0 %v2072
      %v2287 = vpop.f32.mrb[0].mxu0
      %v2288 = vadd.f32 %v1023, %v2287
      %v2289 = vpop.f32.mrb[0].mxu0
      %2290 = vmatprep.mubr.f32.mxu0 0.0
      %2291 = vmatmul.mubr.f32.gmra.mrb[0].mxu0 %v2075
      %v2292 = vpop.f32.mrb[0].mxu0
      %v2293 = vadd.f32 %v1023, %v2292
      %v2294 = vpop.f32.mrb[0].mxu0
      %2295 = vmatprep.mubr.f32.mxu0 0.0
      %2296 = vmatmul.mubr.f32.gmra.mrb[0].mxu0 %v2078
      %v2297 = vpop.f32.mrb[0].mxu0
      %v2298 = vadd.f32 %v1023, %v2297
      %v2299 = vpop.f32.mrb[0].mxu0
      %2300 = vmatprep.mubr.f32.mxu0 0.0
      %2301 = vmatmul.mubr.f32.gmra.mrb[0].mxu0 %v2081
      %v2302 = vpop.f32.mrb[0].mxu0
      %v2303 = vadd.f32 %v1023, %v2302
      %v2304 = vpop.f32.mrb[0].mxu0
      %2305 = vmatprep.mubr.f32.mxu0 0.0
      %2306 = vmatmul.mubr.f32.gmra.mrb[0].mxu0 %v2084
      %v2307 = vpop.f32.mrb[0].mxu0
      %v2308 = vadd.f32 %v1023, %v2307
      %v2309 = vpop.f32.mrb[0].mxu0
      %2310 = vdwg.mxu0
      %s2311 = scalar_lea.vmem %s221, 16
      %2312 = vst.msk [vmem:[%s2311] sm:$0xff] %vm254, %v2153
      %2313 = vst.msk [vmem:[%s2311 + $0x8] sm:$0xff] %vm254, %v2158
      %2314 = vst.msk [vmem:[%s2311 + $0x40] sm:$0xff] %vm254, %v2163
      %2315 = vst.msk [vmem:[%s2311 + $0x48] sm:$0xff] %vm254, %v2168
      %2316 = vst.msk [vmem:[%s2311 + $0x80] sm:$0xff] %vm254, %v2173
      %2317 = vst.msk [vmem:[%s2311 + $0x88] sm:$0xff] %vm254, %v2178
      %2318 = vst.msk [vmem:[%s2311 + $0xc0] sm:$0xff] %vm254, %v2183
      %2319 = vst.msk [vmem:[%s2311 + $0xc8] sm:$0xff] %vm254, %v2188
      %2320 = vst.msk [vmem:[%s2311 + $0x100] sm:$0xff] %vm254, %v2193
      %2321 = vst.msk [vmem:[%s2311 + $0x108] sm:$0xff] %vm254, %v2198
      %2322 = vst.msk [vmem:[%s2311 + $0x140] sm:$0xff] %vm254, %v2203
      %2323 = vst.msk [vmem:[%s2311 + $0x148] sm:$0xff] %vm254, %v2208
      %2324 = vst.msk [vmem:[%s2311 + $0x180] sm:$0xff] %vm254, %v2213
      %2325 = vst.msk [vmem:[%s2311 + $0x188] sm:$0xff] %vm254, %v2218
      %2326 = vst.msk [vmem:[%s2311 + $0x1c0] sm:$0xff] %vm254, %v2223
      %2327 = vst.msk [vmem:[%s2311 + $0x1c8] sm:$0xff] %vm254, %v2228
      %2328 = vst.msk [vmem:[%s2311 + $0x200] sm:$0xff] %vm254, %v2233
      %2329 = vst.msk [vmem:[%s2311 + $0x208] sm:$0xff] %vm254, %v2238
      %2330 = vst.msk [vmem:[%s2311 + $0x240] sm:$0xff] %vm254, %v2243
      %2331 = vst.msk [vmem:[%s2311 + $0x248] sm:$0xff] %vm254, %v2248
      %2332 = vst.msk [vmem:[%s2311 + $0x280] sm:$0xff] %vm254, %v2253
      %2333 = vst.msk [vmem:[%s2311 + $0x288] sm:$0xff] %vm254, %v2258
      %2334 = vst.msk [vmem:[%s2311 + $0x2c0] sm:$0xff] %vm254, %v2263
      %2335 = vst.msk [vmem:[%s2311 + $0x2c8] sm:$0xff] %vm254, %v2268
      %2336 = vst.msk [vmem:[%s2311 + $0x300] sm:$0xff] %vm254, %v2273
      %2337 = vst.msk [vmem:[%s2311 + $0x308] sm:$0xff] %vm254, %v2278
      %2338 = vst.msk [vmem:[%s2311 + $0x340] sm:$0xff] %vm254, %v2283
      %2339 = vst.msk [vmem:[%s2311 + $0x348] sm:$0xff] %vm254, %v2288
      %2340 = vst.msk [vmem:[%s2311 + $0x380] sm:$0xff] %vm254, %v2293
      %2341 = vst.msk [vmem:[%s2311 + $0x388] sm:$0xff] %vm254, %v2298
      %2342 = vst.msk [vmem:[%s2311 + $0x3c0] sm:$0xff] %vm254, %v2303
      %2343 = vst.msk [vmem:[%s2311 + $0x3c8] sm:$0xff] %vm254, %v2308
      %v2344 = vld [vmem:[%s305] sm:$0xff]
      %v2345 = vld [vmem:[%s305 + $0x8] sm:$0xff]
      %v2346 = vld [vmem:[%s305 + $0x10] sm:$0xff]
      %v2347 = vld [vmem:[%s305 + $0x18] sm:$0xff]
      %v2348 = vld [vmem:[%s305 + $0x20] sm:$0xff]
      %v2349 = vld [vmem:[%s305 + $0x28] sm:$0xff]
      %v2350 = vld [vmem:[%s305 + $0x30] sm:$0xff]
      %v2351 = vld [vmem:[%s305 + $0x38] sm:$0xff]
      %v2352 = vld [vmem:[%s305 + $0x40] sm:$0xff]
      %v2353 = vld [vmem:[%s305 + $0x48] sm:$0xff]
      %v2354 = vld [vmem:[%s305 + $0x50] sm:$0xff]
      %v2355 = vld [vmem:[%s305 + $0x58] sm:$0xff]
      %v2356 = vld [vmem:[%s305 + $0x60] sm:$0xff]
      %v2357 = vld [vmem:[%s305 + $0x68] sm:$0xff]
      %v2358 = vld [vmem:[%s305 + $0x70] sm:$0xff]
      %v2359 = vld [vmem:[%s305 + $0x78] sm:$0xff]
      %v2360 = vld [vmem:[%s305 + $0x80] sm:$0xff]
      %v2361 = vld [vmem:[%s305 + $0x88] sm:$0xff]
      %v2362 = vld [vmem:[%s305 + $0x90] sm:$0xff]
      %v2363 = vld [vmem:[%s305 + $0x98] sm:$0xff]
      %v2364 = vld [vmem:[%s305 + $0xa0] sm:$0xff]
      %v2365 = vld [vmem:[%s305 + $0xa8] sm:$0xff]
      %v2366 = vld [vmem:[%s305 + $0xb0] sm:$0xff]
      %v2367 = vld [vmem:[%s305 + $0xb8] sm:$0xff]
      %v2368 = vld [vmem:[%s305 + $0xc0] sm:$0xff]
      %v2369 = vld [vmem:[%s305 + $0xc8] sm:$0xff]
      %v2370 = vld [vmem:[%s305 + $0xd0] sm:$0xff]
      %v2371 = vld [vmem:[%s305 + $0xd8] sm:$0xff]
      %v2372 = vld [vmem:[%s305 + $0xe0] sm:$0xff]
      %v2373 = vld [vmem:[%s305 + $0xe8] sm:$0xff]
      %v2374 = vld [vmem:[%s305 + $0xf0] sm:$0xff]
      %v2375 = vld [vmem:[%s305 + $0xf8] sm:$0xff]
      %v2376 = vld [vmem:[%s272] sm:$0xff]
      %v2377 = vld [vmem:[%s272 + $0x8] sm:$0xff]
      %v2378 = vld [vmem:[%s272 + $0x10] sm:$0xff]
      %v2379 = vld [vmem:[%s272 + $0x18] sm:$0xff]
      %v2380 = vld [vmem:[%s272 + $0x20] sm:$0xff]
      %v2381 = vld [vmem:[%s272 + $0x28] sm:$0xff]
      %v2382 = vld [vmem:[%s272 + $0x30] sm:$0xff]
      %v2383 = vld [vmem:[%s272 + $0x38] sm:$0xff]
      %v2384 = vld [vmem:[%s272 + $0x40] sm:$0xff]
      %v2385 = vld [vmem:[%s272 + $0x48] sm:$0xff]
      %v2386 = vld [vmem:[%s272 + $0x50] sm:$0xff]
      %v2387 = vld [vmem:[%s272 + $0x58] sm:$0xff]
      %v2388 = vld [vmem:[%s272 + $0x60] sm:$0xff]
      %v2389 = vld [vmem:[%s272 + $0x68] sm:$0xff]
      %v2390 = vld [vmem:[%s272 + $0x70] sm:$0xff]
      %v2391 = vld [vmem:[%s272 + $0x78] sm:$0xff]
      %v2392 = vld [vmem:[%s272 + $0x80] sm:$0xff]
      %v2393 = vld [vmem:[%s272 + $0x88] sm:$0xff]
      %v2394 = vld [vmem:[%s272 + $0x90] sm:$0xff]
      %v2395 = vld [vmem:[%s272 + $0x98] sm:$0xff]
      %v2396 = vld [vmem:[%s272 + $0xa0] sm:$0xff]
      %v2397 = vld [vmem:[%s272 + $0xa8] sm:$0xff]
      %v2398 = vld [vmem:[%s272 + $0xb0] sm:$0xff]
      %v2399 = vld [vmem:[%s272 + $0xb8] sm:$0xff]
      %v2400 = vld [vmem:[%s272 + $0xc0] sm:$0xff]
      %v2401 = vld [vmem:[%s272 + $0xc8] sm:$0xff]
      %v2402 = vld [vmem:[%s272 + $0xd0] sm:$0xff]
      %v2403 = vld [vmem:[%s272 + $0xd8] sm:$0xff]
      %v2404 = vld [vmem:[%s272 + $0xe0] sm:$0xff]
      %v2405 = vld [vmem:[%s272 + $0xe8] sm:$0xff]
      %v2406 = vld [vmem:[%s272 + $0xf0] sm:$0xff]
      %v2407 = vld [vmem:[%s272 + $0xf8] sm:$0xff]
      %s2408 = scalar_lea.vmem [#allocation2], 32
      %v2409 = vld [vmem:[%s2408] sm:$0xff]
      %v2410 = vld [vmem:[%s2408 + $0x8] sm:$0xff]
      %v2411 = vld [vmem:[%s2408 + $0x10] sm:$0xff]
      %v2412 = vld [vmem:[%s2408 + $0x18] sm:$0xff]
      %v2413 = vld [vmem:[%s2408 + $0x20] sm:$0xff]
      %v2414 = vld [vmem:[%s2408 + $0x28] sm:$0xff]
      %v2415 = vld [vmem:[%s2408 + $0x30] sm:$0xff]
      %v2416 = vld [vmem:[%s2408 + $0x38] sm:$0xff]
      %v2417 = vld [vmem:[%s2408 + $0x40] sm:$0xff]
      %v2418 = vld [vmem:[%s2408 + $0x48] sm:$0xff]
      %v2419 = vld [vmem:[%s2408 + $0x50] sm:$0xff]
      %v2420 = vld [vmem:[%s2408 + $0x58] sm:$0xff]
      %v2421 = vld [vmem:[%s2408 + $0x60] sm:$0xff]
      %v2422 = vld [vmem:[%s2408 + $0x68] sm:$0xff]
      %v2423 = vld [vmem:[%s2408 + $0x70] sm:$0xff]
      %v2424 = vld [vmem:[%s2408 + $0x78] sm:$0xff]
      %v2425 = vld [vmem:[%s2408 + $0x80] sm:$0xff]
      %v2426 = vld [vmem:[%s2408 + $0x88] sm:$0xff]
      %v2427 = vld [vmem:[%s2408 + $0x90] sm:$0xff]
      %v2428 = vld [vmem:[%s2408 + $0x98] sm:$0xff]
      %v2429 = vld [vmem:[%s2408 + $0xa0] sm:$0xff]
      %v2430 = vld [vmem:[%s2408 + $0xa8] sm:$0xff]
      %v2431 = vld [vmem:[%s2408 + $0xb0] sm:$0xff]
      %v2432 = vld [vmem:[%s2408 + $0xb8] sm:$0xff]
      %v2433 = vld [vmem:[%s2408 + $0xc0] sm:$0xff]
      %v2434 = vld [vmem:[%s2408 + $0xc8] sm:$0xff]
      %v2435 = vld [vmem:[%s2408 + $0xd0] sm:$0xff]
      %v2436 = vld [vmem:[%s2408 + $0xd8] sm:$0xff]
      %v2437 = vld [vmem:[%s2408 + $0xe0] sm:$0xff]
      %v2438 = vld [vmem:[%s2408 + $0xe8] sm:$0xff]
      %v2439 = vld [vmem:[%s2408 + $0xf0] sm:$0xff]
      %v2440 = vld [vmem:[%s2408 + $0xf8] sm:$0xff]
      %s2441 = scalar_lea.vmem [#allocation2], 320
      %v2442 = vld [vmem:[%s2441] sm:$0xff]
      %v2443 = vld [vmem:[%s2441 + $0x8] sm:$0xff]
      %v2444 = vld [vmem:[%s2441 + $0x10] sm:$0xff]
      %v2445 = vld [vmem:[%s2441 + $0x18] sm:$0xff]
      %v2446 = vld [vmem:[%s2441 + $0x20] sm:$0xff]
      %v2447 = vld [vmem:[%s2441 + $0x28] sm:$0xff]
      %v2448 = vld [vmem:[%s2441 + $0x30] sm:$0xff]
      %v2449 = vld [vmem:[%s2441 + $0x38] sm:$0xff]
      %v2450 = vld [vmem:[%s2441 + $0x40] sm:$0xff]
      %v2451 = vld [vmem:[%s2441 + $0x48] sm:$0xff]
      %v2452 = vld [vmem:[%s2441 + $0x50] sm:$0xff]
      %v2453 = vld [vmem:[%s2441 + $0x58] sm:$0xff]
      %v2454 = vld [vmem:[%s2441 + $0x60] sm:$0xff]
      %v2455 = vld [vmem:[%s2441 + $0x68] sm:$0xff]
      %v2456 = vld [vmem:[%s2441 + $0x70] sm:$0xff]
      %v2457 = vld [vmem:[%s2441 + $0x78] sm:$0xff]
      %v2458 = vld [vmem:[%s2441 + $0x80] sm:$0xff]
      %v2459 = vld [vmem:[%s2441 + $0x88] sm:$0xff]
      %v2460 = vld [vmem:[%s2441 + $0x90] sm:$0xff]
      %v2461 = vld [vmem:[%s2441 + $0x98] sm:$0xff]
      %v2462 = vld [vmem:[%s2441 + $0xa0] sm:$0xff]
      %v2463 = vld [vmem:[%s2441 + $0xa8] sm:$0xff]
      %v2464 = vld [vmem:[%s2441 + $0xb0] sm:$0xff]
      %v2465 = vld [vmem:[%s2441 + $0xb8] sm:$0xff]
      %v2466 = vld [vmem:[%s2441 + $0xc0] sm:$0xff]
      %v2467 = vld [vmem:[%s2441 + $0xc8] sm:$0xff]
      %v2468 = vld [vmem:[%s2441 + $0xd0] sm:$0xff]
      %v2469 = vld [vmem:[%s2441 + $0xd8] sm:$0xff]
      %v2470 = vld [vmem:[%s2441 + $0xe0] sm:$0xff]
      %v2471 = vld [vmem:[%s2441 + $0xe8] sm:$0xff]
      %v2472 = vld [vmem:[%s2441 + $0xf0] sm:$0xff]
      %v2473 = vld [vmem:[%s2441 + $0xf8] sm:$0xff]
      %2506 = vrot.lane.b32.xlu0 %v2376, 4
      %v2507 = vpop.permute.xlu0 %2506
      %2508 = vrot.lane.b32.xlu0 %v2377, 4
      %v2509 = vpop.permute.xlu0 %2508
      %2510 = vrot.lane.b32.xlu0 %v2378, 4
      %v2511 = vpop.permute.xlu0 %2510
      %2512 = vrot.lane.b32.xlu0 %v2379, 4
      %v2513 = vpop.permute.xlu0 %2512
      %2514 = vrot.lane.b32.xlu0 %v2380, 4
      %v2515 = vpop.permute.xlu0 %2514
      %2516 = vrot.lane.b32.xlu0 %v2381, 4
      %v2517 = vpop.permute.xlu0 %2516
      %2518 = vrot.lane.b32.xlu0 %v2382, 4
      %v2519 = vpop.permute.xlu0 %2518
      %2520 = vrot.lane.b32.xlu0 %v2383, 4
      %v2521 = vpop.permute.xlu0 %2520
      %2522 = vrot.lane.b32.xlu0 %v2384, 4
      %v2523 = vpop.permute.xlu0 %2522
      %2524 = vrot.lane.b32.xlu0 %v2385, 4
      %v2525 = vpop.permute.xlu0 %2524
      %2526 = vrot.lane.b32.xlu0 %v2386, 4
      %v2527 = vpop.permute.xlu0 %2526
      %2528 = vrot.lane.b32.xlu0 %v2387, 4
      %v2529 = vpop.permute.xlu0 %2528
      %2530 = vrot.lane.b32.xlu0 %v2388, 4
      %v2531 = vpop.permute.xlu0 %2530
      %2532 = vrot.lane.b32.xlu0 %v2389, 4
      %v2533 = vpop.permute.xlu0 %2532
      %2534 = vrot.lane.b32.xlu0 %v2390, 4
      %v2535 = vpop.permute.xlu0 %2534
      %2536 = vrot.lane.b32.xlu0 %v2391, 4
      %v2537 = vpop.permute.xlu0 %2536
      %2538 = vrot.lane.b32.xlu0 %v2392, 4
      %v2539 = vpop.permute.xlu0 %2538
      %2540 = vrot.lane.b32.xlu0 %v2393, 4
      %v2541 = vpop.permute.xlu0 %2540
      %2542 = vrot.lane.b32.xlu0 %v2394, 4
      %v2543 = vpop.permute.xlu0 %2542
      %2544 = vrot.lane.b32.xlu0 %v2395, 4
      %v2545 = vpop.permute.xlu0 %2544
      %2546 = vrot.lane.b32.xlu0 %v2396, 4
      %v2547 = vpop.permute.xlu0 %2546
      %2548 = vrot.lane.b32.xlu0 %v2397, 4
      %v2549 = vpop.permute.xlu0 %2548
      %2550 = vrot.lane.b32.xlu0 %v2398, 4
      %v2551 = vpop.permute.xlu0 %2550
      %2552 = vrot.lane.b32.xlu0 %v2399, 4
      %v2553 = vpop.permute.xlu0 %2552
      %2554 = vrot.lane.b32.xlu0 %v2400, 4
      %v2555 = vpop.permute.xlu0 %2554
      %2556 = vrot.lane.b32.xlu0 %v2401, 4
      %v2557 = vpop.permute.xlu0 %2556
      %2558 = vrot.lane.b32.xlu0 %v2402, 4
      %v2559 = vpop.permute.xlu0 %2558
      %2560 = vrot.lane.b32.xlu0 %v2403, 4
      %v2561 = vpop.permute.xlu0 %2560
      %2562 = vrot.lane.b32.xlu0 %v2404, 4
      %v2563 = vpop.permute.xlu0 %2562
      %2564 = vrot.lane.b32.xlu0 %v2405, 4
      %v2565 = vpop.permute.xlu0 %2564
      %2566 = vrot.lane.b32.xlu0 %v2406, 4
      %v2567 = vpop.permute.xlu0 %2566
      %2568 = vrot.lane.b32.xlu0 %v2407, 4
      %v2569 = vpop.permute.xlu0 %2568
      %2634 = vrot.lane.b32.xlu0 %v2409, 8
      %v2635 = vpop.permute.xlu0 %2634
      %2636 = vrot.lane.b32.xlu0 %v2410, 8
      %v2637 = vpop.permute.xlu0 %2636
      %2638 = vrot.lane.b32.xlu0 %v2411, 8
      %v2639 = vpop.permute.xlu0 %2638
      %2640 = vrot.lane.b32.xlu0 %v2412, 8
      %v2641 = vpop.permute.xlu0 %2640
      %2642 = vrot.lane.b32.xlu0 %v2413, 8
      %v2643 = vpop.permute.xlu0 %2642
      %2644 = vrot.lane.b32.xlu0 %v2414, 8
      %v2645 = vpop.permute.xlu0 %2644
      %2646 = vrot.lane.b32.xlu0 %v2415, 8
      %v2647 = vpop.permute.xlu0 %2646
      %2648 = vrot.lane.b32.xlu0 %v2416, 8
      %v2649 = vpop.permute.xlu0 %2648
      %2650 = vrot.lane.b32.xlu0 %v2417, 8
      %v2651 = vpop.permute.xlu0 %2650
      %2652 = vrot.lane.b32.xlu0 %v2418, 8
      %v2653 = vpop.permute.xlu0 %2652
      %2654 = vrot.lane.b32.xlu0 %v2419, 8
      %v2655 = vpop.permute.xlu0 %2654
      %2656 = vrot.lane.b32.xlu0 %v2420, 8
      %v2657 = vpop.permute.xlu0 %2656
      %2658 = vrot.lane.b32.xlu0 %v2421, 8
      %v2659 = vpop.permute.xlu0 %2658
      %2660 = vrot.lane.b32.xlu0 %v2422, 8
      %v2661 = vpop.permute.xlu0 %2660
      %2662 = vrot.lane.b32.xlu0 %v2423, 8
      %v2663 = vpop.permute.xlu0 %2662
      %2664 = vrot.lane.b32.xlu0 %v2424, 8
      %v2665 = vpop.permute.xlu0 %2664
      %2666 = vrot.lane.b32.xlu0 %v2425, 8
      %v2667 = vpop.permute.xlu0 %2666
      %2668 = vrot.lane.b32.xlu0 %v2426, 8
      %v2669 = vpop.permute.xlu0 %2668
      %2670 = vrot.lane.b32.xlu0 %v2427, 8
      %v2671 = vpop.permute.xlu0 %2670
      %2672 = vrot.lane.b32.xlu0 %v2428, 8
      %v2673 = vpop.permute.xlu0 %2672
      %2674 = vrot.lane.b32.xlu0 %v2429, 8
      %v2675 = vpop.permute.xlu0 %2674
      %2676 = vrot.lane.b32.xlu0 %v2430, 8
      %v2677 = vpop.permute.xlu0 %2676
      %2678 = vrot.lane.b32.xlu0 %v2431, 8
      %v2679 = vpop.permute.xlu0 %2678
      %2680 = vrot.lane.b32.xlu0 %v2432, 8
      %v2681 = vpop.permute.xlu0 %2680
      %2682 = vrot.lane.b32.xlu0 %v2433, 8
      %v2683 = vpop.permute.xlu0 %2682
      %2684 = vrot.lane.b32.xlu0 %v2434, 8
      %v2685 = vpop.permute.xlu0 %2684
      %2686 = vrot.lane.b32.xlu0 %v2435, 8
      %v2687 = vpop.permute.xlu0 %2686
      %2688 = vrot.lane.b32.xlu0 %v2436, 8
      %v2689 = vpop.permute.xlu0 %2688
      %2690 = vrot.lane.b32.xlu0 %v2437, 8
      %v2691 = vpop.permute.xlu0 %2690
      %2692 = vrot.lane.b32.xlu0 %v2438, 8
      %v2693 = vpop.permute.xlu0 %2692
      %2694 = vrot.lane.b32.xlu0 %v2439, 8
      %v2695 = vpop.permute.xlu0 %2694
      %2696 = vrot.lane.b32.xlu0 %v2440, 8
      %v2697 = vpop.permute.xlu0 %2696
      %2762 = vrot.lane.b32.xlu0 %v2442, 12
      %v2763 = vpop.permute.xlu0 %2762
      %2764 = vrot.lane.b32.xlu0 %v2443, 12
      %v2765 = vpop.permute.xlu0 %2764
      %2766 = vrot.lane.b32.xlu0 %v2444, 12
      %v2767 = vpop.permute.xlu0 %2766
      %2768 = vrot.lane.b32.xlu0 %v2445, 12
      %v2769 = vpop.permute.xlu0 %2768
      %2770 = vrot.lane.b32.xlu0 %v2446, 12
      %v2771 = vpop.permute.xlu0 %2770
      %2772 = vrot.lane.b32.xlu0 %v2447, 12
      %v2773 = vpop.permute.xlu0 %2772
      %2774 = vrot.lane.b32.xlu0 %v2448, 12
      %v2775 = vpop.permute.xlu0 %2774
      %2776 = vrot.lane.b32.xlu0 %v2449, 12
      %v2777 = vpop.permute.xlu0 %2776
      %2778 = vrot.lane.b32.xlu0 %v2450, 12
      %v2779 = vpop.permute.xlu0 %2778
      %2780 = vrot.lane.b32.xlu0 %v2451, 12
      %v2781 = vpop.permute.xlu0 %2780
      %2782 = vrot.lane.b32.xlu0 %v2452, 12
      %v2783 = vpop.permute.xlu0 %2782
      %2784 = vrot.lane.b32.xlu0 %v2453, 12
      %v2785 = vpop.permute.xlu0 %2784
      %2786 = vrot.lane.b32.xlu0 %v2454, 12
      %v2787 = vpop.permute.xlu0 %2786
      %2788 = vrot.lane.b32.xlu0 %v2455, 12
      %v2789 = vpop.permute.xlu0 %2788
      %2790 = vrot.lane.b32.xlu0 %v2456, 12
      %v2791 = vpop.permute.xlu0 %2790
      %2792 = vrot.lane.b32.xlu0 %v2457, 12
      %v2793 = vpop.permute.xlu0 %2792
      %2794 = vrot.lane.b32.xlu0 %v2458, 12
      %v2795 = vpop.permute.xlu0 %2794
      %2796 = vrot.lane.b32.xlu0 %v2459, 12
      %v2797 = vpop.permute.xlu0 %2796
      %2798 = vrot.lane.b32.xlu0 %v2460, 12
      %v2799 = vpop.permute.xlu0 %2798
      %2800 = vrot.lane.b32.xlu0 %v2461, 12
      %v2801 = vpop.permute.xlu0 %2800
      %2802 = vrot.lane.b32.xlu0 %v2462, 12
      %v2803 = vpop.permute.xlu0 %2802
      %2804 = vrot.lane.b32.xlu0 %v2463, 12
      %v2805 = vpop.permute.xlu0 %2804
      %2806 = vrot.lane.b32.xlu0 %v2464, 12
      %v2807 = vpop.permute.xlu0 %2806
      %2808 = vrot.lane.b32.xlu0 %v2465, 12
      %v2809 = vpop.permute.xlu0 %2808
      %2810 = vrot.lane.b32.xlu0 %v2466, 12
      %v2811 = vpop.permute.xlu0 %2810
      %2812 = vrot.lane.b32.xlu0 %v2467, 12
      %v2813 = vpop.permute.xlu0 %2812
      %2814 = vrot.lane.b32.xlu0 %v2468, 12
      %v2815 = vpop.permute.xlu0 %2814
      %2816 = vrot.lane.b32.xlu0 %v2469, 12
      %v2817 = vpop.permute.xlu0 %2816
      %2818 = vrot.lane.b32.xlu0 %v2470, 12
      %v2819 = vpop.permute.xlu0 %2818
      %2820 = vrot.lane.b32.xlu0 %v2471, 12
      %v2821 = vpop.permute.xlu0 %2820
      %2822 = vrot.lane.b32.xlu0 %v2472, 12
      %v2823 = vpop.permute.xlu0 %2822
      %2824 = vrot.lane.b32.xlu0 %v2473, 12
      %v2825 = vpop.permute.xlu0 %2824
      %v2858 = vsel %vm254, %v2344, %v2507
      %v2859 = vsel %vm254, %v2345, %v2509
      %v2860 = vsel %vm254, %v2346, %v2511
      %v2861 = vsel %vm254, %v2347, %v2513
      %v2862 = vsel %vm254, %v2348, %v2515
      %v2863 = vsel %vm254, %v2349, %v2517
      %v2864 = vsel %vm254, %v2350, %v2519
      %v2865 = vsel %vm254, %v2351, %v2521
      %v2866 = vsel %vm254, %v2352, %v2523
      %v2867 = vsel %vm254, %v2353, %v2525
      %v2868 = vsel %vm254, %v2354, %v2527
      %v2869 = vsel %vm254, %v2355, %v2529
      %v2870 = vsel %vm254, %v2356, %v2531
      %v2871 = vsel %vm254, %v2357, %v2533
      %v2872 = vsel %vm254, %v2358, %v2535
      %v2873 = vsel %vm254, %v2359, %v2537
      %v2874 = vsel %vm254, %v2360, %v2539
      %v2875 = vsel %vm254, %v2361, %v2541
      %v2876 = vsel %vm254, %v2362, %v2543
      %v2877 = vsel %vm254, %v2363, %v2545
      %v2878 = vsel %vm254, %v2364, %v2547
      %v2879 = vsel %vm254, %v2365, %v2549
      %v2880 = vsel %vm254, %v2366, %v2551
      %v2881 = vsel %vm254, %v2367, %v2553
      %v2882 = vsel %vm254, %v2368, %v2555
      %v2883 = vsel %vm254, %v2369, %v2557
      %v2884 = vsel %vm254, %v2370, %v2559
      %v2885 = vsel %vm254, %v2371, %v2561
      %v2886 = vsel %vm254, %v2372, %v2563
      %v2887 = vsel %vm254, %v2373, %v2565
      %v2888 = vsel %vm254, %v2374, %v2567
      %v2889 = vsel %vm254, %v2375, %v2569
      %v2890 = vsel %vm951, %v2858, %v2635
      %v2891 = vsel %vm951, %v2859, %v2637
      %v2892 = vsel %vm951, %v2860, %v2639
      %v2893 = vsel %vm951, %v2861, %v2641
      %v2894 = vsel %vm951, %v2862, %v2643
      %v2895 = vsel %vm951, %v2863, %v2645
      %v2896 = vsel %vm951, %v2864, %v2647
      %v2897 = vsel %vm951, %v2865, %v2649
      %v2898 = vsel %vm951, %v2866, %v2651
      %v2899 = vsel %vm951, %v2867, %v2653
      %v2900 = vsel %vm951, %v2868, %v2655
      %v2901 = vsel %vm951, %v2869, %v2657
      %v2902 = vsel %vm951, %v2870, %v2659
      %v2903 = vsel %vm951, %v2871, %v2661
      %v2904 = vsel %vm951, %v2872, %v2663
      %v2905 = vsel %vm951, %v2873, %v2665
      %v2906 = vsel %vm951, %v2874, %v2667
      %v2907 = vsel %vm951, %v2875, %v2669
      %v2908 = vsel %vm951, %v2876, %v2671
      %v2909 = vsel %vm951, %v2877, %v2673
      %v2910 = vsel %vm951, %v2878, %v2675
      %v2911 = vsel %vm951, %v2879, %v2677
      %v2912 = vsel %vm951, %v2880, %v2679
      %v2913 = vsel %vm951, %v2881, %v2681
      %v2914 = vsel %vm951, %v2882, %v2683
      %v2915 = vsel %vm951, %v2883, %v2685
      %v2916 = vsel %vm951, %v2884, %v2687
      %v2917 = vsel %vm951, %v2885, %v2689
      %v2918 = vsel %vm951, %v2886, %v2691
      %v2919 = vsel %vm951, %v2887, %v2693
      %v2920 = vsel %vm951, %v2888, %v2695
      %v2921 = vsel %vm951, %v2889, %v2697
      %v2922 = vsel %vm984, %v2890, %v2763
      %v2923 = vsel %vm984, %v2891, %v2765
      %v2924 = vsel %vm984, %v2892, %v2767
      %v2925 = vsel %vm984, %v2893, %v2769
      %v2926 = vsel %vm984, %v2894, %v2771
      %v2927 = vsel %vm984, %v2895, %v2773
      %v2928 = vsel %vm984, %v2896, %v2775
      %v2929 = vsel %vm984, %v2897, %v2777
      %v2930 = vsel %vm984, %v2898, %v2779
      %v2931 = vsel %vm984, %v2899, %v2781
      %v2932 = vsel %vm984, %v2900, %v2783
      %v2933 = vsel %vm984, %v2901, %v2785
      %v2934 = vsel %vm984, %v2902, %v2787
      %v2935 = vsel %vm984, %v2903, %v2789
      %v2936 = vsel %vm984, %v2904, %v2791
      %v2937 = vsel %vm984, %v2905, %v2793
      %v2938 = vsel %vm984, %v2906, %v2795
      %v2939 = vsel %vm984, %v2907, %v2797
      %v2940 = vsel %vm984, %v2908, %v2799
      %v2941 = vsel %vm984, %v2909, %v2801
      %v2942 = vsel %vm984, %v2910, %v2803
      %v2943 = vsel %vm984, %v2911, %v2805
      %v2944 = vsel %vm984, %v2912, %v2807
      %v2945 = vsel %vm984, %v2913, %v2809
      %v2946 = vsel %vm984, %v2914, %v2811
      %v2947 = vsel %vm984, %v2915, %v2813
      %v2948 = vsel %vm984, %v2916, %v2815
      %v2949 = vsel %vm984, %v2917, %v2817
      %v2950 = vsel %vm984, %v2918, %v2819
      %v2951 = vsel %vm984, %v2919, %v2821
      %v2952 = vsel %vm984, %v2920, %v2823
      %v2953 = vsel %vm984, %v2921, %v2825
      %s2954 = scalar_lea.vmem %s210, 32
      %v2955 = vld [vmem:[%s2954] sm:$0xff]
      %v2956 = vld [vmem:[%s2954 + $0x8] sm:$0xff]
      %v2958 = vsel %vm1025, %v2922, 0
      %v2961 = vsel %vm1025, %v2923, 0
      %v2964 = vsel %vm1025, %v2924, 0
      %v2967 = vsel %vm1025, %v2925, 0
      %v2970 = vsel %vm1025, %v2926, 0
      %v2973 = vsel %vm1025, %v2927, 0
      %v2976 = vsel %vm1025, %v2928, 0
      %v2979 = vsel %vm1025, %v2929, 0
      %v2982 = vsel %vm1025, %v2930, 0
      %v2985 = vsel %vm1025, %v2931, 0
      %v2988 = vsel %vm1025, %v2932, 0
      %v2991 = vsel %vm1025, %v2933, 0
      %v2994 = vsel %vm1025, %v2934, 0
      %v2997 = vsel %vm1025, %v2935, 0
      %v3000 = vsel %vm1025, %v2936, 0
      %v3003 = vsel %vm1025, %v2937, 0
      %v3006 = vsel %vm1025, %v2938, 0
      %v3009 = vsel %vm1025, %v2939, 0
      %v3012 = vsel %vm1025, %v2940, 0
      %v3015 = vsel %vm1025, %v2941, 0
      %v3018 = vsel %vm1025, %v2942, 0
      %v3021 = vsel %vm1025, %v2943, 0
      %v3024 = vsel %vm1025, %v2944, 0
      %v3027 = vsel %vm1025, %v2945, 0
      %v3030 = vsel %vm1025, %v2946, 0
      %v3033 = vsel %vm1025, %v2947, 0
      %v3036 = vsel %vm1025, %v2948, 0
      %v3039 = vsel %vm1025, %v2949, 0
      %v3042 = vsel %vm1025, %v2950, 0
      %v3045 = vsel %vm1025, %v2951, 0
      %v3048 = vsel %vm1025, %v2952, 0
      %v3051 = vsel %vm1025, %v2953, 0
      %3053 = vmatprep.subr.mxu0 0.0
      %3054 = vmatpush1.msra.mxu0 %v2955
      %3055 = vmatprep.subr.mxu0 0.0
      %3056 = vmatpush1.msra.mxu0 %v2956
      %3057 = vmatprep.subr.mxu0 0.0
      %3058 = vmatpush1.msra.mxu0 0.0
      %3059 = vmatprep.subr.mxu0 0.0
      %3060 = vmatpush1.msra.mxu0 0.0
      %3061 = vmatprep.subr.mxu0 0.0
      %3062 = vmatpush1.msra.mxu0 0.0
      %3063 = vmatprep.subr.mxu0 0.0
      %3064 = vmatpush1.msra.mxu0 0.0
      %3065 = vmatprep.subr.mxu0 0.0
      %3066 = vmatpush1.msra.mxu0 0.0
      %3067 = vmatprep.subr.mxu0 0.0
      %3068 = vmatpush1.msra.mxu0 0.0
      %3069 = vmatprep.subr.mxu0 0.0
      %3070 = vmatpush1.msra.mxu0 0.0
      %3071 = vmatprep.subr.mxu0 0.0
      %3072 = vmatpush1.msra.mxu0 0.0
      %3073 = vmatprep.subr.mxu0 0.0
      %3074 = vmatpush1.msra.mxu0 0.0
      %3075 = vmatprep.subr.mxu0 0.0
      %3076 = vmatpush1.msra.mxu0 0.0
      %3077 = vmatprep.subr.mxu0 0.0
      %3078 = vmatpush1.msra.mxu0 0.0
      %3079 = vmatprep.subr.mxu0 0.0
      %3080 = vmatpush1.msra.mxu0 0.0
      %3081 = vmatprep.subr.mxu0 0.0
      %3082 = vmatpush1.msra.mxu0 0.0
      %3083 = vmatprep.subr.mxu0 0.0
      %3084 = vmatpush1.msra.mxu0 0.0
      %3085 = vmatprep.subr.mxu0 0.0
      %3086 = vmatpush1.msra.mxu0 0.0
      %3087 = vmatprep.subr.mxu0 0.0
      %3088 = vmatpush1.msra.mxu0 0.0
      %3089 = vmatprep.subr.mxu0 0.0
      %3090 = vmatpush1.msra.mxu0 0.0
      %3091 = vmatprep.subr.mxu0 0.0
      %3092 = vmatpush1.msra.mxu0 0.0
      %3093 = vmatprep.subr.mxu0 0.0
      %3094 = vmatpush1.msra.mxu0 0.0
      %3095 = vmatprep.subr.mxu0 0.0
      %3096 = vmatpush1.msra.mxu0 0.0
      %3097 = vmatprep.subr.mxu0 0.0
      %3098 = vmatpush1.msra.mxu0 0.0
      %3099 = vmatprep.subr.mxu0 0.0
      %3100 = vmatpush1.msra.mxu0 0.0
      %3101 = vmatprep.subr.mxu0 0.0
      %3102 = vmatpush1.msra.mxu0 0.0
      %3103 = vmatprep.subr.mxu0 0.0
      %3104 = vmatpush1.msra.mxu0 0.0
      %3105 = vmatprep.subr.mxu0 0.0
      %3106 = vmatpush1.msra.mxu0 0.0
      %3107 = vmatprep.subr.mxu0 0.0
      %3108 = vmatpush1.msra.mxu0 0.0
      %3109 = vmatprep.subr.mxu0 0.0
      %3110 = vmatpush1.msra.mxu0 0.0
      %3111 = vmatprep.subr.mxu0 0.0
      %3112 = vmatpush1.msra.mxu0 0.0
      %3113 = vmatprep.subr.mxu0 0.0
      %3114 = vmatpush1.msra.mxu0 0.0
      %3115 = vmatprep.subr.mxu0 0.0
      %3116 = vmatpush1.msra.mxu0 0.0
      %3117 = vmatprep.mubr.f32.mxu0 0.0
      %3118 = vmatmul.mubr.f32.gmra.mrb[0].mxu0 %v2958
      %v3119 = vpop.f32.mrb[0].mxu0
      %v3120 = vadd.f32 %v1023, %v3119
      %v3121 = vpop.f32.mrb[0].mxu0
      %3122 = vmatprep.mubr.f32.mxu0 0.0
      %3123 = vmatmul.mubr.f32.gmra.mrb[0].mxu0 %v2961
      %v3124 = vpop.f32.mrb[0].mxu0
      %v3125 = vadd.f32 %v1023, %v3124
      %v3126 = vpop.f32.mrb[0].mxu0
      %3127 = vmatprep.mubr.f32.mxu0 0.0
      %3128 = vmatmul.mubr.f32.gmra.mrb[0].mxu0 %v2964
      %v3129 = vpop.f32.mrb[0].mxu0
      %v3130 = vadd.f32 %v1023, %v3129
      %v3131 = vpop.f32.mrb[0].mxu0
      %3132 = vmatprep.mubr.f32.mxu0 0.0
      %3133 = vmatmul.mubr.f32.gmra.mrb[0].mxu0 %v2967
      %v3134 = vpop.f32.mrb[0].mxu0
      %v3135 = vadd.f32 %v1023, %v3134
      %v3136 = vpop.f32.mrb[0].mxu0
      %3137 = vmatprep.mubr.f32.mxu0 0.0
      %3138 = vmatmul.mubr.f32.gmra.mrb[0].mxu0 %v2970
      %v3139 = vpop.f32.mrb[0].mxu0
      %v3140 = vadd.f32 %v1023, %v3139
      %v3141 = vpop.f32.mrb[0].mxu0
      %3142 = vmatprep.mubr.f32.mxu0 0.0
      %3143 = vmatmul.mubr.f32.gmra.mrb[0].mxu0 %v2973
      %v3144 = vpop.f32.mrb[0].mxu0
      %v3145 = vadd.f32 %v1023, %v3144
      %v3146 = vpop.f32.mrb[0].mxu0
      %3147 = vmatprep.mubr.f32.mxu0 0.0
      %3148 = vmatmul.mubr.f32.gmra.mrb[0].mxu0 %v2976
      %v3149 = vpop.f32.mrb[0].mxu0
      %v3150 = vadd.f32 %v1023, %v3149
      %v3151 = vpop.f32.mrb[0].mxu0
      %3152 = vmatprep.mubr.f32.mxu0 0.0
      %3153 = vmatmul.mubr.f32.gmra.mrb[0].mxu0 %v2979
      %v3154 = vpop.f32.mrb[0].mxu0
      %v3155 = vadd.f32 %v1023, %v3154
      %v3156 = vpop.f32.mrb[0].mxu0
      %3157 = vmatprep.mubr.f32.mxu0 0.0
      %3158 = vmatmul.mubr.f32.gmra.mrb[0].mxu0 %v2982
      %v3159 = vpop.f32.mrb[0].mxu0
      %v3160 = vadd.f32 %v1023, %v3159
      %v3161 = vpop.f32.mrb[0].mxu0
      %3162 = vmatprep.mubr.f32.mxu0 0.0
      %3163 = vmatmul.mubr.f32.gmra.mrb[0].mxu0 %v2985
      %v3164 = vpop.f32.mrb[0].mxu0
      %v3165 = vadd.f32 %v1023, %v3164
      %v3166 = vpop.f32.mrb[0].mxu0
      %3167 = vmatprep.mubr.f32.mxu0 0.0
      %3168 = vmatmul.mubr.f32.gmra.mrb[0].mxu0 %v2988
      %v3169 = vpop.f32.mrb[0].mxu0
      %v3170 = vadd.f32 %v1023, %v3169
      %v3171 = vpop.f32.mrb[0].mxu0
      %3172 = vmatprep.mubr.f32.mxu0 0.0
      %3173 = vmatmul.mubr.f32.gmra.mrb[0].mxu0 %v2991
      %v3174 = vpop.f32.mrb[0].mxu0
      %v3175 = vadd.f32 %v1023, %v3174
      %v3176 = vpop.f32.mrb[0].mxu0
      %3177 = vmatprep.mubr.f32.mxu0 0.0
      %3178 = vmatmul.mubr.f32.gmra.mrb[0].mxu0 %v2994
      %v3179 = vpop.f32.mrb[0].mxu0
      %v3180 = vadd.f32 %v1023, %v3179
      %v3181 = vpop.f32.mrb[0].mxu0
      %3182 = vmatprep.mubr.f32.mxu0 0.0
      %3183 = vmatmul.mubr.f32.gmra.mrb[0].mxu0 %v2997
      %v3184 = vpop.f32.mrb[0].mxu0
      %v3185 = vadd.f32 %v1023, %v3184
      %v3186 = vpop.f32.mrb[0].mxu0
      %3187 = vmatprep.mubr.f32.mxu0 0.0
      %3188 = vmatmul.mubr.f32.gmra.mrb[0].mxu0 %v3000
      %v3189 = vpop.f32.mrb[0].mxu0
      %v3190 = vadd.f32 %v1023, %v3189
      %v3191 = vpop.f32.mrb[0].mxu0
      %3192 = vmatprep.mubr.f32.mxu0 0.0
      %3193 = vmatmul.mubr.f32.gmra.mrb[0].mxu0 %v3003
      %v3194 = vpop.f32.mrb[0].mxu0
      %v3195 = vadd.f32 %v1023, %v3194
      %v3196 = vpop.f32.mrb[0].mxu0
      %3197 = vmatprep.mubr.f32.mxu0 0.0
      %3198 = vmatmul.mubr.f32.gmra.mrb[0].mxu0 %v3006
      %v3199 = vpop.f32.mrb[0].mxu0
      %v3200 = vadd.f32 %v1023, %v3199
      %v3201 = vpop.f32.mrb[0].mxu0
      %3202 = vmatprep.mubr.f32.mxu0 0.0
      %3203 = vmatmul.mubr.f32.gmra.mrb[0].mxu0 %v3009
      %v3204 = vpop.f32.mrb[0].mxu0
      %v3205 = vadd.f32 %v1023, %v3204
      %v3206 = vpop.f32.mrb[0].mxu0
      %3207 = vmatprep.mubr.f32.mxu0 0.0
      %3208 = vmatmul.mubr.f32.gmra.mrb[0].mxu0 %v3012
      %v3209 = vpop.f32.mrb[0].mxu0
      %v3210 = vadd.f32 %v1023, %v3209
      %v3211 = vpop.f32.mrb[0].mxu0
      %3212 = vmatprep.mubr.f32.mxu0 0.0
      %3213 = vmatmul.mubr.f32.gmra.mrb[0].mxu0 %v3015
      %v3214 = vpop.f32.mrb[0].mxu0
      %v3215 = vadd.f32 %v1023, %v3214
      %v3216 = vpop.f32.mrb[0].mxu0
      %3217 = vmatprep.mubr.f32.mxu0 0.0
      %3218 = vmatmul.mubr.f32.gmra.mrb[0].mxu0 %v3018
      %v3219 = vpop.f32.mrb[0].mxu0
      %v3220 = vadd.f32 %v1023, %v3219
      %v3221 = vpop.f32.mrb[0].mxu0
      %3222 = vmatprep.mubr.f32.mxu0 0.0
      %3223 = vmatmul.mubr.f32.gmra.mrb[0].mxu0 %v3021
      %v3224 = vpop.f32.mrb[0].mxu0
      %v3225 = vadd.f32 %v1023, %v3224
      %v3226 = vpop.f32.mrb[0].mxu0
      %3227 = vmatprep.mubr.f32.mxu0 0.0
      %3228 = vmatmul.mubr.f32.gmra.mrb[0].mxu0 %v3024
      %v3229 = vpop.f32.mrb[0].mxu0
      %v3230 = vadd.f32 %v1023, %v3229
      %v3231 = vpop.f32.mrb[0].mxu0
      %3232 = vmatprep.mubr.f32.mxu0 0.0
      %3233 = vmatmul.mubr.f32.gmra.mrb[0].mxu0 %v3027
      %v3234 = vpop.f32.mrb[0].mxu0
      %v3235 = vadd.f32 %v1023, %v3234
      %v3236 = vpop.f32.mrb[0].mxu0
      %3237 = vmatprep.mubr.f32.mxu0 0.0
      %3238 = vmatmul.mubr.f32.gmra.mrb[0].mxu0 %v3030
      %v3239 = vpop.f32.mrb[0].mxu0
      %v3240 = vadd.f32 %v1023, %v3239
      %v3241 = vpop.f32.mrb[0].mxu0
      %3242 = vmatprep.mubr.f32.mxu0 0.0
      %3243 = vmatmul.mubr.f32.gmra.mrb[0].mxu0 %v3033
      %v3244 = vpop.f32.mrb[0].mxu0
      %v3245 = vadd.f32 %v1023, %v3244
      %v3246 = vpop.f32.mrb[0].mxu0
      %3247 = vmatprep.mubr.f32.mxu0 0.0
      %3248 = vmatmul.mubr.f32.gmra.mrb[0].mxu0 %v3036
      %v3249 = vpop.f32.mrb[0].mxu0
      %v3250 = vadd.f32 %v1023, %v3249
      %v3251 = vpop.f32.mrb[0].mxu0
      %3252 = vmatprep.mubr.f32.mxu0 0.0
      %3253 = vmatmul.mubr.f32.gmra.mrb[0].mxu0 %v3039
      %v3254 = vpop.f32.mrb[0].mxu0
      %v3255 = vadd.f32 %v1023, %v3254
      %v3256 = vpop.f32.mrb[0].mxu0
      %3257 = vmatprep.mubr.f32.mxu0 0.0
      %3258 = vmatmul.mubr.f32.gmra.mrb[0].mxu0 %v3042
      %v3259 = vpop.f32.mrb[0].mxu0
      %v3260 = vadd.f32 %v1023, %v3259
      %v3261 = vpop.f32.mrb[0].mxu0
      %3262 = vmatprep.mubr.f32.mxu0 0.0
      %3263 = vmatmul.mubr.f32.gmra.mrb[0].mxu0 %v3045
      %v3264 = vpop.f32.mrb[0].mxu0
      %v3265 = vadd.f32 %v1023, %v3264
      %v3266 = vpop.f32.mrb[0].mxu0
      %3267 = vmatprep.mubr.f32.mxu0 0.0
      %3268 = vmatmul.mubr.f32.gmra.mrb[0].mxu0 %v3048
      %v3269 = vpop.f32.mrb[0].mxu0
      %v3270 = vadd.f32 %v1023, %v3269
      %v3271 = vpop.f32.mrb[0].mxu0
      %3272 = vmatprep.mubr.f32.mxu0 0.0
      %3273 = vmatmul.mubr.f32.gmra.mrb[0].mxu0 %v3051
      %v3274 = vpop.f32.mrb[0].mxu0
      %v3275 = vadd.f32 %v1023, %v3274
      %v3276 = vpop.f32.mrb[0].mxu0
      %3277 = vdwg.mxu0
      %s3278 = scalar_lea.vmem %s221, 32
      %3279 = vst.msk [vmem:[%s3278] sm:$0xff] %vm254, %v3120
      %3280 = vst.msk [vmem:[%s3278 + $0x8] sm:$0xff] %vm254, %v3125
      %3281 = vst.msk [vmem:[%s3278 + $0x40] sm:$0xff] %vm254, %v3130
      %3282 = vst.msk [vmem:[%s3278 + $0x48] sm:$0xff] %vm254, %v3135
      %3283 = vst.msk [vmem:[%s3278 + $0x80] sm:$0xff] %vm254, %v3140
      %3284 = vst.msk [vmem:[%s3278 + $0x88] sm:$0xff] %vm254, %v3145
      %3285 = vst.msk [vmem:[%s3278 + $0xc0] sm:$0xff] %vm254, %v3150
      %3286 = vst.msk [vmem:[%s3278 + $0xc8] sm:$0xff] %vm254, %v3155
      %3287 = vst.msk [vmem:[%s3278 + $0x100] sm:$0xff] %vm254, %v3160
      %3288 = vst.msk [vmem:[%s3278 + $0x108] sm:$0xff] %vm254, %v3165
      %3289 = vst.msk [vmem:[%s3278 + $0x140] sm:$0xff] %vm254, %v3170
      %3290 = vst.msk [vmem:[%s3278 + $0x148] sm:$0xff] %vm254, %v3175
      %3291 = vst.msk [vmem:[%s3278 + $0x180] sm:$0xff] %vm254, %v3180
      %3292 = vst.msk [vmem:[%s3278 + $0x188] sm:$0xff] %vm254, %v3185
      %3293 = vst.msk [vmem:[%s3278 + $0x1c0] sm:$0xff] %vm254, %v3190
      %3294 = vst.msk [vmem:[%s3278 + $0x1c8] sm:$0xff] %vm254, %v3195
      %3295 = vst.msk [vmem:[%s3278 + $0x200] sm:$0xff] %vm254, %v3200
      %3296 = vst.msk [vmem:[%s3278 + $0x208] sm:$0xff] %vm254, %v3205
      %3297 = vst.msk [vmem:[%s3278 + $0x240] sm:$0xff] %vm254, %v3210
      %3298 = vst.msk [vmem:[%s3278 + $0x248] sm:$0xff] %vm254, %v3215
      %3299 = vst.msk [vmem:[%s3278 + $0x280] sm:$0xff] %vm254, %v3220
      %3300 = vst.msk [vmem:[%s3278 + $0x288] sm:$0xff] %vm254, %v3225
      %3301 = vst.msk [vmem:[%s3278 + $0x2c0] sm:$0xff] %vm254, %v3230
      %3302 = vst.msk [vmem:[%s3278 + $0x2c8] sm:$0xff] %vm254, %v3235
      %3303 = vst.msk [vmem:[%s3278 + $0x300] sm:$0xff] %vm254, %v3240
      %3304 = vst.msk [vmem:[%s3278 + $0x308] sm:$0xff] %vm254, %v3245
      %3305 = vst.msk [vmem:[%s3278 + $0x340] sm:$0xff] %vm254, %v3250
      %3306 = vst.msk [vmem:[%s3278 + $0x348] sm:$0xff] %vm254, %v3255
      %3307 = vst.msk [vmem:[%s3278 + $0x380] sm:$0xff] %vm254, %v3260
      %3308 = vst.msk [vmem:[%s3278 + $0x388] sm:$0xff] %vm254, %v3265
      %3309 = vst.msk [vmem:[%s3278 + $0x3c0] sm:$0xff] %vm254, %v3270
      %3310 = vst.msk [vmem:[%s3278 + $0x3c8] sm:$0xff] %vm254, %v3275
      %v3311 = vld [vmem:[%s272] sm:$0xff]
      %v3312 = vld [vmem:[%s272 + $0x8] sm:$0xff]
      %v3313 = vld [vmem:[%s272 + $0x10] sm:$0xff]
      %v3314 = vld [vmem:[%s272 + $0x18] sm:$0xff]
      %v3315 = vld [vmem:[%s272 + $0x20] sm:$0xff]
      %v3316 = vld [vmem:[%s272 + $0x28] sm:$0xff]
      %v3317 = vld [vmem:[%s272 + $0x30] sm:$0xff]
      %v3318 = vld [vmem:[%s272 + $0x38] sm:$0xff]
      %v3319 = vld [vmem:[%s272 + $0x40] sm:$0xff]
      %v3320 = vld [vmem:[%s272 + $0x48] sm:$0xff]
      %v3321 = vld [vmem:[%s272 + $0x50] sm:$0xff]
      %v3322 = vld [vmem:[%s272 + $0x58] sm:$0xff]
      %v3323 = vld [vmem:[%s272 + $0x60] sm:$0xff]
      %v3324 = vld [vmem:[%s272 + $0x68] sm:$0xff]
      %v3325 = vld [vmem:[%s272 + $0x70] sm:$0xff]
      %v3326 = vld [vmem:[%s272 + $0x78] sm:$0xff]
      %v3327 = vld [vmem:[%s272 + $0x80] sm:$0xff]
      %v3328 = vld [vmem:[%s272 + $0x88] sm:$0xff]
      %v3329 = vld [vmem:[%s272 + $0x90] sm:$0xff]
      %v3330 = vld [vmem:[%s272 + $0x98] sm:$0xff]
      %v3331 = vld [vmem:[%s272 + $0xa0] sm:$0xff]
      %v3332 = vld [vmem:[%s272 + $0xa8] sm:$0xff]
      %v3333 = vld [vmem:[%s272 + $0xb0] sm:$0xff]
      %v3334 = vld [vmem:[%s272 + $0xb8] sm:$0xff]
      %v3335 = vld [vmem:[%s272 + $0xc0] sm:$0xff]
      %v3336 = vld [vmem:[%s272 + $0xc8] sm:$0xff]
      %v3337 = vld [vmem:[%s272 + $0xd0] sm:$0xff]
      %v3338 = vld [vmem:[%s272 + $0xd8] sm:$0xff]
      %v3339 = vld [vmem:[%s272 + $0xe0] sm:$0xff]
      %v3340 = vld [vmem:[%s272 + $0xe8] sm:$0xff]
      %v3341 = vld [vmem:[%s272 + $0xf0] sm:$0xff]
      %v3342 = vld [vmem:[%s272 + $0xf8] sm:$0xff]
      %v3343 = vld [vmem:[%s356] sm:$0xff]
      %v3344 = vld [vmem:[%s356 + $0x8] sm:$0xff]
      %v3345 = vld [vmem:[%s356 + $0x10] sm:$0xff]
      %v3346 = vld [vmem:[%s356 + $0x18] sm:$0xff]
      %v3347 = vld [vmem:[%s356 + $0x20] sm:$0xff]
      %v3348 = vld [vmem:[%s356 + $0x28] sm:$0xff]
      %v3349 = vld [vmem:[%s356 + $0x30] sm:$0xff]
      %v3350 = vld [vmem:[%s356 + $0x38] sm:$0xff]
      %v3351 = vld [vmem:[%s356 + $0x40] sm:$0xff]
      %v3352 = vld [vmem:[%s356 + $0x48] sm:$0xff]
      %v3353 = vld [vmem:[%s356 + $0x50] sm:$0xff]
      %v3354 = vld [vmem:[%s356 + $0x58] sm:$0xff]
      %v3355 = vld [vmem:[%s356 + $0x60] sm:$0xff]
      %v3356 = vld [vmem:[%s356 + $0x68] sm:$0xff]
      %v3357 = vld [vmem:[%s356 + $0x70] sm:$0xff]
      %v3358 = vld [vmem:[%s356 + $0x78] sm:$0xff]
      %v3359 = vld [vmem:[%s356 + $0x80] sm:$0xff]
      %v3360 = vld [vmem:[%s356 + $0x88] sm:$0xff]
      %v3361 = vld [vmem:[%s356 + $0x90] sm:$0xff]
      %v3362 = vld [vmem:[%s356 + $0x98] sm:$0xff]
      %v3363 = vld [vmem:[%s356 + $0xa0] sm:$0xff]
      %v3364 = vld [vmem:[%s356 + $0xa8] sm:$0xff]
      %v3365 = vld [vmem:[%s356 + $0xb0] sm:$0xff]
      %v3366 = vld [vmem:[%s356 + $0xb8] sm:$0xff]
      %v3367 = vld [vmem:[%s356 + $0xc0] sm:$0xff]
      %v3368 = vld [vmem:[%s356 + $0xc8] sm:$0xff]
      %v3369 = vld [vmem:[%s356 + $0xd0] sm:$0xff]
      %v3370 = vld [vmem:[%s356 + $0xd8] sm:$0xff]
      %v3371 = vld [vmem:[%s356 + $0xe0] sm:$0xff]
      %v3372 = vld [vmem:[%s356 + $0xe8] sm:$0xff]
      %v3373 = vld [vmem:[%s356 + $0xf0] sm:$0xff]
      %v3374 = vld [vmem:[%s356 + $0xf8] sm:$0xff]
      %v3375 = vld [vmem:[%s2441] sm:$0xff]
      %v3376 = vld [vmem:[%s2441 + $0x8] sm:$0xff]
      %v3377 = vld [vmem:[%s2441 + $0x10] sm:$0xff]
      %v3378 = vld [vmem:[%s2441 + $0x18] sm:$0xff]
      %v3379 = vld [vmem:[%s2441 + $0x20] sm:$0xff]
      %v3380 = vld [vmem:[%s2441 + $0x28] sm:$0xff]
      %v3381 = vld [vmem:[%s2441 + $0x30] sm:$0xff]
      %v3382 = vld [vmem:[%s2441 + $0x38] sm:$0xff]
      %v3383 = vld [vmem:[%s2441 + $0x40] sm:$0xff]
      %v3384 = vld [vmem:[%s2441 + $0x48] sm:$0xff]
      %v3385 = vld [vmem:[%s2441 + $0x50] sm:$0xff]
      %v3386 = vld [vmem:[%s2441 + $0x58] sm:$0xff]
      %v3387 = vld [vmem:[%s2441 + $0x60] sm:$0xff]
      %v3388 = vld [vmem:[%s2441 + $0x68] sm:$0xff]
      %v3389 = vld [vmem:[%s2441 + $0x70] sm:$0xff]
      %v3390 = vld [vmem:[%s2441 + $0x78] sm:$0xff]
      %v3391 = vld [vmem:[%s2441 + $0x80] sm:$0xff]
      %v3392 = vld [vmem:[%s2441 + $0x88] sm:$0xff]
      %v3393 = vld [vmem:[%s2441 + $0x90] sm:$0xff]
      %v3394 = vld [vmem:[%s2441 + $0x98] sm:$0xff]
      %v3395 = vld [vmem:[%s2441 + $0xa0] sm:$0xff]
      %v3396 = vld [vmem:[%s2441 + $0xa8] sm:$0xff]
      %v3397 = vld [vmem:[%s2441 + $0xb0] sm:$0xff]
      %v3398 = vld [vmem:[%s2441 + $0xb8] sm:$0xff]
      %v3399 = vld [vmem:[%s2441 + $0xc0] sm:$0xff]
      %v3400 = vld [vmem:[%s2441 + $0xc8] sm:$0xff]
      %v3401 = vld [vmem:[%s2441 + $0xd0] sm:$0xff]
      %v3402 = vld [vmem:[%s2441 + $0xd8] sm:$0xff]
      %v3403 = vld [vmem:[%s2441 + $0xe0] sm:$0xff]
      %v3404 = vld [vmem:[%s2441 + $0xe8] sm:$0xff]
      %v3405 = vld [vmem:[%s2441 + $0xf0] sm:$0xff]
      %v3406 = vld [vmem:[%s2441 + $0xf8] sm:$0xff]
      %s3407 = scalar_lea.vmem [#allocation2], 608
      %v3408 = vld [vmem:[%s3407] sm:$0xff]
      %v3409 = vld [vmem:[%s3407 + $0x8] sm:$0xff]
      %v3410 = vld [vmem:[%s3407 + $0x10] sm:$0xff]
      %v3411 = vld [vmem:[%s3407 + $0x18] sm:$0xff]
      %v3412 = vld [vmem:[%s3407 + $0x20] sm:$0xff]
      %v3413 = vld [vmem:[%s3407 + $0x28] sm:$0xff]
      %v3414 = vld [vmem:[%s3407 + $0x30] sm:$0xff]
      %v3415 = vld [vmem:[%s3407 + $0x38] sm:$0xff]
      %v3416 = vld [vmem:[%s3407 + $0x40] sm:$0xff]
      %v3417 = vld [vmem:[%s3407 + $0x48] sm:$0xff]
      %v3418 = vld [vmem:[%s3407 + $0x50] sm:$0xff]
      %v3419 = vld [vmem:[%s3407 + $0x58] sm:$0xff]
      %v3420 = vld [vmem:[%s3407 + $0x60] sm:$0xff]
      %v3421 = vld [vmem:[%s3407 + $0x68] sm:$0xff]
      %v3422 = vld [vmem:[%s3407 + $0x70] sm:$0xff]
      %v3423 = vld [vmem:[%s3407 + $0x78] sm:$0xff]
      %v3424 = vld [vmem:[%s3407 + $0x80] sm:$0xff]
      %v3425 = vld [vmem:[%s3407 + $0x88] sm:$0xff]
      %v3426 = vld [vmem:[%s3407 + $0x90] sm:$0xff]
      %v3427 = vld [vmem:[%s3407 + $0x98] sm:$0xff]
      %v3428 = vld [vmem:[%s3407 + $0xa0] sm:$0xff]
      %v3429 = vld [vmem:[%s3407 + $0xa8] sm:$0xff]
      %v3430 = vld [vmem:[%s3407 + $0xb0] sm:$0xff]
      %v3431 = vld [vmem:[%s3407 + $0xb8] sm:$0xff]
      %v3432 = vld [vmem:[%s3407 + $0xc0] sm:$0xff]
      %v3433 = vld [vmem:[%s3407 + $0xc8] sm:$0xff]
      %v3434 = vld [vmem:[%s3407 + $0xd0] sm:$0xff]
      %v3435 = vld [vmem:[%s3407 + $0xd8] sm:$0xff]
      %v3436 = vld [vmem:[%s3407 + $0xe0] sm:$0xff]
      %v3437 = vld [vmem:[%s3407 + $0xe8] sm:$0xff]
      %v3438 = vld [vmem:[%s3407 + $0xf0] sm:$0xff]
      %v3439 = vld [vmem:[%s3407 + $0xf8] sm:$0xff]
      %3472 = vrot.lane.b32.xlu0 %v3343, 4
      %v3473 = vpop.permute.xlu0 %3472
      %3474 = vrot.lane.b32.xlu0 %v3344, 4
      %v3475 = vpop.permute.xlu0 %3474
      %3476 = vrot.lane.b32.xlu0 %v3345, 4
      %v3477 = vpop.permute.xlu0 %3476
      %3478 = vrot.lane.b32.xlu0 %v3346, 4
      %v3479 = vpop.permute.xlu0 %3478
      %3480 = vrot.lane.b32.xlu0 %v3347, 4
      %v3481 = vpop.permute.xlu0 %3480
      %3482 = vrot.lane.b32.xlu0 %v3348, 4
      %v3483 = vpop.permute.xlu0 %3482
      %3484 = vrot.lane.b32.xlu0 %v3349, 4
      %v3485 = vpop.permute.xlu0 %3484
      %3486 = vrot.lane.b32.xlu0 %v3350, 4
      %v3487 = vpop.permute.xlu0 %3486
      %3488 = vrot.lane.b32.xlu0 %v3351, 4
      %v3489 = vpop.permute.xlu0 %3488
      %3490 = vrot.lane.b32.xlu0 %v3352, 4
      %v3491 = vpop.permute.xlu0 %3490
      %3492 = vrot.lane.b32.xlu0 %v3353, 4
      %v3493 = vpop.permute.xlu0 %3492
      %3494 = vrot.lane.b32.xlu0 %v3354, 4
      %v3495 = vpop.permute.xlu0 %3494
      %3496 = vrot.lane.b32.xlu0 %v3355, 4
      %v3497 = vpop.permute.xlu0 %3496
      %3498 = vrot.lane.b32.xlu0 %v3356, 4
      %v3499 = vpop.permute.xlu0 %3498
      %3500 = vrot.lane.b32.xlu0 %v3357, 4
      %v3501 = vpop.permute.xlu0 %3500
      %3502 = vrot.lane.b32.xlu0 %v3358, 4
      %v3503 = vpop.permute.xlu0 %3502
      %3504 = vrot.lane.b32.xlu0 %v3359, 4
      %v3505 = vpop.permute.xlu0 %3504
      %3506 = vrot.lane.b32.xlu0 %v3360, 4
      %v3507 = vpop.permute.xlu0 %3506
      %3508 = vrot.lane.b32.xlu0 %v3361, 4
      %v3509 = vpop.permute.xlu0 %3508
      %3510 = vrot.lane.b32.xlu0 %v3362, 4
      %v3511 = vpop.permute.xlu0 %3510
      %3512 = vrot.lane.b32.xlu0 %v3363, 4
      %v3513 = vpop.permute.xlu0 %3512
      %3514 = vrot.lane.b32.xlu0 %v3364, 4
      %v3515 = vpop.permute.xlu0 %3514
      %3516 = vrot.lane.b32.xlu0 %v3365, 4
      %v3517 = vpop.permute.xlu0 %3516
      %3518 = vrot.lane.b32.xlu0 %v3366, 4
      %v3519 = vpop.permute.xlu0 %3518
      %3520 = vrot.lane.b32.xlu0 %v3367, 4
      %v3521 = vpop.permute.xlu0 %3520
      %3522 = vrot.lane.b32.xlu0 %v3368, 4
      %v3523 = vpop.permute.xlu0 %3522
      %3524 = vrot.lane.b32.xlu0 %v3369, 4
      %v3525 = vpop.permute.xlu0 %3524
      %3526 = vrot.lane.b32.xlu0 %v3370, 4
      %v3527 = vpop.permute.xlu0 %3526
      %3528 = vrot.lane.b32.xlu0 %v3371, 4
      %v3529 = vpop.permute.xlu0 %3528
      %3530 = vrot.lane.b32.xlu0 %v3372, 4
      %v3531 = vpop.permute.xlu0 %3530
      %3532 = vrot.lane.b32.xlu0 %v3373, 4
      %v3533 = vpop.permute.xlu0 %3532
      %3534 = vrot.lane.b32.xlu0 %v3374, 4
      %v3535 = vpop.permute.xlu0 %3534
      %3600 = vrot.lane.b32.xlu0 %v3375, 8
      %v3601 = vpop.permute.xlu0 %3600
      %3602 = vrot.lane.b32.xlu0 %v3376, 8
      %v3603 = vpop.permute.xlu0 %3602
      %3604 = vrot.lane.b32.xlu0 %v3377, 8
      %v3605 = vpop.permute.xlu0 %3604
      %3606 = vrot.lane.b32.xlu0 %v3378, 8
      %v3607 = vpop.permute.xlu0 %3606
      %3608 = vrot.lane.b32.xlu0 %v3379, 8
      %v3609 = vpop.permute.xlu0 %3608
      %3610 = vrot.lane.b32.xlu0 %v3380, 8
      %v3611 = vpop.permute.xlu0 %3610
      %3612 = vrot.lane.b32.xlu0 %v3381, 8
      %v3613 = vpop.permute.xlu0 %3612
      %3614 = vrot.lane.b32.xlu0 %v3382, 8
      %v3615 = vpop.permute.xlu0 %3614
      %3616 = vrot.lane.b32.xlu0 %v3383, 8
      %v3617 = vpop.permute.xlu0 %3616
      %3618 = vrot.lane.b32.xlu0 %v3384, 8
      %v3619 = vpop.permute.xlu0 %3618
      %3620 = vrot.lane.b32.xlu0 %v3385, 8
      %v3621 = vpop.permute.xlu0 %3620
      %3622 = vrot.lane.b32.xlu0 %v3386, 8
      %v3623 = vpop.permute.xlu0 %3622
      %3624 = vrot.lane.b32.xlu0 %v3387, 8
      %v3625 = vpop.permute.xlu0 %3624
      %3626 = vrot.lane.b32.xlu0 %v3388, 8
      %v3627 = vpop.permute.xlu0 %3626
      %3628 = vrot.lane.b32.xlu0 %v3389, 8
      %v3629 = vpop.permute.xlu0 %3628
      %3630 = vrot.lane.b32.xlu0 %v3390, 8
      %v3631 = vpop.permute.xlu0 %3630
      %3632 = vrot.lane.b32.xlu0 %v3391, 8
      %v3633 = vpop.permute.xlu0 %3632
      %3634 = vrot.lane.b32.xlu0 %v3392, 8
      %v3635 = vpop.permute.xlu0 %3634
      %3636 = vrot.lane.b32.xlu0 %v3393, 8
      %v3637 = vpop.permute.xlu0 %3636
      %3638 = vrot.lane.b32.xlu0 %v3394, 8
      %v3639 = vpop.permute.xlu0 %3638
      %3640 = vrot.lane.b32.xlu0 %v3395, 8
      %v3641 = vpop.permute.xlu0 %3640
      %3642 = vrot.lane.b32.xlu0 %v3396, 8
      %v3643 = vpop.permute.xlu0 %3642
      %3644 = vrot.lane.b32.xlu0 %v3397, 8
      %v3645 = vpop.permute.xlu0 %3644
      %3646 = vrot.lane.b32.xlu0 %v3398, 8
      %v3647 = vpop.permute.xlu0 %3646
      %3648 = vrot.lane.b32.xlu0 %v3399, 8
      %v3649 = vpop.permute.xlu0 %3648
      %3650 = vrot.lane.b32.xlu0 %v3400, 8
      %v3651 = vpop.permute.xlu0 %3650
      %3652 = vrot.lane.b32.xlu0 %v3401, 8
      %v3653 = vpop.permute.xlu0 %3652
      %3654 = vrot.lane.b32.xlu0 %v3402, 8
      %v3655 = vpop.permute.xlu0 %3654
      %3656 = vrot.lane.b32.xlu0 %v3403, 8
      %v3657 = vpop.permute.xlu0 %3656
      %3658 = vrot.lane.b32.xlu0 %v3404, 8
      %v3659 = vpop.permute.xlu0 %3658
      %3660 = vrot.lane.b32.xlu0 %v3405, 8
      %v3661 = vpop.permute.xlu0 %3660
      %3662 = vrot.lane.b32.xlu0 %v3406, 8
      %v3663 = vpop.permute.xlu0 %3662
      %3728 = vrot.lane.b32.xlu0 %v3408, 12
      %v3729 = vpop.permute.xlu0 %3728
      %3730 = vrot.lane.b32.xlu0 %v3409, 12
      %v3731 = vpop.permute.xlu0 %3730
      %3732 = vrot.lane.b32.xlu0 %v3410, 12
      %v3733 = vpop.permute.xlu0 %3732
      %3734 = vrot.lane.b32.xlu0 %v3411, 12
      %v3735 = vpop.permute.xlu0 %3734
      %3736 = vrot.lane.b32.xlu0 %v3412, 12
      %v3737 = vpop.permute.xlu0 %3736
      %3738 = vrot.lane.b32.xlu0 %v3413, 12
      %v3739 = vpop.permute.xlu0 %3738
      %3740 = vrot.lane.b32.xlu0 %v3414, 12
      %v3741 = vpop.permute.xlu0 %3740
      %3742 = vrot.lane.b32.xlu0 %v3415, 12
      %v3743 = vpop.permute.xlu0 %3742
      %3744 = vrot.lane.b32.xlu0 %v3416, 12
      %v3745 = vpop.permute.xlu0 %3744
      %3746 = vrot.lane.b32.xlu0 %v3417, 12
      %v3747 = vpop.permute.xlu0 %3746
      %3748 = vrot.lane.b32.xlu0 %v3418, 12
      %v3749 = vpop.permute.xlu0 %3748
      %3750 = vrot.lane.b32.xlu0 %v3419, 12
      %v3751 = vpop.permute.xlu0 %3750
      %3752 = vrot.lane.b32.xlu0 %v3420, 12
      %v3753 = vpop.permute.xlu0 %3752
      %3754 = vrot.lane.b32.xlu0 %v3421, 12
      %v3755 = vpop.permute.xlu0 %3754
      %3756 = vrot.lane.b32.xlu0 %v3422, 12
      %v3757 = vpop.permute.xlu0 %3756
      %3758 = vrot.lane.b32.xlu0 %v3423, 12
      %v3759 = vpop.permute.xlu0 %3758
      %3760 = vrot.lane.b32.xlu0 %v3424, 12
      %v3761 = vpop.permute.xlu0 %3760
      %3762 = vrot.lane.b32.xlu0 %v3425, 12
      %v3763 = vpop.permute.xlu0 %3762
      %3764 = vrot.lane.b32.xlu0 %v3426, 12
      %v3765 = vpop.permute.xlu0 %3764
      %3766 = vrot.lane.b32.xlu0 %v3427, 12
      %v3767 = vpop.permute.xlu0 %3766
      %3768 = vrot.lane.b32.xlu0 %v3428, 12
      %v3769 = vpop.permute.xlu0 %3768
      %3770 = vrot.lane.b32.xlu0 %v3429, 12
      %v3771 = vpop.permute.xlu0 %3770
      %3772 = vrot.lane.b32.xlu0 %v3430, 12
      %v3773 = vpop.permute.xlu0 %3772
      %3774 = vrot.lane.b32.xlu0 %v3431, 12
      %v3775 = vpop.permute.xlu0 %3774
      %3776 = vrot.lane.b32.xlu0 %v3432, 12
      %v3777 = vpop.permute.xlu0 %3776
      %3778 = vrot.lane.b32.xlu0 %v3433, 12
      %v3779 = vpop.permute.xlu0 %3778
      %3780 = vrot.lane.b32.xlu0 %v3434, 12
      %v3781 = vpop.permute.xlu0 %3780
      %3782 = vrot.lane.b32.xlu0 %v3435, 12
      %v3783 = vpop.permute.xlu0 %3782
      %3784 = vrot.lane.b32.xlu0 %v3436, 12
      %v3785 = vpop.permute.xlu0 %3784
      %3786 = vrot.lane.b32.xlu0 %v3437, 12
      %v3787 = vpop.permute.xlu0 %3786
      %3788 = vrot.lane.b32.xlu0 %v3438, 12
      %v3789 = vpop.permute.xlu0 %3788
      %3790 = vrot.lane.b32.xlu0 %v3439, 12
      %v3791 = vpop.permute.xlu0 %3790
      %v3824 = vsel %vm254, %v3311, %v3473
      %v3825 = vsel %vm254, %v3312, %v3475
      %v3826 = vsel %vm254, %v3313, %v3477
      %v3827 = vsel %vm254, %v3314, %v3479
      %v3828 = vsel %vm254, %v3315, %v3481
      %v3829 = vsel %vm254, %v3316, %v3483
      %v3830 = vsel %vm254, %v3317, %v3485
      %v3831 = vsel %vm254, %v3318, %v3487
      %v3832 = vsel %vm254, %v3319, %v3489
      %v3833 = vsel %vm254, %v3320, %v3491
      %v3834 = vsel %vm254, %v3321, %v3493
      %v3835 = vsel %vm254, %v3322, %v3495
      %v3836 = vsel %vm254, %v3323, %v3497
      %v3837 = vsel %vm254, %v3324, %v3499
      %v3838 = vsel %vm254, %v3325, %v3501
      %v3839 = vsel %vm254, %v3326, %v3503
      %v3840 = vsel %vm254, %v3327, %v3505
      %v3841 = vsel %vm254, %v3328, %v3507
      %v3842 = vsel %vm254, %v3329, %v3509
      %v3843 = vsel %vm254, %v3330, %v3511
      %v3844 = vsel %vm254, %v3331, %v3513
      %v3845 = vsel %vm254, %v3332, %v3515
      %v3846 = vsel %vm254, %v3333, %v3517
      %v3847 = vsel %vm254, %v3334, %v3519
      %v3848 = vsel %vm254, %v3335, %v3521
      %v3849 = vsel %vm254, %v3336, %v3523
      %v3850 = vsel %vm254, %v3337, %v3525
      %v3851 = vsel %vm254, %v3338, %v3527
      %v3852 = vsel %vm254, %v3339, %v3529
      %v3853 = vsel %vm254, %v3340, %v3531
      %v3854 = vsel %vm254, %v3341, %v3533
      %v3855 = vsel %vm254, %v3342, %v3535
      %v3856 = vsel %vm951, %v3824, %v3601
      %v3857 = vsel %vm951, %v3825, %v3603
      %v3858 = vsel %vm951, %v3826, %v3605
      %v3859 = vsel %vm951, %v3827, %v3607
      %v3860 = vsel %vm951, %v3828, %v3609
      %v3861 = vsel %vm951, %v3829, %v3611
      %v3862 = vsel %vm951, %v3830, %v3613
      %v3863 = vsel %vm951, %v3831, %v3615
      %v3864 = vsel %vm951, %v3832, %v3617
      %v3865 = vsel %vm951, %v3833, %v3619
      %v3866 = vsel %vm951, %v3834, %v3621
      %v3867 = vsel %vm951, %v3835, %v3623
      %v3868 = vsel %vm951, %v3836, %v3625
      %v3869 = vsel %vm951, %v3837, %v3627
      %v3870 = vsel %vm951, %v3838, %v3629
      %v3871 = vsel %vm951, %v3839, %v3631
      %v3872 = vsel %vm951, %v3840, %v3633
      %v3873 = vsel %vm951, %v3841, %v3635
      %v3874 = vsel %vm951, %v3842, %v3637
      %v3875 = vsel %vm951, %v3843, %v3639
      %v3876 = vsel %vm951, %v3844, %v3641
      %v3877 = vsel %vm951, %v3845, %v3643
      %v3878 = vsel %vm951, %v3846, %v3645
      %v3879 = vsel %vm951, %v3847, %v3647
      %v3880 = vsel %vm951, %v3848, %v3649
      %v3881 = vsel %vm951, %v3849, %v3651
      %v3882 = vsel %vm951, %v3850, %v3653
      %v3883 = vsel %vm951, %v3851, %v3655
      %v3884 = vsel %vm951, %v3852, %v3657
      %v3885 = vsel %vm951, %v3853, %v3659
      %v3886 = vsel %vm951, %v3854, %v3661
      %v3887 = vsel %vm951, %v3855, %v3663
      %v3888 = vsel %vm984, %v3856, %v3729
      %v3889 = vsel %vm984, %v3857, %v3731
      %v3890 = vsel %vm984, %v3858, %v3733
      %v3891 = vsel %vm984, %v3859, %v3735
      %v3892 = vsel %vm984, %v3860, %v3737
      %v3893 = vsel %vm984, %v3861, %v3739
      %v3894 = vsel %vm984, %v3862, %v3741
      %v3895 = vsel %vm984, %v3863, %v3743
      %v3896 = vsel %vm984, %v3864, %v3745
      %v3897 = vsel %vm984, %v3865, %v3747
      %v3898 = vsel %vm984, %v3866, %v3749
      %v3899 = vsel %vm984, %v3867, %v3751
      %v3900 = vsel %vm984, %v3868, %v3753
      %v3901 = vsel %vm984, %v3869, %v3755
      %v3902 = vsel %vm984, %v3870, %v3757
      %v3903 = vsel %vm984, %v3871, %v3759
      %v3904 = vsel %vm984, %v3872, %v3761
      %v3905 = vsel %vm984, %v3873, %v3763
      %v3906 = vsel %vm984, %v3874, %v3765
      %v3907 = vsel %vm984, %v3875, %v3767
      %v3908 = vsel %vm984, %v3876, %v3769
      %v3909 = vsel %vm984, %v3877, %v3771
      %v3910 = vsel %vm984, %v3878, %v3773
      %v3911 = vsel %vm984, %v3879, %v3775
      %v3912 = vsel %vm984, %v3880, %v3777
      %v3913 = vsel %vm984, %v3881, %v3779
      %v3914 = vsel %vm984, %v3882, %v3781
      %v3915 = vsel %vm984, %v3883, %v3783
      %v3916 = vsel %vm984, %v3884, %v3785
      %v3917 = vsel %vm984, %v3885, %v3787
      %v3918 = vsel %vm984, %v3886, %v3789
      %v3919 = vsel %vm984, %v3887, %v3791
      %s3920 = scalar_lea.vmem %s210, 48
      %v3921 = vld [vmem:[%s3920] sm:$0xff]
      %v3922 = vld [vmem:[%s3920 + $0x8] sm:$0xff]
      %v3924 = vsel %vm1025, %v3888, 0
      %v3927 = vsel %vm1025, %v3889, 0
      %v3930 = vsel %vm1025, %v3890, 0
      %v3933 = vsel %vm1025, %v3891, 0
      %v3936 = vsel %vm1025, %v3892, 0
      %v3939 = vsel %vm1025, %v3893, 0
      %v3942 = vsel %vm1025, %v3894, 0
      %v3945 = vsel %vm1025, %v3895, 0
      %v3948 = vsel %vm1025, %v3896, 0
      %v3951 = vsel %vm1025, %v3897, 0
      %v3954 = vsel %vm1025, %v3898, 0
      %v3957 = vsel %vm1025, %v3899, 0
      %v3960 = vsel %vm1025, %v3900, 0
      %v3963 = vsel %vm1025, %v3901, 0
      %v3966 = vsel %vm1025, %v3902, 0
      %v3969 = vsel %vm1025, %v3903, 0
      %v3972 = vsel %vm1025, %v3904, 0
      %v3975 = vsel %vm1025, %v3905, 0
      %v3978 = vsel %vm1025, %v3906, 0
      %v3981 = vsel %vm1025, %v3907, 0
      %v3984 = vsel %vm1025, %v3908, 0
      %v3987 = vsel %vm1025, %v3909, 0
      %v3990 = vsel %vm1025, %v3910, 0
      %v3993 = vsel %vm1025, %v3911, 0
      %v3996 = vsel %vm1025, %v3912, 0
      %v3999 = vsel %vm1025, %v3913, 0
      %v4002 = vsel %vm1025, %v3914, 0
      %v4005 = vsel %vm1025, %v3915, 0
      %v4008 = vsel %vm1025, %v3916, 0
      %v4011 = vsel %vm1025, %v3917, 0
      %v4014 = vsel %vm1025, %v3918, 0
      %v4017 = vsel %vm1025, %v3919, 0
      %4019 = vmatprep.subr.mxu0 0.0
      %4020 = vmatpush1.msra.mxu0 %v3921
      %4021 = vmatprep.subr.mxu0 0.0
      %4022 = vmatpush1.msra.mxu0 %v3922
      %4023 = vmatprep.subr.mxu0 0.0
      %4024 = vmatpush1.msra.mxu0 0.0
      %4025 = vmatprep.subr.mxu0 0.0
      %4026 = vmatpush1.msra.mxu0 0.0
      %4027 = vmatprep.subr.mxu0 0.0
      %4028 = vmatpush1.msra.mxu0 0.0
      %4029 = vmatprep.subr.mxu0 0.0
      %4030 = vmatpush1.msra.mxu0 0.0
      %4031 = vmatprep.subr.mxu0 0.0
      %4032 = vmatpush1.msra.mxu0 0.0
      %4033 = vmatprep.subr.mxu0 0.0
      %4034 = vmatpush1.msra.mxu0 0.0
      %4035 = vmatprep.subr.mxu0 0.0
      %4036 = vmatpush1.msra.mxu0 0.0
      %4037 = vmatprep.subr.mxu0 0.0
      %4038 = vmatpush1.msra.mxu0 0.0
      %4039 = vmatprep.subr.mxu0 0.0
      %4040 = vmatpush1.msra.mxu0 0.0
      %4041 = vmatprep.subr.mxu0 0.0
      %4042 = vmatpush1.msra.mxu0 0.0
      %4043 = vmatprep.subr.mxu0 0.0
      %4044 = vmatpush1.msra.mxu0 0.0
      %4045 = vmatprep.subr.mxu0 0.0
      %4046 = vmatpush1.msra.mxu0 0.0
      %4047 = vmatprep.subr.mxu0 0.0
      %4048 = vmatpush1.msra.mxu0 0.0
      %4049 = vmatprep.subr.mxu0 0.0
      %4050 = vmatpush1.msra.mxu0 0.0
      %4051 = vmatprep.subr.mxu0 0.0
      %4052 = vmatpush1.msra.mxu0 0.0
      %4053 = vmatprep.subr.mxu0 0.0
      %4054 = vmatpush1.msra.mxu0 0.0
      %4055 = vmatprep.subr.mxu0 0.0
      %4056 = vmatpush1.msra.mxu0 0.0
      %4057 = vmatprep.subr.mxu0 0.0
      %4058 = vmatpush1.msra.mxu0 0.0
      %4059 = vmatprep.subr.mxu0 0.0
      %4060 = vmatpush1.msra.mxu0 0.0
      %4061 = vmatprep.subr.mxu0 0.0
      %4062 = vmatpush1.msra.mxu0 0.0
      %4063 = vmatprep.subr.mxu0 0.0
      %4064 = vmatpush1.msra.mxu0 0.0
      %4065 = vmatprep.subr.mxu0 0.0
      %4066 = vmatpush1.msra.mxu0 0.0
      %4067 = vmatprep.subr.mxu0 0.0
      %4068 = vmatpush1.msra.mxu0 0.0
      %4069 = vmatprep.subr.mxu0 0.0
      %4070 = vmatpush1.msra.mxu0 0.0
      %4071 = vmatprep.subr.mxu0 0.0
      %4072 = vmatpush1.msra.mxu0 0.0
      %4073 = vmatprep.subr.mxu0 0.0
      %4074 = vmatpush1.msra.mxu0 0.0
      %4075 = vmatprep.subr.mxu0 0.0
      %4076 = vmatpush1.msra.mxu0 0.0
      %4077 = vmatprep.subr.mxu0 0.0
      %4078 = vmatpush1.msra.mxu0 0.0
      %4079 = vmatprep.subr.mxu0 0.0
      %4080 = vmatpush1.msra.mxu0 0.0
      %4081 = vmatprep.subr.mxu0 0.0
      %4082 = vmatpush1.msra.mxu0 0.0
      %4083 = vmatprep.mubr.f32.mxu0 0.0
      %4084 = vmatmul.mubr.f32.gmra.mrb[0].mxu0 %v3924
      %v4085 = vpop.f32.mrb[0].mxu0
      %v4086 = vadd.f32 %v1023, %v4085
      %v4087 = vpop.f32.mrb[0].mxu0
      %4088 = vmatprep.mubr.f32.mxu0 0.0
      %4089 = vmatmul.mubr.f32.gmra.mrb[0].mxu0 %v3927
      %v4090 = vpop.f32.mrb[0].mxu0
      %v4091 = vadd.f32 %v1023, %v4090
      %v4092 = vpop.f32.mrb[0].mxu0
      %4093 = vmatprep.mubr.f32.mxu0 0.0
      %4094 = vmatmul.mubr.f32.gmra.mrb[0].mxu0 %v3930
      %v4095 = vpop.f32.mrb[0].mxu0
      %v4096 = vadd.f32 %v1023, %v4095
      %v4097 = vpop.f32.mrb[0].mxu0
      %4098 = vmatprep.mubr.f32.mxu0 0.0
      %4099 = vmatmul.mubr.f32.gmra.mrb[0].mxu0 %v3933
      %v4100 = vpop.f32.mrb[0].mxu0
      %v4101 = vadd.f32 %v1023, %v4100
      %v4102 = vpop.f32.mrb[0].mxu0
      %4103 = vmatprep.mubr.f32.mxu0 0.0
      %4104 = vmatmul.mubr.f32.gmra.mrb[0].mxu0 %v3936
      %v4105 = vpop.f32.mrb[0].mxu0
      %v4106 = vadd.f32 %v1023, %v4105
      %v4107 = vpop.f32.mrb[0].mxu0
      %4108 = vmatprep.mubr.f32.mxu0 0.0
      %4109 = vmatmul.mubr.f32.gmra.mrb[0].mxu0 %v3939
      %v4110 = vpop.f32.mrb[0].mxu0
      %v4111 = vadd.f32 %v1023, %v4110
      %v4112 = vpop.f32.mrb[0].mxu0
      %4113 = vmatprep.mubr.f32.mxu0 0.0
      %4114 = vmatmul.mubr.f32.gmra.mrb[0].mxu0 %v3942
      %v4115 = vpop.f32.mrb[0].mxu0
      %v4116 = vadd.f32 %v1023, %v4115
      %v4117 = vpop.f32.mrb[0].mxu0
      %4118 = vmatprep.mubr.f32.mxu0 0.0
      %4119 = vmatmul.mubr.f32.gmra.mrb[0].mxu0 %v3945
      %v4120 = vpop.f32.mrb[0].mxu0
      %v4121 = vadd.f32 %v1023, %v4120
      %v4122 = vpop.f32.mrb[0].mxu0
      %4123 = vmatprep.mubr.f32.mxu0 0.0
      %4124 = vmatmul.mubr.f32.gmra.mrb[0].mxu0 %v3948
      %v4125 = vpop.f32.mrb[0].mxu0
      %v4126 = vadd.f32 %v1023, %v4125
      %v4127 = vpop.f32.mrb[0].mxu0
      %4128 = vmatprep.mubr.f32.mxu0 0.0
      %4129 = vmatmul.mubr.f32.gmra.mrb[0].mxu0 %v3951
      %v4130 = vpop.f32.mrb[0].mxu0
      %v4131 = vadd.f32 %v1023, %v4130
      %v4132 = vpop.f32.mrb[0].mxu0
      %4133 = vmatprep.mubr.f32.mxu0 0.0
      %4134 = vmatmul.mubr.f32.gmra.mrb[0].mxu0 %v3954
      %v4135 = vpop.f32.mrb[0].mxu0
      %v4136 = vadd.f32 %v1023, %v4135
      %v4137 = vpop.f32.mrb[0].mxu0
      %4138 = vmatprep.mubr.f32.mxu0 0.0
      %4139 = vmatmul.mubr.f32.gmra.mrb[0].mxu0 %v3957
      %v4140 = vpop.f32.mrb[0].mxu0
      %v4141 = vadd.f32 %v1023, %v4140
      %v4142 = vpop.f32.mrb[0].mxu0
      %4143 = vmatprep.mubr.f32.mxu0 0.0
      %4144 = vmatmul.mubr.f32.gmra.mrb[0].mxu0 %v3960
      %v4145 = vpop.f32.mrb[0].mxu0
      %v4146 = vadd.f32 %v1023, %v4145
      %v4147 = vpop.f32.mrb[0].mxu0
      %4148 = vmatprep.mubr.f32.mxu0 0.0
      %4149 = vmatmul.mubr.f32.gmra.mrb[0].mxu0 %v3963
      %v4150 = vpop.f32.mrb[0].mxu0
      %v4151 = vadd.f32 %v1023, %v4150
      %v4152 = vpop.f32.mrb[0].mxu0
      %4153 = vmatprep.mubr.f32.mxu0 0.0
      %4154 = vmatmul.mubr.f32.gmra.mrb[0].mxu0 %v3966
      %v4155 = vpop.f32.mrb[0].mxu0
      %v4156 = vadd.f32 %v1023, %v4155
      %v4157 = vpop.f32.mrb[0].mxu0
      %4158 = vmatprep.mubr.f32.mxu0 0.0
      %4159 = vmatmul.mubr.f32.gmra.mrb[0].mxu0 %v3969
      %v4160 = vpop.f32.mrb[0].mxu0
      %v4161 = vadd.f32 %v1023, %v4160
      %v4162 = vpop.f32.mrb[0].mxu0
      %4163 = vmatprep.mubr.f32.mxu0 0.0
      %4164 = vmatmul.mubr.f32.gmra.mrb[0].mxu0 %v3972
      %v4165 = vpop.f32.mrb[0].mxu0
      %v4166 = vadd.f32 %v1023, %v4165
      %v4167 = vpop.f32.mrb[0].mxu0
      %4168 = vmatprep.mubr.f32.mxu0 0.0
      %4169 = vmatmul.mubr.f32.gmra.mrb[0].mxu0 %v3975
      %v4170 = vpop.f32.mrb[0].mxu0
      %v4171 = vadd.f32 %v1023, %v4170
      %v4172 = vpop.f32.mrb[0].mxu0
      %4173 = vmatprep.mubr.f32.mxu0 0.0
      %4174 = vmatmul.mubr.f32.gmra.mrb[0].mxu0 %v3978
      %v4175 = vpop.f32.mrb[0].mxu0
      %v4176 = vadd.f32 %v1023, %v4175
      %v4177 = vpop.f32.mrb[0].mxu0
      %4178 = vmatprep.mubr.f32.mxu0 0.0
      %4179 = vmatmul.mubr.f32.gmra.mrb[0].mxu0 %v3981
      %v4180 = vpop.f32.mrb[0].mxu0
      %v4181 = vadd.f32 %v1023, %v4180
      %v4182 = vpop.f32.mrb[0].mxu0
      %4183 = vmatprep.mubr.f32.mxu0 0.0
      %4184 = vmatmul.mubr.f32.gmra.mrb[0].mxu0 %v3984
      %v4185 = vpop.f32.mrb[0].mxu0
      %v4186 = vadd.f32 %v1023, %v4185
      %v4187 = vpop.f32.mrb[0].mxu0
      %4188 = vmatprep.mubr.f32.mxu0 0.0
      %4189 = vmatmul.mubr.f32.gmra.mrb[0].mxu0 %v3987
      %v4190 = vpop.f32.mrb[0].mxu0
      %v4191 = vadd.f32 %v1023, %v4190
      %v4192 = vpop.f32.mrb[0].mxu0
      %4193 = vmatprep.mubr.f32.mxu0 0.0
      %4194 = vmatmul.mubr.f32.gmra.mrb[0].mxu0 %v3990
      %v4195 = vpop.f32.mrb[0].mxu0
      %v4196 = vadd.f32 %v1023, %v4195
      %v4197 = vpop.f32.mrb[0].mxu0
      %4198 = vmatprep.mubr.f32.mxu0 0.0
      %4199 = vmatmul.mubr.f32.gmra.mrb[0].mxu0 %v3993
      %v4200 = vpop.f32.mrb[0].mxu0
      %v4201 = vadd.f32 %v1023, %v4200
      %v4202 = vpop.f32.mrb[0].mxu0
      %4203 = vmatprep.mubr.f32.mxu0 0.0
      %4204 = vmatmul.mubr.f32.gmra.mrb[0].mxu0 %v3996
      %v4205 = vpop.f32.mrb[0].mxu0
      %v4206 = vadd.f32 %v1023, %v4205
      %v4207 = vpop.f32.mrb[0].mxu0
      %4208 = vmatprep.mubr.f32.mxu0 0.0
      %4209 = vmatmul.mubr.f32.gmra.mrb[0].mxu0 %v3999
      %v4210 = vpop.f32.mrb[0].mxu0
      %v4211 = vadd.f32 %v1023, %v4210
      %v4212 = vpop.f32.mrb[0].mxu0
      %4213 = vmatprep.mubr.f32.mxu0 0.0
      %4214 = vmatmul.mubr.f32.gmra.mrb[0].mxu0 %v4002
      %v4215 = vpop.f32.mrb[0].mxu0
      %v4216 = vadd.f32 %v1023, %v4215
      %v4217 = vpop.f32.mrb[0].mxu0
      %4218 = vmatprep.mubr.f32.mxu0 0.0
      %4219 = vmatmul.mubr.f32.gmra.mrb[0].mxu0 %v4005
      %v4220 = vpop.f32.mrb[0].mxu0
      %v4221 = vadd.f32 %v1023, %v4220
      %v4222 = vpop.f32.mrb[0].mxu0
      %4223 = vmatprep.mubr.f32.mxu0 0.0
      %4224 = vmatmul.mubr.f32.gmra.mrb[0].mxu0 %v4008
      %v4225 = vpop.f32.mrb[0].mxu0
      %v4226 = vadd.f32 %v1023, %v4225
      %v4227 = vpop.f32.mrb[0].mxu0
      %4228 = vmatprep.mubr.f32.mxu0 0.0
      %4229 = vmatmul.mubr.f32.gmra.mrb[0].mxu0 %v4011
      %v4230 = vpop.f32.mrb[0].mxu0
      %v4231 = vadd.f32 %v1023, %v4230
      %v4232 = vpop.f32.mrb[0].mxu0
      %4233 = vmatprep.mubr.f32.mxu0 0.0
      %4234 = vmatmul.mubr.f32.gmra.mrb[0].mxu0 %v4014
      %v4235 = vpop.f32.mrb[0].mxu0
      %v4236 = vadd.f32 %v1023, %v4235
      %v4237 = vpop.f32.mrb[0].mxu0
      %4238 = vmatprep.mubr.f32.mxu0 0.0
      %4239 = vmatmul.mubr.f32.gmra.mrb[0].mxu0 %v4017
      %v4240 = vpop.f32.mrb[0].mxu0
      %v4241 = vadd.f32 %v1023, %v4240
      %v4242 = vpop.f32.mrb[0].mxu0
      %4243 = vdwg.mxu0
      %s4244 = scalar_lea.vmem %s221, 48
      %4245 = vst.msk [vmem:[%s4244] sm:$0xff] %vm254, %v4086
      %4246 = vst.msk [vmem:[%s4244 + $0x8] sm:$0xff] %vm254, %v4091
      %4247 = vst.msk [vmem:[%s4244 + $0x40] sm:$0xff] %vm254, %v4096
      %4248 = vst.msk [vmem:[%s4244 + $0x48] sm:$0xff] %vm254, %v4101
      %4249 = vst.msk [vmem:[%s4244 + $0x80] sm:$0xff] %vm254, %v4106
      %4250 = vst.msk [vmem:[%s4244 + $0x88] sm:$0xff] %vm254, %v4111
      %4251 = vst.msk [vmem:[%s4244 + $0xc0] sm:$0xff] %vm254, %v4116
      %4252 = vst.msk [vmem:[%s4244 + $0xc8] sm:$0xff] %vm254, %v4121
      %4253 = vst.msk [vmem:[%s4244 + $0x100] sm:$0xff] %vm254, %v4126
      %4254 = vst.msk [vmem:[%s4244 + $0x108] sm:$0xff] %vm254, %v4131
      %4255 = vst.msk [vmem:[%s4244 + $0x140] sm:$0xff] %vm254, %v4136
      %4256 = vst.msk [vmem:[%s4244 + $0x148] sm:$0xff] %vm254, %v4141
      %4257 = vst.msk [vmem:[%s4244 + $0x180] sm:$0xff] %vm254, %v4146
      %4258 = vst.msk [vmem:[%s4244 + $0x188] sm:$0xff] %vm254, %v4151
      %4259 = vst.msk [vmem:[%s4244 + $0x1c0] sm:$0xff] %vm254, %v4156
      %4260 = vst.msk [vmem:[%s4244 + $0x1c8] sm:$0xff] %vm254, %v4161
      %4261 = vst.msk [vmem:[%s4244 + $0x200] sm:$0xff] %vm254, %v4166
      %4262 = vst.msk [vmem:[%s4244 + $0x208] sm:$0xff] %vm254, %v4171
      %4263 = vst.msk [vmem:[%s4244 + $0x240] sm:$0xff] %vm254, %v4176
      %4264 = vst.msk [vmem:[%s4244 + $0x248] sm:$0xff] %vm254, %v4181
      %4265 = vst.msk [vmem:[%s4244 + $0x280] sm:$0xff] %vm254, %v4186
      %4266 = vst.msk [vmem:[%s4244 + $0x288] sm:$0xff] %vm254, %v4191
      %4267 = vst.msk [vmem:[%s4244 + $0x2c0] sm:$0xff] %vm254, %v4196
      %4268 = vst.msk [vmem:[%s4244 + $0x2c8] sm:$0xff] %vm254, %v4201
      %4269 = vst.msk [vmem:[%s4244 + $0x300] sm:$0xff] %vm254, %v4206
      %4270 = vst.msk [vmem:[%s4244 + $0x308] sm:$0xff] %vm254, %v4211
      %4271 = vst.msk [vmem:[%s4244 + $0x340] sm:$0xff] %vm254, %v4216
      %4272 = vst.msk [vmem:[%s4244 + $0x348] sm:$0xff] %vm254, %v4221
      %4273 = vst.msk [vmem:[%s4244 + $0x380] sm:$0xff] %vm254, %v4226
      %4274 = vst.msk [vmem:[%s4244 + $0x388] sm:$0xff] %vm254, %v4231
      %4275 = vst.msk [vmem:[%s4244 + $0x3c0] sm:$0xff] %vm254, %v4236
      %4276 = vst.msk [vmem:[%s4244 + $0x3c8] sm:$0xff] %vm254, %v4241
      %p4277 = scmp.lt.s32.totalorder %s19, 1
      %s4278 = scalar_select %p4277, %s19, 1
      %p4279 = scmp.lt.s32.totalorder %s18, 0
      %s4280 = scalar_select %p4279, %s18, 0
      %s4281 = smul.addr %s4278, 128
      %s4282 = sadd.s32 %s4280, %s4281
      %s4283 = smul.addr %s4282, 8
      %s4284 = scalar_lea.vmem %s3, %s4283
      // Predicated region
      $region33: #{tpu_custom_call.1} parent=31 // pred_check
        %p4285 = pneg %p124
      $region34: #{tpu_custom_call.1} parent=31 // pred_check_branch
        %4287 = sbr.rel (%p4285) target = $region36
      $region35: #{tpu_custom_call.1} parent=31 // pred_region
        _
      $region36: #{tpu_custom_call.1} parent=31 // pred_fallthru
        _
    $region32: #{tpu_custom_call.1} parent=5 // pred_fallthru
      _
    %p4288 = scmp.le.s32.totalorder 2, %s9
    // Predicated region
    $region37: #{tpu_custom_call.1} parent=5 // pred_check
      %p4289 = pneg %p4288
    $region38: #{tpu_custom_call.1} parent=5 // pred_check_branch
      %4291 = sbr.rel (%p4289) target = $region40
    $region39: #{tpu_custom_call.1} parent=5 // pred_region
      %s4292 = ssub.s32 %s9, 2
      // Predicated region
      $region41: #{tpu_custom_call.1} parent=39 // pred_check
        %p4293 = pneg %p130
      $region42: #{tpu_custom_call.1} parent=39 // pred_check_branch
        %4295 = sbr.rel (%p4293) target = $region44
      $region43: #{tpu_custom_call.1} parent=39 // pred_region
        %p4296 = scmp.lt.s32.totalorder %s21, 1
        %s4297 = scalar_select %p4296, %s21, 1
        %p4298 = scmp.lt.s32.totalorder %s20, 0
        %s4299 = scalar_select %p4298, %s20, 0
        %s4300 = smul.addr %s4297, 128
        %s4301 = sadd.s32 %s4299, %s4300
        %s4302 = smul.addr %s4301, 8
        %s4303 = scalar_lea.vmem %s3, %s4302
      $region44: #{tpu_custom_call.1} parent=39 // pred_fallthru
        _
    $region40: #{tpu_custom_call.1} parent=5 // pred_fallthru
      _
  $region6: #{tpu_custom_call.1} parent=0 // loop_footer
    %s13 = sadd.s32 1, %s9
  $region7: #{tpu_custom_call.1} parent=0 // loop_footer_branch
    %8 = sbr.rel target = $region3
  $region8: #{tpu_custom_call.1} parent=0 // loop_exit
    _

</llo_original>
